<compile_context>
chip_gen: v6e
topology: v6e:2x2x1
jax: 0.10.0
libtpu: 0.0.40
codegen_flags: <defaults>
</compile_context>

<pallas_src>
import jax
import jax.numpy as jnp
from jax.experimental import pallas as pl
from jax.experimental.pallas import tpu as pltpu

K = 3                 # conv kernel size (3x3), stride 1, no padding (nn.Conv2d defaults)
LANE = 128            # TPU lane width: feature / class axes are padded to this
MAX_BATCH_BLOCK = 64  # images per grid step (keeps intermediates small even on v7x VMEM)


def _network_kernel(x_ref, w1_ref, b1_ref, w2_ref, b2_ref, wc_ref, bc_ref, pred_ref):
    """One batch block per grid step: conv1 -> conv2 + ReLU + GAP -> linear."""
    x = x_ref[...]                                     # (Bb, H, W) f32
    Bb, H, W = x.shape
    Ho1, Wo1 = H - (K - 1), W - (K - 1)                # start_conv output spatial
    Ho2, Wo2 = Ho1 - (K - 1), Wo1 - (K - 1)            # surrogate-backbone conv output
    Fp = w2_ref.shape[1]                               # lane-padded feature width
    KK = K * K

    # ---- start_conv: nn.Conv2d(1, 3, (3, 3)) -------------------------------
    # 9 taps x 3 channels is tiny: VPU path with scalar weights from SMEM.
    taps1 = [x[:, dy:dy + Ho1, dx:dx + Wo1] for dy in range(K) for dx in range(K)]
    planes = []
    for c in range(3):
        acc = taps1[0] * w1_ref[0, c]
        for k in range(1, KK):
            acc = acc + taps1[k] * w1_ref[k, c]
        planes.append(acc + b1_ref[0, c])              # (Bb, Ho1, Wo1)

    # ---- surrogate backbone conv: Conv2d(3, F, 3x3) + ReLU ------------------
    # im2col: build (Bb*Ho2*Wo2, 27) patch matrix, single MXU matmul.
    taps2 = [planes[c][:, dy:dy + Ho2, dx:dx + Wo2]
             for c in range(3) for dy in range(K) for dx in range(K)]
    patches = jnp.stack(taps2, axis=-1)                # (Bb, Ho2, Wo2, 27)
    patches = patches.reshape(Bb * Ho2 * Wo2, 3 * KK)  # (rows, 27)
    y2 = jnp.dot(patches, w2_ref[...],
                 preferred_element_type=jnp.float32)   # (rows, Fp)  -- MXU
    y2 = jnp.maximum(y2 + b2_ref[...], 0.0)

    # ---- global average pool ------------------------------------------------
    # F sits on lanes -> per-image sublane sum; 1/(Ho2*Wo2) is folded into wc.
    feat = jnp.sum(y2.reshape(Bb, Ho2 * Wo2, Fp), axis=1)   # (Bb, Fp)

    # ---- classifier: nn.Linear(num_features, num_classes) ------------------
    pred = jnp.dot(feat, wc_ref[...],
                   preferred_element_type=jnp.float32) + bc_ref[...]
    pred_ref[...] = pred.astype(pred_ref.dtype)


def _round_up(n, m):
    return ((n + m - 1) // m) * m


def _pad2d(a, rows, cols):
    return jnp.pad(a, ((0, rows - a.shape[0]), (0, cols - a.shape[1])))


def network_forward(x_nchw, params):
    """x_nchw: (N, 1, H, W) float32 (PyTorch NCHW). Returns preds (N, num_classes)."""
    w1, b1, w2, b2, wc, bc = params
    N, Cin, H, W = x_nchw.shape
    assert Cin == 1, "start_conv expects a single input channel"
    x = x_nchw.reshape(N, H, W).astype(jnp.float32)

    F = w2.shape[1]
    C = wc.shape[1]
    Ho2, Wo2 = H - 2 * (K - 1), W - 2 * (K - 1)
    pool = Ho2 * Wo2

    # Lane-dense zero padding of feature / class axes (exact: padded features
    # stay zero through conv + ReLU + GAP, padded classes are sliced off).
    Fp = _round_up(F, LANE)
    Cp = _round_up(C, LANE)
    w2p = _pad2d(w2.astype(jnp.float32), 3 * K * K, Fp)
    b2p = _pad2d(b2.astype(jnp.float32), 1, Fp)
    wcp = _pad2d((wc / pool).astype(jnp.float32), Fp, Cp)   # GAP scale folded in
    bcp = _pad2d(bc.astype(jnp.float32), 1, Cp)

    # Batch blocking: amortize per-step overhead, cap the block so the im2col /
    # conv2 intermediates stay well inside VMEM on every generation.
    Bb = min(N, MAX_BATCH_BLOCK)
    Np = _round_up(N, Bb)
    if Np != N:
        x = jnp.pad(x, ((0, Np - N), (0, 0), (0, 0)))
    grid = (Np // Bb,)

    out = pl.pallas_call(
        _network_kernel,
        out_shape=jax.ShapeDtypeStruct((Np, Cp), jnp.float32),
        grid_spec=pltpu.PrefetchScalarGridSpec(
            num_scalar_prefetch=0,
            grid=grid,
            in_specs=[
                pl.BlockSpec((Bb, H, W), lambda b: (b, 0, 0)),          # image block
                pl.BlockSpec(memory_space=pltpu.MemorySpace.SMEM),      # w1 (9, 3)
                pl.BlockSpec(memory_space=pltpu.MemorySpace.SMEM),      # b1 (1, 3)
                pl.BlockSpec((3 * K * K, Fp), lambda b: (0, 0)),        # w2 (27, Fp)
                pl.BlockSpec((1, Fp), lambda b: (0, 0)),                # b2
                pl.BlockSpec((Fp, Cp), lambda b: (0, 0)),               # wc (pre-scaled)
                pl.BlockSpec((1, Cp), lambda b: (0, 0)),                # bc
            ],
            out_specs=pl.BlockSpec((Bb, Cp), lambda b: (b, 0)),
        ),
        compiler_params=pltpu.CompilerParams(
            dimension_semantics=("parallel",)),
    )(x, w1, b1, w2p, b2p, wcp, bcp)

    return out[:N, :C]


def reference_forward(x_nchw, params):
    """Plain-JAX reference (same math, batched) for verification."""
    w1, b1, w2, b2, wc, bc = params
    N, _, H, W = x_nchw.shape
    x = x_nchw.reshape(N, H, W).astype(jnp.float32)
    Ho1, Wo1 = H - 2, W - 2
    Ho2, Wo2 = Ho1 - 2, Wo1 - 2

    y1 = jnp.zeros((N, Ho1, Wo1, 3), jnp.float32)
    for dy in range(K):
        for dx in range(K):
            y1 = y1 + x[:, dy:dy + Ho1, dx:dx + Wo1, None] * w1[dy * K + dx][None, None, None, :]
    y1 = y1 + b1[0][None, None, None, :]

    F = w2.shape[1]
    y2 = jnp.zeros((N, Ho2, Wo2, F), jnp.float32)
    for c in range(3):
        for dy in range(K):
            for dx in range(K):
                k = c * K * K + dy * K + dx
                y2 = y2 + y1[:, dy:dy + Ho2, dx:dx + Wo2, c, None] * w2[k][None, None, None, :]
    y2 = jnp.maximum(y2 + b2[0][None, None, None, :], 0.0)
    feat = jnp.mean(y2, axis=(1, 2))
    return feat @ wc + bc


def init_params(key, num_features, num_classes):
    ks = jax.random.split(key, 6)
    w1 = 0.30 * jax.random.normal(ks[0], (K * K, 3), jnp.float32)
    b1 = 0.05 * jax.random.normal(ks[1], (1, 3), jnp.float32)
    w2 = 0.15 * jax.random.normal(ks[2], (3 * K * K, num_features), jnp.float32)
    b2 = 0.05 * jax.random.normal(ks[3], (1, num_features), jnp.float32)
    wc = 0.10 * jax.random.normal(ks[4], (num_features, num_classes), jnp.float32)
    bc = 0.05 * jax.random.normal(ks[5], (1, num_classes), jnp.float32)
    return (w1, b1, w2, b2, wc, bc)


if __name__ == "__main__":
    N, H, W = 2, 16, 16
    num_features, num_classes = 32, 10

    key = jax.random.PRNGKey(0)
    k_x, k_p = jax.random.split(key)
    x = jax.random.normal(k_x, (N, 1, H, W), jnp.float32)   # PyTorch NCHW, C_in = 1
    params = init_params(k_p, num_features, num_classes)

    preds = jax.block_until_ready(network_forward(x, params))
    ref = reference_forward(x, params)

    assert preds.shape == (N, num_classes)
    # Tolerance accounts for MXU default matmul precision (bf16-based passes)
    # vs the pure-f32 VPU reference; structure errors would be O(0.1-1).
    assert jnp.allclose(preds, ref, atol=1e-2, rtol=1e-2), "mismatch vs reference"

    print("KERNEL_OK")
</pallas_src>

<mosaic_0001>
module attributes {stable_mosaic.version = 11 : i64} {
  func.func @_network_kernel(%arg0: i32, %arg1: memref<2x16x16xf32, #tpu.memory_space<vmem>>, %arg2: memref<9x3xf32, #tpu.memory_space<smem>>, %arg3: memref<1x3xf32, #tpu.memory_space<smem>>, %arg4: memref<27x128xf32, #tpu.memory_space<vmem>>, %arg5: memref<1x128xf32, #tpu.memory_space<vmem>>, %arg6: memref<128x128xf32, #tpu.memory_space<vmem>>, %arg7: memref<1x128xf32, #tpu.memory_space<vmem>>, %arg8: memref<2x128xf32, #tpu.memory_space<vmem>>) attributes {dimension_semantics = [#tpu.dimension_semantics<parallel>], iteration_bounds = array<i64: 1>, scalar_prefetch = 0 : i64, scratch_operands = 0 : i64, tpu.core_type = #tpu.core_type<tc>, window_params = [{transform_indices = @transform_0, window_bounds = array<i64: 2, 16, 16>}, {transform_indices = @transform_1, window_bounds = array<i64: 9, 3>}, {transform_indices = @transform_2, window_bounds = array<i64: 1, 3>}, {pipeline_mode = #tpu.pipeline_mode<synchronous>, transform_indices = @transform_3, window_bounds = array<i64: 27, 128>}, {pipeline_mode = #tpu.pipeline_mode<synchronous>, transform_indices = @transform_4, window_bounds = array<i64: 1, 128>}, {pipeline_mode = #tpu.pipeline_mode<synchronous>, transform_indices = @transform_5, window_bounds = array<i64: 128, 128>}, {pipeline_mode = #tpu.pipeline_mode<synchronous>, transform_indices = @transform_6, window_bounds = array<i64: 1, 128>}, {transform_indices = @transform_7, window_bounds = array<i64: 2, 128>}]} {
    %c0 = arith.constant 0 : index
    %c0_0 = arith.constant 0 : index
    %c0_1 = arith.constant 0 : index
    %0 = vector.load %arg1[%c0, %c0_0, %c0_1] : memref<2x16x16xf32, #tpu.memory_space<vmem>>, vector<2x16x16xf32>
    %1 = vector.extract_strided_slice %0 {offsets = [0, 0, 0], sizes = [2, 14, 14], strides = [1, 1, 1]} : vector<2x16x16xf32> to vector<2x14x14xf32>
    %2 = vector.extract_strided_slice %0 {offsets = [0, 0, 1], sizes = [2, 14, 14], strides = [1, 1, 1]} : vector<2x16x16xf32> to vector<2x14x14xf32>
    %3 = vector.extract_strided_slice %0 {offsets = [0, 0, 2], sizes = [2, 14, 14], strides = [1, 1, 1]} : vector<2x16x16xf32> to vector<2x14x14xf32>
    %4 = vector.extract_strided_slice %0 {offsets = [0, 1, 0], sizes = [2, 14, 14], strides = [1, 1, 1]} : vector<2x16x16xf32> to vector<2x14x14xf32>
    %5 = vector.extract_strided_slice %0 {offsets = [0, 1, 1], sizes = [2, 14, 14], strides = [1, 1, 1]} : vector<2x16x16xf32> to vector<2x14x14xf32>
    %6 = vector.extract_strided_slice %0 {offsets = [0, 1, 2], sizes = [2, 14, 14], strides = [1, 1, 1]} : vector<2x16x16xf32> to vector<2x14x14xf32>
    %7 = vector.extract_strided_slice %0 {offsets = [0, 2, 0], sizes = [2, 14, 14], strides = [1, 1, 1]} : vector<2x16x16xf32> to vector<2x14x14xf32>
    %8 = vector.extract_strided_slice %0 {offsets = [0, 2, 1], sizes = [2, 14, 14], strides = [1, 1, 1]} : vector<2x16x16xf32> to vector<2x14x14xf32>
    %9 = vector.extract_strided_slice %0 {offsets = [0, 2, 2], sizes = [2, 14, 14], strides = [1, 1, 1]} : vector<2x16x16xf32> to vector<2x14x14xf32>
    %c0_2 = arith.constant 0 : index
    %c0_3 = arith.constant 0 : index
    %10 = memref.load %arg2[%c0_2, %c0_3] : memref<9x3xf32, #tpu.memory_space<smem>>
    %11 = vector.broadcast %10 : f32 to vector<2x14x14xf32>
    %12 = arith.mulf %1, %11 : vector<2x14x14xf32>
    %c1 = arith.constant 1 : index
    %c0_4 = arith.constant 0 : index
    %13 = memref.load %arg2[%c1, %c0_4] : memref<9x3xf32, #tpu.memory_space<smem>>
    %14 = vector.broadcast %13 : f32 to vector<2x14x14xf32>
    %15 = arith.mulf %2, %14 : vector<2x14x14xf32>
    %16 = arith.addf %12, %15 : vector<2x14x14xf32>
    %c2 = arith.constant 2 : index
    %c0_5 = arith.constant 0 : index
    %17 = memref.load %arg2[%c2, %c0_5] : memref<9x3xf32, #tpu.memory_space<smem>>
    %18 = vector.broadcast %17 : f32 to vector<2x14x14xf32>
    %19 = arith.mulf %3, %18 : vector<2x14x14xf32>
    %20 = arith.addf %16, %19 : vector<2x14x14xf32>
    %c3 = arith.constant 3 : index
    %c0_6 = arith.constant 0 : index
    %21 = memref.load %arg2[%c3, %c0_6] : memref<9x3xf32, #tpu.memory_space<smem>>
    %22 = vector.broadcast %21 : f32 to vector<2x14x14xf32>
    %23 = arith.mulf %4, %22 : vector<2x14x14xf32>
    %24 = arith.addf %20, %23 : vector<2x14x14xf32>
    %c4 = arith.constant 4 : index
    %c0_7 = arith.constant 0 : index
    %25 = memref.load %arg2[%c4, %c0_7] : memref<9x3xf32, #tpu.memory_space<smem>>
    %26 = vector.broadcast %25 : f32 to vector<2x14x14xf32>
    %27 = arith.mulf %5, %26 : vector<2x14x14xf32>
    %28 = arith.addf %24, %27 : vector<2x14x14xf32>
    %c5 = arith.constant 5 : index
    %c0_8 = arith.constant 0 : index
    %29 = memref.load %arg2[%c5, %c0_8] : memref<9x3xf32, #tpu.memory_space<smem>>
    %30 = vector.broadcast %29 : f32 to vector<2x14x14xf32>
    %31 = arith.mulf %6, %30 : vector<2x14x14xf32>
    %32 = arith.addf %28, %31 : vector<2x14x14xf32>
    %c6 = arith.constant 6 : index
    %c0_9 = arith.constant 0 : index
    %33 = memref.load %arg2[%c6, %c0_9] : memref<9x3xf32, #tpu.memory_space<smem>>
    %34 = vector.broadcast %33 : f32 to vector<2x14x14xf32>
    %35 = arith.mulf %7, %34 : vector<2x14x14xf32>
    %36 = arith.addf %32, %35 : vector<2x14x14xf32>
    %c7 = arith.constant 7 : index
    %c0_10 = arith.constant 0 : index
    %37 = memref.load %arg2[%c7, %c0_10] : memref<9x3xf32, #tpu.memory_space<smem>>
    %38 = vector.broadcast %37 : f32 to vector<2x14x14xf32>
    %39 = arith.mulf %8, %38 : vector<2x14x14xf32>
    %40 = arith.addf %36, %39 : vector<2x14x14xf32>
    %c8 = arith.constant 8 : index
    %c0_11 = arith.constant 0 : index
    %41 = memref.load %arg2[%c8, %c0_11] : memref<9x3xf32, #tpu.memory_space<smem>>
    %42 = vector.broadcast %41 : f32 to vector<2x14x14xf32>
    %43 = arith.mulf %9, %42 : vector<2x14x14xf32>
    %44 = arith.addf %40, %43 : vector<2x14x14xf32>
    %c0_12 = arith.constant 0 : index
    %c0_13 = arith.constant 0 : index
    %45 = memref.load %arg3[%c0_12, %c0_13] : memref<1x3xf32, #tpu.memory_space<smem>>
    %46 = vector.broadcast %45 : f32 to vector<2x14x14xf32>
    %47 = arith.addf %44, %46 : vector<2x14x14xf32>
    %c0_14 = arith.constant 0 : index
    %c1_15 = arith.constant 1 : index
    %48 = memref.load %arg2[%c0_14, %c1_15] : memref<9x3xf32, #tpu.memory_space<smem>>
    %49 = vector.broadcast %48 : f32 to vector<2x14x14xf32>
    %50 = arith.mulf %1, %49 : vector<2x14x14xf32>
    %c1_16 = arith.constant 1 : index
    %c1_17 = arith.constant 1 : index
    %51 = memref.load %arg2[%c1_16, %c1_17] : memref<9x3xf32, #tpu.memory_space<smem>>
    %52 = vector.broadcast %51 : f32 to vector<2x14x14xf32>
    %53 = arith.mulf %2, %52 : vector<2x14x14xf32>
    %54 = arith.addf %50, %53 : vector<2x14x14xf32>
    %c2_18 = arith.constant 2 : index
    %c1_19 = arith.constant 1 : index
    %55 = memref.load %arg2[%c2_18, %c1_19] : memref<9x3xf32, #tpu.memory_space<smem>>
    %56 = vector.broadcast %55 : f32 to vector<2x14x14xf32>
    %57 = arith.mulf %3, %56 : vector<2x14x14xf32>
    %58 = arith.addf %54, %57 : vector<2x14x14xf32>
    %c3_20 = arith.constant 3 : index
    %c1_21 = arith.constant 1 : index
    %59 = memref.load %arg2[%c3_20, %c1_21] : memref<9x3xf32, #tpu.memory_space<smem>>
    %60 = vector.broadcast %59 : f32 to vector<2x14x14xf32>
    %61 = arith.mulf %4, %60 : vector<2x14x14xf32>
    %62 = arith.addf %58, %61 : vector<2x14x14xf32>
    %c4_22 = arith.constant 4 : index
    %c1_23 = arith.constant 1 : index
    %63 = memref.load %arg2[%c4_22, %c1_23] : memref<9x3xf32, #tpu.memory_space<smem>>
    %64 = vector.broadcast %63 : f32 to vector<2x14x14xf32>
    %65 = arith.mulf %5, %64 : vector<2x14x14xf32>
    %66 = arith.addf %62, %65 : vector<2x14x14xf32>
    %c5_24 = arith.constant 5 : index
    %c1_25 = arith.constant 1 : index
    %67 = memref.load %arg2[%c5_24, %c1_25] : memref<9x3xf32, #tpu.memory_space<smem>>
    %68 = vector.broadcast %67 : f32 to vector<2x14x14xf32>
    %69 = arith.mulf %6, %68 : vector<2x14x14xf32>
    %70 = arith.addf %66, %69 : vector<2x14x14xf32>
    %c6_26 = arith.constant 6 : index
    %c1_27 = arith.constant 1 : index
    %71 = memref.load %arg2[%c6_26, %c1_27] : memref<9x3xf32, #tpu.memory_space<smem>>
    %72 = vector.broadcast %71 : f32 to vector<2x14x14xf32>
    %73 = arith.mulf %7, %72 : vector<2x14x14xf32>
    %74 = arith.addf %70, %73 : vector<2x14x14xf32>
    %c7_28 = arith.constant 7 : index
    %c1_29 = arith.constant 1 : index
    %75 = memref.load %arg2[%c7_28, %c1_29] : memref<9x3xf32, #tpu.memory_space<smem>>
    %76 = vector.broadcast %75 : f32 to vector<2x14x14xf32>
    %77 = arith.mulf %8, %76 : vector<2x14x14xf32>
    %78 = arith.addf %74, %77 : vector<2x14x14xf32>
    %c8_30 = arith.constant 8 : index
    %c1_31 = arith.constant 1 : index
    %79 = memref.load %arg2[%c8_30, %c1_31] : memref<9x3xf32, #tpu.memory_space<smem>>
    %80 = vector.broadcast %79 : f32 to vector<2x14x14xf32>
    %81 = arith.mulf %9, %80 : vector<2x14x14xf32>
    %82 = arith.addf %78, %81 : vector<2x14x14xf32>
    %c0_32 = arith.constant 0 : index
    %c1_33 = arith.constant 1 : index
    %83 = memref.load %arg3[%c0_32, %c1_33] : memref<1x3xf32, #tpu.memory_space<smem>>
    %84 = vector.broadcast %83 : f32 to vector<2x14x14xf32>
    %85 = arith.addf %82, %84 : vector<2x14x14xf32>
    %c0_34 = arith.constant 0 : index
    %c2_35 = arith.constant 2 : index
    %86 = memref.load %arg2[%c0_34, %c2_35] : memref<9x3xf32, #tpu.memory_space<smem>>
    %87 = vector.broadcast %86 : f32 to vector<2x14x14xf32>
    %88 = arith.mulf %1, %87 : vector<2x14x14xf32>
    %c1_36 = arith.constant 1 : index
    %c2_37 = arith.constant 2 : index
    %89 = memref.load %arg2[%c1_36, %c2_37] : memref<9x3xf32, #tpu.memory_space<smem>>
    %90 = vector.broadcast %89 : f32 to vector<2x14x14xf32>
    %91 = arith.mulf %2, %90 : vector<2x14x14xf32>
    %92 = arith.addf %88, %91 : vector<2x14x14xf32>
    %c2_38 = arith.constant 2 : index
    %c2_39 = arith.constant 2 : index
    %93 = memref.load %arg2[%c2_38, %c2_39] : memref<9x3xf32, #tpu.memory_space<smem>>
    %94 = vector.broadcast %93 : f32 to vector<2x14x14xf32>
    %95 = arith.mulf %3, %94 : vector<2x14x14xf32>
    %96 = arith.addf %92, %95 : vector<2x14x14xf32>
    %c3_40 = arith.constant 3 : index
    %c2_41 = arith.constant 2 : index
    %97 = memref.load %arg2[%c3_40, %c2_41] : memref<9x3xf32, #tpu.memory_space<smem>>
    %98 = vector.broadcast %97 : f32 to vector<2x14x14xf32>
    %99 = arith.mulf %4, %98 : vector<2x14x14xf32>
    %100 = arith.addf %96, %99 : vector<2x14x14xf32>
    %c4_42 = arith.constant 4 : index
    %c2_43 = arith.constant 2 : index
    %101 = memref.load %arg2[%c4_42, %c2_43] : memref<9x3xf32, #tpu.memory_space<smem>>
    %102 = vector.broadcast %101 : f32 to vector<2x14x14xf32>
    %103 = arith.mulf %5, %102 : vector<2x14x14xf32>
    %104 = arith.addf %100, %103 : vector<2x14x14xf32>
    %c5_44 = arith.constant 5 : index
    %c2_45 = arith.constant 2 : index
    %105 = memref.load %arg2[%c5_44, %c2_45] : memref<9x3xf32, #tpu.memory_space<smem>>
    %106 = vector.broadcast %105 : f32 to vector<2x14x14xf32>
    %107 = arith.mulf %6, %106 : vector<2x14x14xf32>
    %108 = arith.addf %104, %107 : vector<2x14x14xf32>
    %c6_46 = arith.constant 6 : index
    %c2_47 = arith.constant 2 : index
    %109 = memref.load %arg2[%c6_46, %c2_47] : memref<9x3xf32, #tpu.memory_space<smem>>
    %110 = vector.broadcast %109 : f32 to vector<2x14x14xf32>
    %111 = arith.mulf %7, %110 : vector<2x14x14xf32>
    %112 = arith.addf %108, %111 : vector<2x14x14xf32>
    %c7_48 = arith.constant 7 : index
    %c2_49 = arith.constant 2 : index
    %113 = memref.load %arg2[%c7_48, %c2_49] : memref<9x3xf32, #tpu.memory_space<smem>>
    %114 = vector.broadcast %113 : f32 to vector<2x14x14xf32>
    %115 = arith.mulf %8, %114 : vector<2x14x14xf32>
    %116 = arith.addf %112, %115 : vector<2x14x14xf32>
    %c8_50 = arith.constant 8 : index
    %c2_51 = arith.constant 2 : index
    %117 = memref.load %arg2[%c8_50, %c2_51] : memref<9x3xf32, #tpu.memory_space<smem>>
    %118 = vector.broadcast %117 : f32 to vector<2x14x14xf32>
    %119 = arith.mulf %9, %118 : vector<2x14x14xf32>
    %120 = arith.addf %116, %119 : vector<2x14x14xf32>
    %c0_52 = arith.constant 0 : index
    %c2_53 = arith.constant 2 : index
    %121 = memref.load %arg3[%c0_52, %c2_53] : memref<1x3xf32, #tpu.memory_space<smem>>
    %122 = vector.broadcast %121 : f32 to vector<2x14x14xf32>
    %123 = arith.addf %120, %122 : vector<2x14x14xf32>
    %124 = vector.extract_strided_slice %47 {offsets = [0, 0, 0], sizes = [2, 12, 12], strides = [1, 1, 1]} : vector<2x14x14xf32> to vector<2x12x12xf32>
    %125 = vector.extract_strided_slice %47 {offsets = [0, 0, 1], sizes = [2, 12, 12], strides = [1, 1, 1]} : vector<2x14x14xf32> to vector<2x12x12xf32>
    %126 = vector.extract_strided_slice %47 {offsets = [0, 0, 2], sizes = [2, 12, 12], strides = [1, 1, 1]} : vector<2x14x14xf32> to vector<2x12x12xf32>
    %127 = vector.extract_strided_slice %47 {offsets = [0, 1, 0], sizes = [2, 12, 12], strides = [1, 1, 1]} : vector<2x14x14xf32> to vector<2x12x12xf32>
    %128 = vector.extract_strided_slice %47 {offsets = [0, 1, 1], sizes = [2, 12, 12], strides = [1, 1, 1]} : vector<2x14x14xf32> to vector<2x12x12xf32>
    %129 = vector.extract_strided_slice %47 {offsets = [0, 1, 2], sizes = [2, 12, 12], strides = [1, 1, 1]} : vector<2x14x14xf32> to vector<2x12x12xf32>
    %130 = vector.extract_strided_slice %47 {offsets = [0, 2, 0], sizes = [2, 12, 12], strides = [1, 1, 1]} : vector<2x14x14xf32> to vector<2x12x12xf32>
    %131 = vector.extract_strided_slice %47 {offsets = [0, 2, 1], sizes = [2, 12, 12], strides = [1, 1, 1]} : vector<2x14x14xf32> to vector<2x12x12xf32>
    %132 = vector.extract_strided_slice %47 {offsets = [0, 2, 2], sizes = [2, 12, 12], strides = [1, 1, 1]} : vector<2x14x14xf32> to vector<2x12x12xf32>
    %133 = vector.extract_strided_slice %85 {offsets = [0, 0, 0], sizes = [2, 12, 12], strides = [1, 1, 1]} : vector<2x14x14xf32> to vector<2x12x12xf32>
    %134 = vector.extract_strided_slice %85 {offsets = [0, 0, 1], sizes = [2, 12, 12], strides = [1, 1, 1]} : vector<2x14x14xf32> to vector<2x12x12xf32>
    %135 = vector.extract_strided_slice %85 {offsets = [0, 0, 2], sizes = [2, 12, 12], strides = [1, 1, 1]} : vector<2x14x14xf32> to vector<2x12x12xf32>
    %136 = vector.extract_strided_slice %85 {offsets = [0, 1, 0], sizes = [2, 12, 12], strides = [1, 1, 1]} : vector<2x14x14xf32> to vector<2x12x12xf32>
    %137 = vector.extract_strided_slice %85 {offsets = [0, 1, 1], sizes = [2, 12, 12], strides = [1, 1, 1]} : vector<2x14x14xf32> to vector<2x12x12xf32>
    %138 = vector.extract_strided_slice %85 {offsets = [0, 1, 2], sizes = [2, 12, 12], strides = [1, 1, 1]} : vector<2x14x14xf32> to vector<2x12x12xf32>
    %139 = vector.extract_strided_slice %85 {offsets = [0, 2, 0], sizes = [2, 12, 12], strides = [1, 1, 1]} : vector<2x14x14xf32> to vector<2x12x12xf32>
    %140 = vector.extract_strided_slice %85 {offsets = [0, 2, 1], sizes = [2, 12, 12], strides = [1, 1, 1]} : vector<2x14x14xf32> to vector<2x12x12xf32>
    %141 = vector.extract_strided_slice %85 {offsets = [0, 2, 2], sizes = [2, 12, 12], strides = [1, 1, 1]} : vector<2x14x14xf32> to vector<2x12x12xf32>
    %142 = vector.extract_strided_slice %123 {offsets = [0, 0, 0], sizes = [2, 12, 12], strides = [1, 1, 1]} : vector<2x14x14xf32> to vector<2x12x12xf32>
    %143 = vector.extract_strided_slice %123 {offsets = [0, 0, 1], sizes = [2, 12, 12], strides = [1, 1, 1]} : vector<2x14x14xf32> to vector<2x12x12xf32>
    %144 = vector.extract_strided_slice %123 {offsets = [0, 0, 2], sizes = [2, 12, 12], strides = [1, 1, 1]} : vector<2x14x14xf32> to vector<2x12x12xf32>
    %145 = vector.extract_strided_slice %123 {offsets = [0, 1, 0], sizes = [2, 12, 12], strides = [1, 1, 1]} : vector<2x14x14xf32> to vector<2x12x12xf32>
    %146 = vector.extract_strided_slice %123 {offsets = [0, 1, 1], sizes = [2, 12, 12], strides = [1, 1, 1]} : vector<2x14x14xf32> to vector<2x12x12xf32>
    %147 = vector.extract_strided_slice %123 {offsets = [0, 1, 2], sizes = [2, 12, 12], strides = [1, 1, 1]} : vector<2x14x14xf32> to vector<2x12x12xf32>
    %148 = vector.extract_strided_slice %123 {offsets = [0, 2, 0], sizes = [2, 12, 12], strides = [1, 1, 1]} : vector<2x14x14xf32> to vector<2x12x12xf32>
    %149 = vector.extract_strided_slice %123 {offsets = [0, 2, 1], sizes = [2, 12, 12], strides = [1, 1, 1]} : vector<2x14x14xf32> to vector<2x12x12xf32>
    %150 = vector.extract_strided_slice %123 {offsets = [0, 2, 2], sizes = [2, 12, 12], strides = [1, 1, 1]} : vector<2x14x14xf32> to vector<2x12x12xf32>
    %151 = vector.shape_cast %124 : vector<2x12x12xf32> to vector<2x12x12x1xf32>
    %152 = vector.shape_cast %125 : vector<2x12x12xf32> to vector<2x12x12x1xf32>
    %153 = vector.shape_cast %126 : vector<2x12x12xf32> to vector<2x12x12x1xf32>
    %154 = vector.shape_cast %127 : vector<2x12x12xf32> to vector<2x12x12x1xf32>
    %155 = vector.shape_cast %128 : vector<2x12x12xf32> to vector<2x12x12x1xf32>
    %156 = vector.shape_cast %129 : vector<2x12x12xf32> to vector<2x12x12x1xf32>
    %157 = vector.shape_cast %130 : vector<2x12x12xf32> to vector<2x12x12x1xf32>
    %158 = vector.shape_cast %131 : vector<2x12x12xf32> to vector<2x12x12x1xf32>
    %159 = vector.shape_cast %132 : vector<2x12x12xf32> to vector<2x12x12x1xf32>
    %160 = vector.shape_cast %133 : vector<2x12x12xf32> to vector<2x12x12x1xf32>
    %161 = vector.shape_cast %134 : vector<2x12x12xf32> to vector<2x12x12x1xf32>
    %162 = vector.shape_cast %135 : vector<2x12x12xf32> to vector<2x12x12x1xf32>
    %163 = vector.shape_cast %136 : vector<2x12x12xf32> to vector<2x12x12x1xf32>
    %164 = vector.shape_cast %137 : vector<2x12x12xf32> to vector<2x12x12x1xf32>
    %165 = vector.shape_cast %138 : vector<2x12x12xf32> to vector<2x12x12x1xf32>
    %166 = vector.shape_cast %139 : vector<2x12x12xf32> to vector<2x12x12x1xf32>
    %167 = vector.shape_cast %140 : vector<2x12x12xf32> to vector<2x12x12x1xf32>
    %168 = vector.shape_cast %141 : vector<2x12x12xf32> to vector<2x12x12x1xf32>
    %169 = vector.shape_cast %142 : vector<2x12x12xf32> to vector<2x12x12x1xf32>
    %170 = vector.shape_cast %143 : vector<2x12x12xf32> to vector<2x12x12x1xf32>
    %171 = vector.shape_cast %144 : vector<2x12x12xf32> to vector<2x12x12x1xf32>
    %172 = vector.shape_cast %145 : vector<2x12x12xf32> to vector<2x12x12x1xf32>
    %173 = vector.shape_cast %146 : vector<2x12x12xf32> to vector<2x12x12x1xf32>
    %174 = vector.shape_cast %147 : vector<2x12x12xf32> to vector<2x12x12x1xf32>
    %175 = vector.shape_cast %148 : vector<2x12x12xf32> to vector<2x12x12x1xf32>
    %176 = vector.shape_cast %149 : vector<2x12x12xf32> to vector<2x12x12x1xf32>
    %177 = vector.shape_cast %150 : vector<2x12x12xf32> to vector<2x12x12x1xf32>
    %178 = tpu.concatenate %151, %152, %153, %154, %155, %156, %157, %158, %159, %160, %161, %162, %163, %164, %165, %166 in 3 : vector<2x12x12x1xf32>, vector<2x12x12x1xf32>, vector<2x12x12x1xf32>, vector<2x12x12x1xf32>, vector<2x12x12x1xf32>, vector<2x12x12x1xf32>, vector<2x12x12x1xf32>, vector<2x12x12x1xf32>, vector<2x12x12x1xf32>, vector<2x12x12x1xf32>, vector<2x12x12x1xf32>, vector<2x12x12x1xf32>, vector<2x12x12x1xf32>, vector<2x12x12x1xf32>, vector<2x12x12x1xf32>, vector<2x12x12x1xf32> -> vector<2x12x12x16xf32>
    %179 = tpu.concatenate %167, %168, %169, %170, %171, %172, %173, %174, %175, %176, %177 in 3 : vector<2x12x12x1xf32>, vector<2x12x12x1xf32>, vector<2x12x12x1xf32>, vector<2x12x12x1xf32>, vector<2x12x12x1xf32>, vector<2x12x12x1xf32>, vector<2x12x12x1xf32>, vector<2x12x12x1xf32>, vector<2x12x12x1xf32>, vector<2x12x12x1xf32>, vector<2x12x12x1xf32> -> vector<2x12x12x11xf32>
    %180 = tpu.concatenate %178, %179 in 3 : vector<2x12x12x16xf32>, vector<2x12x12x11xf32> -> vector<2x12x12x27xf32>
    %181 = vector.shape_cast %180 : vector<2x12x12x27xf32> to vector<288x27xf32>
    %c0_54 = arith.constant 0 : index
    %c0_55 = arith.constant 0 : index
    %182 = vector.load %arg4[%c0_54, %c0_55] : memref<27x128xf32, #tpu.memory_space<vmem>>, vector<27x128xf32>
    %cst = arith.constant dense<0.000000e+00> : vector<288x128xf32>
    %183 = tpu.matmul %181, %182, %cst {dimension_numbers = #tpu.dot_dimension_numbers<[1], [0], [0], [1], [0, 0, 1, 1], [], []>} : vector<288x27xf32>, vector<27x128xf32>, vector<288x128xf32> -> vector<288x128xf32>
    %c0_56 = arith.constant 0 : index
    %c0_57 = arith.constant 0 : index
    %184 = vector.load %arg5[%c0_56, %c0_57] : memref<1x128xf32, #tpu.memory_space<vmem>>, vector<1x128xf32>
    %185 = vector.broadcast %184 : vector<1x128xf32> to vector<288x128xf32>
    %186 = arith.addf %183, %185 : vector<288x128xf32>
    %cst_58 = arith.constant 0.000000e+00 : f32
    %187 = vector.broadcast %cst_58 : f32 to vector<288x128xf32>
    %188 = arith.maximumf %186, %187 : vector<288x128xf32>
    %189 = vector.shape_cast %188 : vector<288x128xf32> to vector<2x144x128xf32>
    %cst_59 = arith.constant dense<0.000000e+00> : vector<2x128xf32>
    %190 = vector.multi_reduction <add>, %189, %cst_59 [1] : vector<2x144x128xf32> to vector<2x128xf32>
    %c0_60 = arith.constant 0 : index
    %c0_61 = arith.constant 0 : index
    %191 = vector.load %arg6[%c0_60, %c0_61] : memref<128x128xf32, #tpu.memory_space<vmem>>, vector<128x128xf32>
    %cst_62 = arith.constant dense<0.000000e+00> : vector<2x128xf32>
    %192 = tpu.matmul %190, %191, %cst_62 {dimension_numbers = #tpu.dot_dimension_numbers<[1], [0], [0], [1], [0, 0, 1, 1], [], []>} : vector<2x128xf32>, vector<128x128xf32>, vector<2x128xf32> -> vector<2x128xf32>
    %c0_63 = arith.constant 0 : index
    %c0_64 = arith.constant 0 : index
    %193 = vector.load %arg7[%c0_63, %c0_64] : memref<1x128xf32, #tpu.memory_space<vmem>>, vector<1x128xf32>
    %194 = vector.broadcast %193 : vector<1x128xf32> to vector<2x128xf32>
    %195 = arith.addf %192, %194 : vector<2x128xf32>
    %c0_65 = arith.constant 0 : index
    %c0_66 = arith.constant 0 : index
    %196 = vector.load %arg8[%c0_65, %c0_66] : memref<2x128xf32, #tpu.memory_space<vmem>>, vector<2x128xf32>
    tpu.vector_store %arg8[%c0_65, %c0_66], %195 {strides = array<i32>} : memref<2x128xf32, #tpu.memory_space<vmem>>, vector<2x128xf32>,
    return
  }
  func.func @transform_0(%arg0: i32) -> (i32, i32, i32) {
    %c0_i32 = arith.constant 0 : i32
    %c0_i32_0 = arith.constant 0 : i32
    %c0_i32_1 = arith.constant 0 : i32
    return %arg0, %c0_i32, %c0_i32_0 : i32, i32, i32
  }
  func.func @transform_1(%arg0: i32) -> (i32, i32) {
    %c0_i32 = arith.constant 0 : i32
    %c0_i32_0 = arith.constant 0 : i32
    %c0_i32_1 = arith.constant 0 : i32
    return %c0_i32, %c0_i32_0 : i32, i32
  }
  func.func @transform_2(%arg0: i32) -> (i32, i32) {
    %c0_i32 = arith.constant 0 : i32
    %c0_i32_0 = arith.constant 0 : i32
    %c0_i32_1 = arith.constant 0 : i32
    return %c0_i32, %c0_i32_0 : i32, i32
  }
  func.func @transform_3(%arg0: i32) -> (i32, i32) {
    %c0_i32 = arith.constant 0 : i32
    %c0_i32_0 = arith.constant 0 : i32
    %c0_i32_1 = arith.constant 0 : i32
    return %c0_i32, %c0_i32_0 : i32, i32
  }
  func.func @transform_4(%arg0: i32) -> (i32, i32) {
    %c0_i32 = arith.constant 0 : i32
    %c0_i32_0 = arith.constant 0 : i32
    %c0_i32_1 = arith.constant 0 : i32
    return %c0_i32, %c0_i32_0 : i32, i32
  }
  func.func @transform_5(%arg0: i32) -> (i32, i32) {
    %c0_i32 = arith.constant 0 : i32
    %c0_i32_0 = arith.constant 0 : i32
    %c0_i32_1 = arith.constant 0 : i32
    return %c0_i32, %c0_i32_0 : i32, i32
  }
  func.func @transform_6(%arg0: i32) -> (i32, i32) {
    %c0_i32 = arith.constant 0 : i32
    %c0_i32_0 = arith.constant 0 : i32
    %c0_i32_1 = arith.constant 0 : i32
    return %c0_i32, %c0_i32_0 : i32, i32
  }
  func.func @transform_7(%arg0: i32) -> (i32, i32) {
    %c0_i32 = arith.constant 0 : i32
    %c0_i32_0 = arith.constant 0 : i32
    return %arg0, %c0_i32 : i32, i32
  }
}

</mosaic_0001>

<llo_original>
// kernel: tpu_custom_call.1
$region0: #{tpu_custom_call.1}
  #allocation0 [shape = 'u32[]', space=smem, size = 0x4, offset = 0x4, fixed_abs, tag = 'smem constant byte address 0x4 - core index']
  #allocation1 [shape = 'u32[144,128]{1,0:T(1,128)}', space=vmem, size = 0x12000, scoped, tag = 'internal scratch']
  %s0 = inlined_call_operand.hbm [shape: f32[2,16,16], index: 0, kind: input, shape index: {}]
  %s1 = inlined_call_operand.vmem [shape: f32[9,3], index: 1, kind: input, shape index: {}]
  %s2 = inlined_call_operand.vmem [shape: f32[1,3], index: 2, kind: input, shape index: {}]
  %s3 = inlined_call_operand.hbm [shape: f32[27,128], index: 3, kind: input, shape index: {}]
  %s4 = inlined_call_operand.vmem [shape: f32[1,128], index: 4, kind: input, shape index: {}]
  %s5 = inlined_call_operand.hbm [shape: f32[128,128], index: 5, kind: input, shape index: {}]
  %s6 = inlined_call_operand.vmem [shape: f32[1,128], index: 6, kind: input, shape index: {}]
  %s7 = inlined_call_operand.hbm [shape: f32[2,128], index: 7, kind: output, shape index: {}]
  %s8 = sld [smem:[#allocation0]]
  $region58: #{tpu_custom_call.1} parent=0
    _
  %s10 = ssub.s32 1, %s8
  %s11 = scalar_select 0, %s10, %s8
  $region1: #{tpu_custom_call.1} parent=0
    #allocation2 [shape = 'u8[16384]{0}', space=vmem, size = 0x4000, scoped, tag = 'input window, operand 0, single buffered']
    #allocation3 [shape = 's32[1]{0}', space=sflag, size = 0x4, scoped, tag = 'scoped memory for tpu_custom_call.1']
    #allocation4 [shape = 's32[1]{0}', space=sflag, size = 0x4, scoped, tag = 'scoped memory for tpu_custom_call.1']
    #allocation5 [shape = 's32[1]{0}', space=sflag, size = 0x4, scoped, tag = 'scoped memory for tpu_custom_call.1']
    #allocation6 [shape = 'u8[8192]{0}', space=smem, size = 0x2000, scoped, tag = 'input window, operand 1, single buffered']
    #allocation7 [shape = 'u8[512]{0}', space=smem, size = 0x200, scoped, tag = 'input window, operand 2, single buffered']
    #allocation8 [shape = 's32[1]{0}', space=sflag, size = 0x4, scoped, tag = 'scoped memory for tpu_custom_call.1']
    #allocation9 [shape = 'u8[16384]{0}', space=vmem, size = 0x4000, scoped, tag = 'input window, operand 3, single buffered']
    #allocation10 [shape = 's32[1]{0}', space=sflag, size = 0x4, scoped, tag = 'scoped memory for tpu_custom_call.1']
    #allocation11 [shape = 'u8[65536]{0}', space=vmem, size = 0x10000, scoped, tag = 'input window, operand 5, single buffered']
    #allocation12 [shape = 'u8[1024]{0}', space=vmem, size = 0x400, scoped, tag = 'output window, operand 0, single buffered']
    %12 = vsyncpa [#allocation3], 0
    %13 = vsyncpa [#allocation5], 0
    %14 = vsyncpa [#allocation8], 0
    %15 = vsyncpa [#allocation10], 0
    %16 = vsyncpa [#allocation4], 0
    // Predicated region
    $region2: #{tpu_custom_call.1} parent=1 // pred_check
      _
    $region3: #{tpu_custom_call.1} parent=1 // pred_check_branch
      %18 = sbr.rel (0) target = $region5
    $region4: #{tpu_custom_call.1} parent=1 // pred_region
      %s20 = ssub.s32 512, 512
      %21 = vsyncadd [#allocation3], %s20
      %s22 = sshll.u32 [#allocation2], 4
      %s23 = int_to_ptr.vmem [resolvable:$true] %s22
      %28 = dma.hbm_to_vmem [thread:$0]  %s0, 512, %s23, [#allocation3], 128, 128, 8
    $region5: #{tpu_custom_call.1} parent=1 // pred_fallthru
      _
    // Predicated region
    $region6: #{tpu_custom_call.1} parent=1 // pred_check
      _
    $region7: #{tpu_custom_call.1} parent=1 // pred_check_branch
      %30 = sbr.rel (0) target = $region9
    $region8: #{tpu_custom_call.1} parent=1 // pred_region
      %s32 = ssub.s32 256, 256
      %33 = vsyncadd [#allocation5], %s32
      %s34 = sshll.u32 %s1, 4
      %s35 = int_to_ptr.vmem [resolvable:$true] %s34
      %40 = dma.vmem_to_smem %s35, 256, [#allocation6], [#allocation5], 128, 128, 8
    $region9: #{tpu_custom_call.1} parent=1 // pred_fallthru
      _
    // Predicated region
    $region10: #{tpu_custom_call.1} parent=1 // pred_check
      _
    $region11: #{tpu_custom_call.1} parent=1 // pred_check_branch
      %42 = sbr.rel (0) target = $region13
    $region12: #{tpu_custom_call.1} parent=1 // pred_region
      %s44 = ssub.s32 16, 16
      %45 = vsyncadd [#allocation8], %s44
      %s47 = sshll.u32 %s2, 4
      %s48 = int_to_ptr.vmem [resolvable:$true] %s47
      %50 = dma.vmem_to_smem %s48, 16, [#allocation7], [#allocation8]
    $region13: #{tpu_custom_call.1} parent=1 // pred_fallthru
      _
    // Predicated region
    $region14: #{tpu_custom_call.1} parent=1 // pred_check
      _
    $region15: #{tpu_custom_call.1} parent=1 // pred_check_branch
      %52 = sbr.rel (0) target = $region17
    $region16: #{tpu_custom_call.1} parent=1 // pred_region
      %s54 = ssub.s32 512, 512
      %55 = vsyncadd [#allocation10], %s54
      %s56 = sshll.u32 [#allocation9], 4
      %s57 = int_to_ptr.vmem [resolvable:$true] %s56
      %62 = dma.hbm_to_vmem [thread:$0]  %s3, 512, %s57, [#allocation10], 128, 128, 8
    $region17: #{tpu_custom_call.1} parent=1 // pred_fallthru
      _
    // Predicated region
    $region18: #{tpu_custom_call.1} parent=1 // pred_check
      _
    $region19: #{tpu_custom_call.1} parent=1 // pred_check_branch
      %64 = sbr.rel (0) target = $region21
    $region20: #{tpu_custom_call.1} parent=1 // pred_region
      _
    $region21: #{tpu_custom_call.1} parent=1 // pred_fallthru
      _
    // Predicated region
    $region22: #{tpu_custom_call.1} parent=1 // pred_check
      _
    $region23: #{tpu_custom_call.1} parent=1 // pred_check_branch
      %66 = sbr.rel (0) target = $region25
    $region24: #{tpu_custom_call.1} parent=1 // pred_region
      %s68 = ssub.s32 2048, 2048
      %69 = vsyncadd [#allocation10], %s68
      %s70 = sshll.u32 [#allocation11], 4
      %s71 = int_to_ptr.vmem [resolvable:$true] %s70
      %76 = dma.hbm_to_vmem [thread:$0]  %s5, 2048, %s71, [#allocation10], 128, 128, 8
    $region25: #{tpu_custom_call.1} parent=1 // pred_fallthru
      _
    // Predicated region
    $region26: #{tpu_custom_call.1} parent=1 // pred_check
      _
    $region27: #{tpu_custom_call.1} parent=1 // pred_check_branch
      %78 = sbr.rel (0) target = $region29
    $region28: #{tpu_custom_call.1} parent=1 // pred_region
      _
    $region29: #{tpu_custom_call.1} parent=1 // pred_fallthru
      _
    // Predicated region
    $region30: #{tpu_custom_call.1} parent=1 // pred_check
      _
    $region31: #{tpu_custom_call.1} parent=1 // pred_check_branch
      %80 = sbr.rel (0) target = $region33
    $region32: #{tpu_custom_call.1} parent=1 // pred_region
      %81 = dma.done [#allocation3], 512
    $region33: #{tpu_custom_call.1} parent=1 // pred_fallthru
      _
    // Predicated region
    $region34: #{tpu_custom_call.1} parent=1 // pred_check
      _
    $region35: #{tpu_custom_call.1} parent=1 // pred_check_branch
      %83 = sbr.rel (0) target = $region37
    $region36: #{tpu_custom_call.1} parent=1 // pred_region
      %84 = dma.done [#allocation5], 256
    $region37: #{tpu_custom_call.1} parent=1 // pred_fallthru
      _
    // Predicated region
    $region38: #{tpu_custom_call.1} parent=1 // pred_check
      _
    $region39: #{tpu_custom_call.1} parent=1 // pred_check_branch
      %86 = sbr.rel (0) target = $region41
    $region40: #{tpu_custom_call.1} parent=1 // pred_region
      %87 = dma.done [#allocation8], 16
    $region41: #{tpu_custom_call.1} parent=1 // pred_fallthru
      _
    // Predicated region
    $region42: #{tpu_custom_call.1} parent=1 // pred_check
      _
    $region43: #{tpu_custom_call.1} parent=1 // pred_check_branch
      %89 = sbr.rel (0) target = $region45
    $region44: #{tpu_custom_call.1} parent=1 // pred_region
      %90 = dma.done [#allocation10], 512
    $region45: #{tpu_custom_call.1} parent=1 // pred_fallthru
      _
    // Predicated region
    $region46: #{tpu_custom_call.1} parent=1 // pred_check
      _
    $region47: #{tpu_custom_call.1} parent=1 // pred_check_branch
      %92 = sbr.rel (0) target = $region49
    $region48: #{tpu_custom_call.1} parent=1 // pred_region
      %93 = dma.done [#allocation10], 2048
    $region49: #{tpu_custom_call.1} parent=1 // pred_fallthru
      _
    %94 = sfence
    %v95 = vld [vmem:[#allocation2] sm:$0xff]
    %v96 = vld [vmem:[#allocation2 + $0x8] sm:$0xff]
    %v97 = vld [vmem:[#allocation2 + $0x10] sm:$0xff]
    %v98 = vld [vmem:[#allocation2 + $0x18] sm:$0xff]
    %s99 = sld [smem:[#allocation6]]
    %v100 = vstv %s99
    %v101 = vmul.f32 %v95, %v100
    %v102 = vmul.f32 %v96, %v100
    %v103 = vmul.f32 %v97, %v100
    %v104 = vmul.f32 %v98, %v100
    %s105 = sld [smem:[#allocation6 + $0x80]]
    %v106 = vstv %s105
    %v107 = vmul.f32 %v95, %v106
    %v108 = vmul.f32 %v96, %v106
    %v109 = vmul.f32 %v97, %v106
    %v110 = vmul.f32 %v98, %v106
    %115 = vrot.lane.b32.xlu0 %v107, 127
    %v116 = vpop.permute.xlu0 %115
    %117 = vrot.lane.b32.xlu0 %v108, 127
    %v118 = vpop.permute.xlu0 %117
    %119 = vrot.lane.b32.xlu0 %v109, 127
    %v120 = vpop.permute.xlu0 %119
    %121 = vrot.lane.b32.xlu0 %v110, 127
    %v122 = vpop.permute.xlu0 %121
    %v127 = vadd.f32 %v101, %v116
    %v128 = vadd.f32 %v102, %v118
    %v129 = vadd.f32 %v103, %v120
    %v130 = vadd.f32 %v104, %v122
    %s131 = sld [smem:[#allocation6 + $0x100]]
    %v132 = vstv %s131
    %v133 = vmul.f32 %v95, %v132
    %v134 = vmul.f32 %v96, %v132
    %v135 = vmul.f32 %v97, %v132
    %v136 = vmul.f32 %v98, %v132
    %141 = vrot.lane.b32.xlu0 %v133, 126
    %v142 = vpop.permute.xlu0 %141
    %143 = vrot.lane.b32.xlu0 %v134, 126
    %v144 = vpop.permute.xlu0 %143
    %145 = vrot.lane.b32.xlu0 %v135, 126
    %v146 = vpop.permute.xlu0 %145
    %147 = vrot.lane.b32.xlu0 %v136, 126
    %v148 = vpop.permute.xlu0 %147
    %v153 = vadd.f32 %v127, %v142
    %v154 = vadd.f32 %v128, %v144
    %v155 = vadd.f32 %v129, %v146
    %v156 = vadd.f32 %v130, %v148
    %s157 = sld [smem:[#allocation6 + $0x180]]
    %v158 = vstv %s157
    %v159 = vmul.f32 %v95, %v158
    %v160 = vmul.f32 %v96, %v158
    %v161 = vmul.f32 %v97, %v158
    %v162 = vmul.f32 %v98, %v158
    %vm167 = vcmask 1046528
    %v168 = vrot.slane %v159, 1
    %v169 = vrot.slane %v160, 1
    %v170 = vsel %vm167, %v168, %v169
    %v171 = vrot.slane %v161, 1
    %v172 = vrot.slane %v162, 1
    %v173 = vsel %vm167, %v171, %v172
    %v178 = vadd.f32 %v153, %v170
    %v179 = vadd.f32 %v154, %v169
    %v180 = vadd.f32 %v155, %v173
    %v181 = vadd.f32 %v156, %v172
    %s182 = sld [smem:[#allocation6 + $0x200]]
    %v183 = vstv %s182
    %v184 = vmul.f32 %v95, %v183
    %v185 = vmul.f32 %v96, %v183
    %v186 = vmul.f32 %v97, %v183
    %v187 = vmul.f32 %v98, %v183
    %v192 = vrot.slane %v184, 1
    %v193 = vrot.slane %v185, 1
    %v194 = vsel %vm167, %v192, %v193
    %v195 = vrot.slane %v186, 1
    %v196 = vrot.slane %v187, 1
    %v197 = vsel %vm167, %v195, %v196
    %198 = vrot.lane.b32.xlu0 %v194, 127
    %v199 = vpop.permute.xlu0 %198
    %200 = vrot.lane.b32.xlu0 %v193, 127
    %v201 = vpop.permute.xlu0 %200
    %202 = vrot.lane.b32.xlu0 %v197, 127
    %v203 = vpop.permute.xlu0 %202
    %204 = vrot.lane.b32.xlu0 %v196, 127
    %v205 = vpop.permute.xlu0 %204
    %v210 = vadd.f32 %v178, %v199
    %v211 = vadd.f32 %v179, %v201
    %v212 = vadd.f32 %v180, %v203
    %v213 = vadd.f32 %v181, %v205
    %s214 = sld [smem:[#allocation6 + $0x280]]
    %v215 = vstv %s214
    %v216 = vmul.f32 %v95, %v215
    %v217 = vmul.f32 %v96, %v215
    %v218 = vmul.f32 %v97, %v215
    %v219 = vmul.f32 %v98, %v215
    %v224 = vrot.slane %v216, 1
    %v225 = vrot.slane %v217, 1
    %v226 = vsel %vm167, %v224, %v225
    %v227 = vrot.slane %v218, 1
    %v228 = vrot.slane %v219, 1
    %v229 = vsel %vm167, %v227, %v228
    %230 = vrot.lane.b32.xlu0 %v226, 126
    %v231 = vpop.permute.xlu0 %230
    %232 = vrot.lane.b32.xlu0 %v225, 126
    %v233 = vpop.permute.xlu0 %232
    %234 = vrot.lane.b32.xlu0 %v229, 126
    %v235 = vpop.permute.xlu0 %234
    %236 = vrot.lane.b32.xlu0 %v228, 126
    %v237 = vpop.permute.xlu0 %236
    %v242 = vadd.f32 %v210, %v231
    %v243 = vadd.f32 %v211, %v233
    %v244 = vadd.f32 %v212, %v235
    %v245 = vadd.f32 %v213, %v237
    %s246 = sld [smem:[#allocation6 + $0x300]]
    %v247 = vstv %s246
    %v248 = vmul.f32 %v95, %v247
    %v249 = vmul.f32 %v96, %v247
    %v250 = vmul.f32 %v97, %v247
    %v251 = vmul.f32 %v98, %v247
    %vm256 = vcmask 1045504
    %v257 = vrot.slane %v248, 2
    %v258 = vrot.slane %v249, 2
    %v259 = vsel %vm256, %v257, %v258
    %v260 = vrot.slane %v250, 2
    %v261 = vrot.slane %v251, 2
    %v262 = vsel %vm256, %v260, %v261
    %v267 = vadd.f32 %v242, %v259
    %v268 = vadd.f32 %v243, %v258
    %v269 = vadd.f32 %v244, %v262
    %v270 = vadd.f32 %v245, %v261
    %s271 = sld [smem:[#allocation6 + $0x380]]
    %v272 = vstv %s271
    %v273 = vmul.f32 %v95, %v272
    %v274 = vmul.f32 %v96, %v272
    %v275 = vmul.f32 %v97, %v272
    %v276 = vmul.f32 %v98, %v272
    %v281 = vrot.slane %v273, 2
    %v282 = vrot.slane %v274, 2
    %v283 = vsel %vm256, %v281, %v282
    %v284 = vrot.slane %v275, 2
    %v285 = vrot.slane %v276, 2
    %v286 = vsel %vm256, %v284, %v285
    %287 = vrot.lane.b32.xlu0 %v283, 127
    %v288 = vpop.permute.xlu0 %287
    %289 = vrot.lane.b32.xlu0 %v282, 127
    %v290 = vpop.permute.xlu0 %289
    %291 = vrot.lane.b32.xlu0 %v286, 127
    %v292 = vpop.permute.xlu0 %291
    %293 = vrot.lane.b32.xlu0 %v285, 127
    %v294 = vpop.permute.xlu0 %293
    %v299 = vadd.f32 %v267, %v288
    %v300 = vadd.f32 %v268, %v290
    %v301 = vadd.f32 %v269, %v292
    %v302 = vadd.f32 %v270, %v294
    %s303 = sld [smem:[#allocation6 + $0x400]]
    %v304 = vstv %s303
    %v305 = vmul.f32 %v95, %v304
    %v306 = vmul.f32 %v96, %v304
    %v307 = vmul.f32 %v97, %v304
    %v308 = vmul.f32 %v98, %v304
    %v313 = vrot.slane %v305, 2
    %v314 = vrot.slane %v306, 2
    %v315 = vsel %vm256, %v313, %v314
    %v316 = vrot.slane %v307, 2
    %v317 = vrot.slane %v308, 2
    %v318 = vsel %vm256, %v316, %v317
    %319 = vrot.lane.b32.xlu0 %v315, 126
    %v320 = vpop.permute.xlu0 %319
    %321 = vrot.lane.b32.xlu0 %v314, 126
    %v322 = vpop.permute.xlu0 %321
    %323 = vrot.lane.b32.xlu0 %v318, 126
    %v324 = vpop.permute.xlu0 %323
    %325 = vrot.lane.b32.xlu0 %v317, 126
    %v326 = vpop.permute.xlu0 %325
    %v331 = vadd.f32 %v299, %v320
    %v332 = vadd.f32 %v300, %v322
    %v333 = vadd.f32 %v301, %v324
    %v334 = vadd.f32 %v302, %v326
    %s335 = sld [smem:[#allocation7]]
    %v336 = vstv %s335
    %v337 = vadd.f32 %v331, %v336
    %v338 = vadd.f32 %v332, %v336
    %v339 = vadd.f32 %v333, %v336
    %v340 = vadd.f32 %v334, %v336
    %s341 = sld [smem:[#allocation6 + $0x1]]
    %v342 = vstv %s341
    %v343 = vmul.f32 %v95, %v342
    %v344 = vmul.f32 %v96, %v342
    %v345 = vmul.f32 %v97, %v342
    %v346 = vmul.f32 %v98, %v342
    %s347 = sld [smem:[#allocation6 + $0x81]]
    %v348 = vstv %s347
    %v349 = vmul.f32 %v95, %v348
    %v350 = vmul.f32 %v96, %v348
    %v351 = vmul.f32 %v97, %v348
    %v352 = vmul.f32 %v98, %v348
    %357 = vrot.lane.b32.xlu0 %v349, 127
    %v358 = vpop.permute.xlu0 %357
    %359 = vrot.lane.b32.xlu0 %v350, 127
    %v360 = vpop.permute.xlu0 %359
    %361 = vrot.lane.b32.xlu0 %v351, 127
    %v362 = vpop.permute.xlu0 %361
    %363 = vrot.lane.b32.xlu0 %v352, 127
    %v364 = vpop.permute.xlu0 %363
    %v369 = vadd.f32 %v343, %v358
    %v370 = vadd.f32 %v344, %v360
    %v371 = vadd.f32 %v345, %v362
    %v372 = vadd.f32 %v346, %v364
    %s373 = sld [smem:[#allocation6 + $0x101]]
    %v374 = vstv %s373
    %v375 = vmul.f32 %v95, %v374
    %v376 = vmul.f32 %v96, %v374
    %v377 = vmul.f32 %v97, %v374
    %v378 = vmul.f32 %v98, %v374
    %383 = vrot.lane.b32.xlu0 %v375, 126
    %v384 = vpop.permute.xlu0 %383
    %385 = vrot.lane.b32.xlu0 %v376, 126
    %v386 = vpop.permute.xlu0 %385
    %387 = vrot.lane.b32.xlu0 %v377, 126
    %v388 = vpop.permute.xlu0 %387
    %389 = vrot.lane.b32.xlu0 %v378, 126
    %v390 = vpop.permute.xlu0 %389
    %v395 = vadd.f32 %v369, %v384
    %v396 = vadd.f32 %v370, %v386
    %v397 = vadd.f32 %v371, %v388
    %v398 = vadd.f32 %v372, %v390
    %s399 = sld [smem:[#allocation6 + $0x181]]
    %v400 = vstv %s399
    %v401 = vmul.f32 %v95, %v400
    %v402 = vmul.f32 %v96, %v400
    %v403 = vmul.f32 %v97, %v400
    %v404 = vmul.f32 %v98, %v400
    %v409 = vrot.slane %v401, 1
    %v410 = vrot.slane %v402, 1
    %v411 = vsel %vm167, %v409, %v410
    %v412 = vrot.slane %v403, 1
    %v413 = vrot.slane %v404, 1
    %v414 = vsel %vm167, %v412, %v413
    %v419 = vadd.f32 %v395, %v411
    %v420 = vadd.f32 %v396, %v410
    %v421 = vadd.f32 %v397, %v414
    %v422 = vadd.f32 %v398, %v413
    %s423 = sld [smem:[#allocation6 + $0x201]]
    %v424 = vstv %s423
    %v425 = vmul.f32 %v95, %v424
    %v426 = vmul.f32 %v96, %v424
    %v427 = vmul.f32 %v97, %v424
    %v428 = vmul.f32 %v98, %v424
    %v433 = vrot.slane %v425, 1
    %v434 = vrot.slane %v426, 1
    %v435 = vsel %vm167, %v433, %v434
    %v436 = vrot.slane %v427, 1
    %v437 = vrot.slane %v428, 1
    %v438 = vsel %vm167, %v436, %v437
    %439 = vrot.lane.b32.xlu0 %v435, 127
    %v440 = vpop.permute.xlu0 %439
    %441 = vrot.lane.b32.xlu0 %v434, 127
    %v442 = vpop.permute.xlu0 %441
    %443 = vrot.lane.b32.xlu0 %v438, 127
    %v444 = vpop.permute.xlu0 %443
    %445 = vrot.lane.b32.xlu0 %v437, 127
    %v446 = vpop.permute.xlu0 %445
    %v451 = vadd.f32 %v419, %v440
    %v452 = vadd.f32 %v420, %v442
    %v453 = vadd.f32 %v421, %v444
    %v454 = vadd.f32 %v422, %v446
    %s455 = sld [smem:[#allocation6 + $0x281]]
    %v456 = vstv %s455
    %v457 = vmul.f32 %v95, %v456
    %v458 = vmul.f32 %v96, %v456
    %v459 = vmul.f32 %v97, %v456
    %v460 = vmul.f32 %v98, %v456
    %v465 = vrot.slane %v457, 1
    %v466 = vrot.slane %v458, 1
    %v467 = vsel %vm167, %v465, %v466
    %v468 = vrot.slane %v459, 1
    %v469 = vrot.slane %v460, 1
    %v470 = vsel %vm167, %v468, %v469
    %471 = vrot.lane.b32.xlu0 %v467, 126
    %v472 = vpop.permute.xlu0 %471
    %473 = vrot.lane.b32.xlu0 %v466, 126
    %v474 = vpop.permute.xlu0 %473
    %475 = vrot.lane.b32.xlu0 %v470, 126
    %v476 = vpop.permute.xlu0 %475
    %477 = vrot.lane.b32.xlu0 %v469, 126
    %v478 = vpop.permute.xlu0 %477
    %v483 = vadd.f32 %v451, %v472
    %v484 = vadd.f32 %v452, %v474
    %v485 = vadd.f32 %v453, %v476
    %v486 = vadd.f32 %v454, %v478
    %s487 = sld [smem:[#allocation6 + $0x301]]
    %v488 = vstv %s487
    %v489 = vmul.f32 %v95, %v488
    %v490 = vmul.f32 %v96, %v488
    %v491 = vmul.f32 %v97, %v488
    %v492 = vmul.f32 %v98, %v488
    %v497 = vrot.slane %v489, 2
    %v498 = vrot.slane %v490, 2
    %v499 = vsel %vm256, %v497, %v498
    %v500 = vrot.slane %v491, 2
    %v501 = vrot.slane %v492, 2
    %v502 = vsel %vm256, %v500, %v501
    %v507 = vadd.f32 %v483, %v499
    %v508 = vadd.f32 %v484, %v498
    %v509 = vadd.f32 %v485, %v502
    %v510 = vadd.f32 %v486, %v501
    %s511 = sld [smem:[#allocation6 + $0x381]]
    %v512 = vstv %s511
    %v513 = vmul.f32 %v95, %v512
    %v514 = vmul.f32 %v96, %v512
    %v515 = vmul.f32 %v97, %v512
    %v516 = vmul.f32 %v98, %v512
    %v521 = vrot.slane %v513, 2
    %v522 = vrot.slane %v514, 2
    %v523 = vsel %vm256, %v521, %v522
    %v524 = vrot.slane %v515, 2
    %v525 = vrot.slane %v516, 2
    %v526 = vsel %vm256, %v524, %v525
    %527 = vrot.lane.b32.xlu0 %v523, 127
    %v528 = vpop.permute.xlu0 %527
    %529 = vrot.lane.b32.xlu0 %v522, 127
    %v530 = vpop.permute.xlu0 %529
    %531 = vrot.lane.b32.xlu0 %v526, 127
    %v532 = vpop.permute.xlu0 %531
    %533 = vrot.lane.b32.xlu0 %v525, 127
    %v534 = vpop.permute.xlu0 %533
    %v539 = vadd.f32 %v507, %v528
    %v540 = vadd.f32 %v508, %v530
    %v541 = vadd.f32 %v509, %v532
    %v542 = vadd.f32 %v510, %v534
    %s543 = sld [smem:[#allocation6 + $0x401]]
    %v544 = vstv %s543
    %v545 = vmul.f32 %v95, %v544
    %v546 = vmul.f32 %v96, %v544
    %v547 = vmul.f32 %v97, %v544
    %v548 = vmul.f32 %v98, %v544
    %v553 = vrot.slane %v545, 2
    %v554 = vrot.slane %v546, 2
    %v555 = vsel %vm256, %v553, %v554
    %v556 = vrot.slane %v547, 2
    %v557 = vrot.slane %v548, 2
    %v558 = vsel %vm256, %v556, %v557
    %559 = vrot.lane.b32.xlu0 %v555, 126
    %v560 = vpop.permute.xlu0 %559
    %561 = vrot.lane.b32.xlu0 %v554, 126
    %v562 = vpop.permute.xlu0 %561
    %563 = vrot.lane.b32.xlu0 %v558, 126
    %v564 = vpop.permute.xlu0 %563
    %565 = vrot.lane.b32.xlu0 %v557, 126
    %v566 = vpop.permute.xlu0 %565
    %v571 = vadd.f32 %v539, %v560
    %v572 = vadd.f32 %v540, %v562
    %v573 = vadd.f32 %v541, %v564
    %v574 = vadd.f32 %v542, %v566
    %s575 = sld [smem:[#allocation7 + $0x1]]
    %v576 = vstv %s575
    %v577 = vadd.f32 %v571, %v576
    %v578 = vadd.f32 %v572, %v576
    %v579 = vadd.f32 %v573, %v576
    %v580 = vadd.f32 %v574, %v576
    %s581 = sld [smem:[#allocation6 + $0x2]]
    %v582 = vstv %s581
    %v583 = vmul.f32 %v95, %v582
    %v584 = vmul.f32 %v96, %v582
    %v585 = vmul.f32 %v97, %v582
    %v586 = vmul.f32 %v98, %v582
    %s587 = sld [smem:[#allocation6 + $0x82]]
    %v588 = vstv %s587
    %v589 = vmul.f32 %v95, %v588
    %v590 = vmul.f32 %v96, %v588
    %v591 = vmul.f32 %v97, %v588
    %v592 = vmul.f32 %v98, %v588
    %597 = vrot.lane.b32.xlu0 %v589, 127
    %v598 = vpop.permute.xlu0 %597
    %599 = vrot.lane.b32.xlu0 %v590, 127
    %v600 = vpop.permute.xlu0 %599
    %601 = vrot.lane.b32.xlu0 %v591, 127
    %v602 = vpop.permute.xlu0 %601
    %603 = vrot.lane.b32.xlu0 %v592, 127
    %v604 = vpop.permute.xlu0 %603
    %v609 = vadd.f32 %v583, %v598
    %v610 = vadd.f32 %v584, %v600
    %v611 = vadd.f32 %v585, %v602
    %v612 = vadd.f32 %v586, %v604
    %s613 = sld [smem:[#allocation6 + $0x102]]
    %v614 = vstv %s613
    %v615 = vmul.f32 %v95, %v614
    %v616 = vmul.f32 %v96, %v614
    %v617 = vmul.f32 %v97, %v614
    %v618 = vmul.f32 %v98, %v614
    %623 = vrot.lane.b32.xlu0 %v615, 126
    %v624 = vpop.permute.xlu0 %623
    %625 = vrot.lane.b32.xlu0 %v616, 126
    %v626 = vpop.permute.xlu0 %625
    %627 = vrot.lane.b32.xlu0 %v617, 126
    %v628 = vpop.permute.xlu0 %627
    %629 = vrot.lane.b32.xlu0 %v618, 126
    %v630 = vpop.permute.xlu0 %629
    %v635 = vadd.f32 %v609, %v624
    %v636 = vadd.f32 %v610, %v626
    %v637 = vadd.f32 %v611, %v628
    %v638 = vadd.f32 %v612, %v630
    %s639 = sld [smem:[#allocation6 + $0x182]]
    %v640 = vstv %s639
    %v641 = vmul.f32 %v95, %v640
    %v642 = vmul.f32 %v96, %v640
    %v643 = vmul.f32 %v97, %v640
    %v644 = vmul.f32 %v98, %v640
    %v649 = vrot.slane %v641, 1
    %v650 = vrot.slane %v642, 1
    %v651 = vsel %vm167, %v649, %v650
    %v652 = vrot.slane %v643, 1
    %v653 = vrot.slane %v644, 1
    %v654 = vsel %vm167, %v652, %v653
    %v659 = vadd.f32 %v635, %v651
    %v660 = vadd.f32 %v636, %v650
    %v661 = vadd.f32 %v637, %v654
    %v662 = vadd.f32 %v638, %v653
    %s663 = sld [smem:[#allocation6 + $0x202]]
    %v664 = vstv %s663
    %v665 = vmul.f32 %v95, %v664
    %v666 = vmul.f32 %v96, %v664
    %v667 = vmul.f32 %v97, %v664
    %v668 = vmul.f32 %v98, %v664
    %v673 = vrot.slane %v665, 1
    %v674 = vrot.slane %v666, 1
    %v675 = vsel %vm167, %v673, %v674
    %v676 = vrot.slane %v667, 1
    %v677 = vrot.slane %v668, 1
    %v678 = vsel %vm167, %v676, %v677
    %679 = vrot.lane.b32.xlu0 %v675, 127
    %v680 = vpop.permute.xlu0 %679
    %681 = vrot.lane.b32.xlu0 %v674, 127
    %v682 = vpop.permute.xlu0 %681
    %683 = vrot.lane.b32.xlu0 %v678, 127
    %v684 = vpop.permute.xlu0 %683
    %685 = vrot.lane.b32.xlu0 %v677, 127
    %v686 = vpop.permute.xlu0 %685
    %v691 = vadd.f32 %v659, %v680
    %v692 = vadd.f32 %v660, %v682
    %v693 = vadd.f32 %v661, %v684
    %v694 = vadd.f32 %v662, %v686
    %s695 = sld [smem:[#allocation6 + $0x282]]
    %v696 = vstv %s695
    %v697 = vmul.f32 %v95, %v696
    %v698 = vmul.f32 %v96, %v696
    %v699 = vmul.f32 %v97, %v696
    %v700 = vmul.f32 %v98, %v696
    %v705 = vrot.slane %v697, 1
    %v706 = vrot.slane %v698, 1
    %v707 = vsel %vm167, %v705, %v706
    %v708 = vrot.slane %v699, 1
    %v709 = vrot.slane %v700, 1
    %v710 = vsel %vm167, %v708, %v709
    %711 = vrot.lane.b32.xlu0 %v707, 126
    %v712 = vpop.permute.xlu0 %711
    %713 = vrot.lane.b32.xlu0 %v706, 126
    %v714 = vpop.permute.xlu0 %713
    %715 = vrot.lane.b32.xlu0 %v710, 126
    %v716 = vpop.permute.xlu0 %715
    %717 = vrot.lane.b32.xlu0 %v709, 126
    %v718 = vpop.permute.xlu0 %717
    %v723 = vadd.f32 %v691, %v712
    %v724 = vadd.f32 %v692, %v714
    %v725 = vadd.f32 %v693, %v716
    %v726 = vadd.f32 %v694, %v718
    %s727 = sld [smem:[#allocation6 + $0x302]]
    %v728 = vstv %s727
    %v729 = vmul.f32 %v95, %v728
    %v730 = vmul.f32 %v96, %v728
    %v731 = vmul.f32 %v97, %v728
    %v732 = vmul.f32 %v98, %v728
    %v737 = vrot.slane %v729, 2
    %v738 = vrot.slane %v730, 2
    %v739 = vsel %vm256, %v737, %v738
    %v740 = vrot.slane %v731, 2
    %v741 = vrot.slane %v732, 2
    %v742 = vsel %vm256, %v740, %v741
    %v747 = vadd.f32 %v723, %v739
    %v748 = vadd.f32 %v724, %v738
    %v749 = vadd.f32 %v725, %v742
    %v750 = vadd.f32 %v726, %v741
    %s751 = sld [smem:[#allocation6 + $0x382]]
    %v752 = vstv %s751
    %v753 = vmul.f32 %v95, %v752
    %v754 = vmul.f32 %v96, %v752
    %v755 = vmul.f32 %v97, %v752
    %v756 = vmul.f32 %v98, %v752
    %v761 = vrot.slane %v753, 2
    %v762 = vrot.slane %v754, 2
    %v763 = vsel %vm256, %v761, %v762
    %v764 = vrot.slane %v755, 2
    %v765 = vrot.slane %v756, 2
    %v766 = vsel %vm256, %v764, %v765
    %767 = vrot.lane.b32.xlu0 %v763, 127
    %v768 = vpop.permute.xlu0 %767
    %769 = vrot.lane.b32.xlu0 %v762, 127
    %v770 = vpop.permute.xlu0 %769
    %771 = vrot.lane.b32.xlu0 %v766, 127
    %v772 = vpop.permute.xlu0 %771
    %773 = vrot.lane.b32.xlu0 %v765, 127
    %v774 = vpop.permute.xlu0 %773
    %v779 = vadd.f32 %v747, %v768
    %v780 = vadd.f32 %v748, %v770
    %v781 = vadd.f32 %v749, %v772
    %v782 = vadd.f32 %v750, %v774
    %s783 = sld [smem:[#allocation6 + $0x402]]
    %v784 = vstv %s783
    %v785 = vmul.f32 %v95, %v784
    %v786 = vmul.f32 %v96, %v784
    %v787 = vmul.f32 %v97, %v784
    %v788 = vmul.f32 %v98, %v784
    %v793 = vrot.slane %v785, 2
    %v794 = vrot.slane %v786, 2
    %v795 = vsel %vm256, %v793, %v794
    %v796 = vrot.slane %v787, 2
    %v797 = vrot.slane %v788, 2
    %v798 = vsel %vm256, %v796, %v797
    %799 = vrot.lane.b32.xlu0 %v795, 126
    %v800 = vpop.permute.xlu0 %799
    %801 = vrot.lane.b32.xlu0 %v794, 126
    %v802 = vpop.permute.xlu0 %801
    %803 = vrot.lane.b32.xlu0 %v798, 126
    %v804 = vpop.permute.xlu0 %803
    %805 = vrot.lane.b32.xlu0 %v797, 126
    %v806 = vpop.permute.xlu0 %805
    %v811 = vadd.f32 %v779, %v800
    %v812 = vadd.f32 %v780, %v802
    %v813 = vadd.f32 %v781, %v804
    %v814 = vadd.f32 %v782, %v806
    %s815 = sld [smem:[#allocation7 + $0x2]]
    %v816 = vstv %s815
    %v817 = vadd.f32 %v811, %v816
    %v818 = vadd.f32 %v812, %v816
    %v819 = vadd.f32 %v813, %v816
    %v820 = vadd.f32 %v814, %v816
    %v821 = vlaneseq
    %v822 = vshrl.u32 %v821, 7
    %v823 = vsub.s32 0, %v822
    %v824 = vrot.slane %v337, %v823
    %826 = vbcast.lane.b32.xlu0 %v824, 256
    %v827 = vpop.permute.xlu0 %826
    %s829 = sor.u32 256, 8
    %830 = vbcast.lane.b32.xlu0 %v824, %s829
    %v831 = vpop.permute.xlu0 %830
    %v832 = vlaneseq
    %v833 = vshrl.u32 %v832, 7
    %v834 = vsub.s32 1, %v833
    %v835 = vrot.slane %v337, %v834
    %837 = vbcast.lane.b32.xlu0 %v835, 256
    %v838 = vpop.permute.xlu0 %837
    %s840 = sor.u32 256, 8
    %841 = vbcast.lane.b32.xlu0 %v835, %s840
    %v842 = vpop.permute.xlu0 %841
    %v843 = vlaneseq
    %v844 = vshrl.u32 %v843, 7
    %v845 = vsub.s32 2, %v844
    %v846 = vrot.slane %v337, %v845
    %848 = vbcast.lane.b32.xlu0 %v846, 256
    %v849 = vpop.permute.xlu0 %848
    %s851 = sor.u32 256, 8
    %852 = vbcast.lane.b32.xlu0 %v846, %s851
    %v853 = vpop.permute.xlu0 %852
    %v854 = vlaneseq
    %v855 = vshrl.u32 %v854, 7
    %v856 = vsub.s32 3, %v855
    %v857 = vrot.slane %v337, %v856
    %859 = vbcast.lane.b32.xlu0 %v857, 256
    %v860 = vpop.permute.xlu0 %859
    %s862 = sor.u32 256, 8
    %863 = vbcast.lane.b32.xlu0 %v857, %s862
    %v864 = vpop.permute.xlu0 %863
    %v865 = vlaneseq
    %v866 = vshrl.u32 %v865, 7
    %v867 = vsub.s32 4, %v866
    %v868 = vrot.slane %v337, %v867
    %870 = vbcast.lane.b32.xlu0 %v868, 256
    %v871 = vpop.permute.xlu0 %870
    %s873 = sor.u32 256, 8
    %874 = vbcast.lane.b32.xlu0 %v868, %s873
    %v875 = vpop.permute.xlu0 %874
    %v876 = vlaneseq
    %v877 = vshrl.u32 %v876, 7
    %v878 = vsub.s32 5, %v877
    %v879 = vrot.slane %v337, %v878
    %881 = vbcast.lane.b32.xlu0 %v879, 256
    %v882 = vpop.permute.xlu0 %881
    %s884 = sor.u32 256, 8
    %885 = vbcast.lane.b32.xlu0 %v879, %s884
    %v886 = vpop.permute.xlu0 %885
    %v887 = vlaneseq
    %v888 = vshrl.u32 %v887, 7
    %v889 = vsub.s32 6, %v888
    %v890 = vrot.slane %v337, %v889
    %892 = vbcast.lane.b32.xlu0 %v890, 256
    %v893 = vpop.permute.xlu0 %892
    %s895 = sor.u32 256, 8
    %896 = vbcast.lane.b32.xlu0 %v890, %s895
    %v897 = vpop.permute.xlu0 %896
    %v898 = vlaneseq
    %v899 = vshrl.u32 %v898, 7
    %v900 = vsub.s32 7, %v899
    %v901 = vrot.slane %v337, %v900
    %903 = vbcast.lane.b32.xlu0 %v901, 256
    %v904 = vpop.permute.xlu0 %903
    %s906 = sor.u32 256, 8
    %907 = vbcast.lane.b32.xlu0 %v901, %s906
    %v908 = vpop.permute.xlu0 %907
    %v909 = vlaneseq
    %v910 = vshrl.u32 %v909, 7
    %v911 = vsub.s32 0, %v910
    %v912 = vrot.slane %v338, %v911
    %914 = vbcast.lane.b32.xlu0 %v912, 256
    %v915 = vpop.permute.xlu0 %914
    %s917 = sor.u32 256, 8
    %918 = vbcast.lane.b32.xlu0 %v912, %s917
    %v919 = vpop.permute.xlu0 %918
    %v920 = vlaneseq
    %v921 = vshrl.u32 %v920, 7
    %v922 = vsub.s32 1, %v921
    %v923 = vrot.slane %v338, %v922
    %925 = vbcast.lane.b32.xlu0 %v923, 256
    %v926 = vpop.permute.xlu0 %925
    %s928 = sor.u32 256, 8
    %929 = vbcast.lane.b32.xlu0 %v923, %s928
    %v930 = vpop.permute.xlu0 %929
    %v931 = vlaneseq
    %v932 = vshrl.u32 %v931, 7
    %v933 = vsub.s32 2, %v932
    %v934 = vrot.slane %v338, %v933
    %936 = vbcast.lane.b32.xlu0 %v934, 256
    %v937 = vpop.permute.xlu0 %936
    %s939 = sor.u32 256, 8
    %940 = vbcast.lane.b32.xlu0 %v934, %s939
    %v941 = vpop.permute.xlu0 %940
    %v942 = vlaneseq
    %v943 = vshrl.u32 %v942, 7
    %v944 = vsub.s32 3, %v943
    %v945 = vrot.slane %v338, %v944
    %947 = vbcast.lane.b32.xlu0 %v945, 256
    %v948 = vpop.permute.xlu0 %947
    %s950 = sor.u32 256, 8
    %951 = vbcast.lane.b32.xlu0 %v945, %s950
    %v952 = vpop.permute.xlu0 %951
    %v953 = vlaneseq
    %v954 = vshrl.u32 %v953, 7
    %v955 = vsub.s32 0, %v954
    %v956 = vrot.slane %v339, %v955
    %958 = vbcast.lane.b32.xlu0 %v956, 256
    %v959 = vpop.permute.xlu0 %958
    %s961 = sor.u32 256, 8
    %962 = vbcast.lane.b32.xlu0 %v956, %s961
    %v963 = vpop.permute.xlu0 %962
    %v964 = vlaneseq
    %v965 = vshrl.u32 %v964, 7
    %v966 = vsub.s32 1, %v965
    %v967 = vrot.slane %v339, %v966
    %969 = vbcast.lane.b32.xlu0 %v967, 256
    %v970 = vpop.permute.xlu0 %969
    %s972 = sor.u32 256, 8
    %973 = vbcast.lane.b32.xlu0 %v967, %s972
    %v974 = vpop.permute.xlu0 %973
    %v975 = vlaneseq
    %v976 = vshrl.u32 %v975, 7
    %v977 = vsub.s32 2, %v976
    %v978 = vrot.slane %v339, %v977
    %980 = vbcast.lane.b32.xlu0 %v978, 256
    %v981 = vpop.permute.xlu0 %980
    %s983 = sor.u32 256, 8
    %984 = vbcast.lane.b32.xlu0 %v978, %s983
    %v985 = vpop.permute.xlu0 %984
    %v986 = vlaneseq
    %v987 = vshrl.u32 %v986, 7
    %v988 = vsub.s32 3, %v987
    %v989 = vrot.slane %v339, %v988
    %991 = vbcast.lane.b32.xlu0 %v989, 256
    %v992 = vpop.permute.xlu0 %991
    %s994 = sor.u32 256, 8
    %995 = vbcast.lane.b32.xlu0 %v989, %s994
    %v996 = vpop.permute.xlu0 %995
    %v997 = vlaneseq
    %v998 = vshrl.u32 %v997, 7
    %v999 = vsub.s32 4, %v998
    %v1000 = vrot.slane %v339, %v999
    %1002 = vbcast.lane.b32.xlu0 %v1000, 256
    %v1003 = vpop.permute.xlu0 %1002
    %s1005 = sor.u32 256, 8
    %1006 = vbcast.lane.b32.xlu0 %v1000, %s1005
    %v1007 = vpop.permute.xlu0 %1006
    %v1008 = vlaneseq
    %v1009 = vshrl.u32 %v1008, 7
    %v1010 = vsub.s32 5, %v1009
    %v1011 = vrot.slane %v339, %v1010
    %1013 = vbcast.lane.b32.xlu0 %v1011, 256
    %v1014 = vpop.permute.xlu0 %1013
    %s1016 = sor.u32 256, 8
    %1017 = vbcast.lane.b32.xlu0 %v1011, %s1016
    %v1018 = vpop.permute.xlu0 %1017
    %v1019 = vlaneseq
    %v1020 = vshrl.u32 %v1019, 7
    %v1021 = vsub.s32 6, %v1020
    %v1022 = vrot.slane %v339, %v1021
    %1024 = vbcast.lane.b32.xlu0 %v1022, 256
    %v1025 = vpop.permute.xlu0 %1024
    %s1027 = sor.u32 256, 8
    %1028 = vbcast.lane.b32.xlu0 %v1022, %s1027
    %v1029 = vpop.permute.xlu0 %1028
    %v1030 = vlaneseq
    %v1031 = vshrl.u32 %v1030, 7
    %v1032 = vsub.s32 7, %v1031
    %v1033 = vrot.slane %v339, %v1032
    %1035 = vbcast.lane.b32.xlu0 %v1033, 256
    %v1036 = vpop.permute.xlu0 %1035
    %s1038 = sor.u32 256, 8
    %1039 = vbcast.lane.b32.xlu0 %v1033, %s1038
    %v1040 = vpop.permute.xlu0 %1039
    %v1041 = vlaneseq
    %v1042 = vshrl.u32 %v1041, 7
    %v1043 = vsub.s32 0, %v1042
    %v1044 = vrot.slane %v340, %v1043
    %1046 = vbcast.lane.b32.xlu0 %v1044, 256
    %v1047 = vpop.permute.xlu0 %1046
    %s1049 = sor.u32 256, 8
    %1050 = vbcast.lane.b32.xlu0 %v1044, %s1049
    %v1051 = vpop.permute.xlu0 %1050
    %v1052 = vlaneseq
    %v1053 = vshrl.u32 %v1052, 7
    %v1054 = vsub.s32 1, %v1053
    %v1055 = vrot.slane %v340, %v1054
    %1057 = vbcast.lane.b32.xlu0 %v1055, 256
    %v1058 = vpop.permute.xlu0 %1057
    %s1060 = sor.u32 256, 8
    %1061 = vbcast.lane.b32.xlu0 %v1055, %s1060
    %v1062 = vpop.permute.xlu0 %1061
    %v1063 = vlaneseq
    %v1064 = vshrl.u32 %v1063, 7
    %v1065 = vsub.s32 2, %v1064
    %v1066 = vrot.slane %v340, %v1065
    %1068 = vbcast.lane.b32.xlu0 %v1066, 256
    %v1069 = vpop.permute.xlu0 %1068
    %s1071 = sor.u32 256, 8
    %1072 = vbcast.lane.b32.xlu0 %v1066, %s1071
    %v1073 = vpop.permute.xlu0 %1072
    %v1074 = vlaneseq
    %v1075 = vshrl.u32 %v1074, 7
    %v1076 = vsub.s32 3, %v1075
    %v1077 = vrot.slane %v340, %v1076
    %1079 = vbcast.lane.b32.xlu0 %v1077, 256
    %v1080 = vpop.permute.xlu0 %1079
    %s1082 = sor.u32 256, 8
    %1083 = vbcast.lane.b32.xlu0 %v1077, %s1082
    %v1084 = vpop.permute.xlu0 %1083
    %s1086 = sor.u32 256, 1
    %1087 = vbcast.lane.b32.xlu0 %v824, %s1086
    %v1088 = vpop.permute.xlu0 %1087
    %s1090 = sor.u32 256, 9
    %1091 = vbcast.lane.b32.xlu0 %v824, %s1090
    %v1092 = vpop.permute.xlu0 %1091
    %s1094 = sor.u32 256, 1
    %1095 = vbcast.lane.b32.xlu0 %v835, %s1094
    %v1096 = vpop.permute.xlu0 %1095
    %s1098 = sor.u32 256, 9
    %1099 = vbcast.lane.b32.xlu0 %v835, %s1098
    %v1100 = vpop.permute.xlu0 %1099
    %s1102 = sor.u32 256, 1
    %1103 = vbcast.lane.b32.xlu0 %v846, %s1102
    %v1104 = vpop.permute.xlu0 %1103
    %s1106 = sor.u32 256, 9
    %1107 = vbcast.lane.b32.xlu0 %v846, %s1106
    %v1108 = vpop.permute.xlu0 %1107
    %s1110 = sor.u32 256, 1
    %1111 = vbcast.lane.b32.xlu0 %v857, %s1110
    %v1112 = vpop.permute.xlu0 %1111
    %s1114 = sor.u32 256, 9
    %1115 = vbcast.lane.b32.xlu0 %v857, %s1114
    %v1116 = vpop.permute.xlu0 %1115
    %s1118 = sor.u32 256, 1
    %1119 = vbcast.lane.b32.xlu0 %v868, %s1118
    %v1120 = vpop.permute.xlu0 %1119
    %s1122 = sor.u32 256, 9
    %1123 = vbcast.lane.b32.xlu0 %v868, %s1122
    %v1124 = vpop.permute.xlu0 %1123
    %s1126 = sor.u32 256, 1
    %1127 = vbcast.lane.b32.xlu0 %v879, %s1126
    %v1128 = vpop.permute.xlu0 %1127
    %s1130 = sor.u32 256, 9
    %1131 = vbcast.lane.b32.xlu0 %v879, %s1130
    %v1132 = vpop.permute.xlu0 %1131
    %s1134 = sor.u32 256, 1
    %1135 = vbcast.lane.b32.xlu0 %v890, %s1134
    %v1136 = vpop.permute.xlu0 %1135
    %s1138 = sor.u32 256, 9
    %1139 = vbcast.lane.b32.xlu0 %v890, %s1138
    %v1140 = vpop.permute.xlu0 %1139
    %s1142 = sor.u32 256, 1
    %1143 = vbcast.lane.b32.xlu0 %v901, %s1142
    %v1144 = vpop.permute.xlu0 %1143
    %s1146 = sor.u32 256, 9
    %1147 = vbcast.lane.b32.xlu0 %v901, %s1146
    %v1148 = vpop.permute.xlu0 %1147
    %s1150 = sor.u32 256, 1
    %1151 = vbcast.lane.b32.xlu0 %v912, %s1150
    %v1152 = vpop.permute.xlu0 %1151
    %s1154 = sor.u32 256, 9
    %1155 = vbcast.lane.b32.xlu0 %v912, %s1154
    %v1156 = vpop.permute.xlu0 %1155
    %s1158 = sor.u32 256, 1
    %1159 = vbcast.lane.b32.xlu0 %v923, %s1158
    %v1160 = vpop.permute.xlu0 %1159
    %s1162 = sor.u32 256, 9
    %1163 = vbcast.lane.b32.xlu0 %v923, %s1162
    %v1164 = vpop.permute.xlu0 %1163
    %s1166 = sor.u32 256, 1
    %1167 = vbcast.lane.b32.xlu0 %v934, %s1166
    %v1168 = vpop.permute.xlu0 %1167
    %s1170 = sor.u32 256, 9
    %1171 = vbcast.lane.b32.xlu0 %v934, %s1170
    %v1172 = vpop.permute.xlu0 %1171
    %s1174 = sor.u32 256, 1
    %1175 = vbcast.lane.b32.xlu0 %v945, %s1174
    %v1176 = vpop.permute.xlu0 %1175
    %s1178 = sor.u32 256, 9
    %1179 = vbcast.lane.b32.xlu0 %v945, %s1178
    %v1180 = vpop.permute.xlu0 %1179
    %s1182 = sor.u32 256, 1
    %1183 = vbcast.lane.b32.xlu0 %v956, %s1182
    %v1184 = vpop.permute.xlu0 %1183
    %s1186 = sor.u32 256, 9
    %1187 = vbcast.lane.b32.xlu0 %v956, %s1186
    %v1188 = vpop.permute.xlu0 %1187
    %s1190 = sor.u32 256, 1
    %1191 = vbcast.lane.b32.xlu0 %v967, %s1190
    %v1192 = vpop.permute.xlu0 %1191
    %s1194 = sor.u32 256, 9
    %1195 = vbcast.lane.b32.xlu0 %v967, %s1194
    %v1196 = vpop.permute.xlu0 %1195
    %s1198 = sor.u32 256, 1
    %1199 = vbcast.lane.b32.xlu0 %v978, %s1198
    %v1200 = vpop.permute.xlu0 %1199
    %s1202 = sor.u32 256, 9
    %1203 = vbcast.lane.b32.xlu0 %v978, %s1202
    %v1204 = vpop.permute.xlu0 %1203
    %s1206 = sor.u32 256, 1
    %1207 = vbcast.lane.b32.xlu0 %v989, %s1206
    %v1208 = vpop.permute.xlu0 %1207
    %s1210 = sor.u32 256, 9
    %1211 = vbcast.lane.b32.xlu0 %v989, %s1210
    %v1212 = vpop.permute.xlu0 %1211
    %s1214 = sor.u32 256, 1
    %1215 = vbcast.lane.b32.xlu0 %v1000, %s1214
    %v1216 = vpop.permute.xlu0 %1215
    %s1218 = sor.u32 256, 9
    %1219 = vbcast.lane.b32.xlu0 %v1000, %s1218
    %v1220 = vpop.permute.xlu0 %1219
    %s1222 = sor.u32 256, 1
    %1223 = vbcast.lane.b32.xlu0 %v1011, %s1222
    %v1224 = vpop.permute.xlu0 %1223
    %s1226 = sor.u32 256, 9
    %1227 = vbcast.lane.b32.xlu0 %v1011, %s1226
    %v1228 = vpop.permute.xlu0 %1227
    %s1230 = sor.u32 256, 1
    %1231 = vbcast.lane.b32.xlu0 %v1022, %s1230
    %v1232 = vpop.permute.xlu0 %1231
    %s1234 = sor.u32 256, 9
    %1235 = vbcast.lane.b32.xlu0 %v1022, %s1234
    %v1236 = vpop.permute.xlu0 %1235
    %s1238 = sor.u32 256, 1
    %1239 = vbcast.lane.b32.xlu0 %v1033, %s1238
    %v1240 = vpop.permute.xlu0 %1239
    %s1242 = sor.u32 256, 9
    %1243 = vbcast.lane.b32.xlu0 %v1033, %s1242
    %v1244 = vpop.permute.xlu0 %1243
    %s1246 = sor.u32 256, 1
    %1247 = vbcast.lane.b32.xlu0 %v1044, %s1246
    %v1248 = vpop.permute.xlu0 %1247
    %s1250 = sor.u32 256, 9
    %1251 = vbcast.lane.b32.xlu0 %v1044, %s1250
    %v1252 = vpop.permute.xlu0 %1251
    %s1254 = sor.u32 256, 1
    %1255 = vbcast.lane.b32.xlu0 %v1055, %s1254
    %v1256 = vpop.permute.xlu0 %1255
    %s1258 = sor.u32 256, 9
    %1259 = vbcast.lane.b32.xlu0 %v1055, %s1258
    %v1260 = vpop.permute.xlu0 %1259
    %s1262 = sor.u32 256, 1
    %1263 = vbcast.lane.b32.xlu0 %v1066, %s1262
    %v1264 = vpop.permute.xlu0 %1263
    %s1266 = sor.u32 256, 9
    %1267 = vbcast.lane.b32.xlu0 %v1066, %s1266
    %v1268 = vpop.permute.xlu0 %1267
    %s1270 = sor.u32 256, 1
    %1271 = vbcast.lane.b32.xlu0 %v1077, %s1270
    %v1272 = vpop.permute.xlu0 %1271
    %s1274 = sor.u32 256, 9
    %1275 = vbcast.lane.b32.xlu0 %v1077, %s1274
    %v1276 = vpop.permute.xlu0 %1275
    %s1278 = sor.u32 256, 2
    %1279 = vbcast.lane.b32.xlu0 %v824, %s1278
    %v1280 = vpop.permute.xlu0 %1279
    %s1282 = sor.u32 256, 10
    %1283 = vbcast.lane.b32.xlu0 %v824, %s1282
    %v1284 = vpop.permute.xlu0 %1283
    %s1286 = sor.u32 256, 2
    %1287 = vbcast.lane.b32.xlu0 %v835, %s1286
    %v1288 = vpop.permute.xlu0 %1287
    %s1290 = sor.u32 256, 10
    %1291 = vbcast.lane.b32.xlu0 %v835, %s1290
    %v1292 = vpop.permute.xlu0 %1291
    %s1294 = sor.u32 256, 2
    %1295 = vbcast.lane.b32.xlu0 %v846, %s1294
    %v1296 = vpop.permute.xlu0 %1295
    %s1298 = sor.u32 256, 10
    %1299 = vbcast.lane.b32.xlu0 %v846, %s1298
    %v1300 = vpop.permute.xlu0 %1299
    %s1302 = sor.u32 256, 2
    %1303 = vbcast.lane.b32.xlu0 %v857, %s1302
    %v1304 = vpop.permute.xlu0 %1303
    %s1306 = sor.u32 256, 10
    %1307 = vbcast.lane.b32.xlu0 %v857, %s1306
    %v1308 = vpop.permute.xlu0 %1307
    %s1310 = sor.u32 256, 2
    %1311 = vbcast.lane.b32.xlu0 %v868, %s1310
    %v1312 = vpop.permute.xlu0 %1311
    %s1314 = sor.u32 256, 10
    %1315 = vbcast.lane.b32.xlu0 %v868, %s1314
    %v1316 = vpop.permute.xlu0 %1315
    %s1318 = sor.u32 256, 2
    %1319 = vbcast.lane.b32.xlu0 %v879, %s1318
    %v1320 = vpop.permute.xlu0 %1319
    %s1322 = sor.u32 256, 10
    %1323 = vbcast.lane.b32.xlu0 %v879, %s1322
    %v1324 = vpop.permute.xlu0 %1323
    %s1326 = sor.u32 256, 2
    %1327 = vbcast.lane.b32.xlu0 %v890, %s1326
    %v1328 = vpop.permute.xlu0 %1327
    %s1330 = sor.u32 256, 10
    %1331 = vbcast.lane.b32.xlu0 %v890, %s1330
    %v1332 = vpop.permute.xlu0 %1331
    %s1334 = sor.u32 256, 2
    %1335 = vbcast.lane.b32.xlu0 %v901, %s1334
    %v1336 = vpop.permute.xlu0 %1335
    %s1338 = sor.u32 256, 10
    %1339 = vbcast.lane.b32.xlu0 %v901, %s1338
    %v1340 = vpop.permute.xlu0 %1339
    %s1342 = sor.u32 256, 2
    %1343 = vbcast.lane.b32.xlu0 %v912, %s1342
    %v1344 = vpop.permute.xlu0 %1343
    %s1346 = sor.u32 256, 10
    %1347 = vbcast.lane.b32.xlu0 %v912, %s1346
    %v1348 = vpop.permute.xlu0 %1347
    %s1350 = sor.u32 256, 2
    %1351 = vbcast.lane.b32.xlu0 %v923, %s1350
    %v1352 = vpop.permute.xlu0 %1351
    %s1354 = sor.u32 256, 10
    %1355 = vbcast.lane.b32.xlu0 %v923, %s1354
    %v1356 = vpop.permute.xlu0 %1355
    %s1358 = sor.u32 256, 2
    %1359 = vbcast.lane.b32.xlu0 %v934, %s1358
    %v1360 = vpop.permute.xlu0 %1359
    %s1362 = sor.u32 256, 10
    %1363 = vbcast.lane.b32.xlu0 %v934, %s1362
    %v1364 = vpop.permute.xlu0 %1363
    %s1366 = sor.u32 256, 2
    %1367 = vbcast.lane.b32.xlu0 %v945, %s1366
    %v1368 = vpop.permute.xlu0 %1367
    %s1370 = sor.u32 256, 10
    %1371 = vbcast.lane.b32.xlu0 %v945, %s1370
    %v1372 = vpop.permute.xlu0 %1371
    %s1374 = sor.u32 256, 2
    %1375 = vbcast.lane.b32.xlu0 %v956, %s1374
    %v1376 = vpop.permute.xlu0 %1375
    %s1378 = sor.u32 256, 10
    %1379 = vbcast.lane.b32.xlu0 %v956, %s1378
    %v1380 = vpop.permute.xlu0 %1379
    %s1382 = sor.u32 256, 2
    %1383 = vbcast.lane.b32.xlu0 %v967, %s1382
    %v1384 = vpop.permute.xlu0 %1383
    %s1386 = sor.u32 256, 10
    %1387 = vbcast.lane.b32.xlu0 %v967, %s1386
    %v1388 = vpop.permute.xlu0 %1387
    %s1390 = sor.u32 256, 2
    %1391 = vbcast.lane.b32.xlu0 %v978, %s1390
    %v1392 = vpop.permute.xlu0 %1391
    %s1394 = sor.u32 256, 10
    %1395 = vbcast.lane.b32.xlu0 %v978, %s1394
    %v1396 = vpop.permute.xlu0 %1395
    %s1398 = sor.u32 256, 2
    %1399 = vbcast.lane.b32.xlu0 %v989, %s1398
    %v1400 = vpop.permute.xlu0 %1399
    %s1402 = sor.u32 256, 10
    %1403 = vbcast.lane.b32.xlu0 %v989, %s1402
    %v1404 = vpop.permute.xlu0 %1403
    %s1406 = sor.u32 256, 2
    %1407 = vbcast.lane.b32.xlu0 %v1000, %s1406
    %v1408 = vpop.permute.xlu0 %1407
    %s1410 = sor.u32 256, 10
    %1411 = vbcast.lane.b32.xlu0 %v1000, %s1410
    %v1412 = vpop.permute.xlu0 %1411
    %s1414 = sor.u32 256, 2
    %1415 = vbcast.lane.b32.xlu0 %v1011, %s1414
    %v1416 = vpop.permute.xlu0 %1415
    %s1418 = sor.u32 256, 10
    %1419 = vbcast.lane.b32.xlu0 %v1011, %s1418
    %v1420 = vpop.permute.xlu0 %1419
    %s1422 = sor.u32 256, 2
    %1423 = vbcast.lane.b32.xlu0 %v1022, %s1422
    %v1424 = vpop.permute.xlu0 %1423
    %s1426 = sor.u32 256, 10
    %1427 = vbcast.lane.b32.xlu0 %v1022, %s1426
    %v1428 = vpop.permute.xlu0 %1427
    %s1430 = sor.u32 256, 2
    %1431 = vbcast.lane.b32.xlu0 %v1033, %s1430
    %v1432 = vpop.permute.xlu0 %1431
    %s1434 = sor.u32 256, 10
    %1435 = vbcast.lane.b32.xlu0 %v1033, %s1434
    %v1436 = vpop.permute.xlu0 %1435
    %s1438 = sor.u32 256, 2
    %1439 = vbcast.lane.b32.xlu0 %v1044, %s1438
    %v1440 = vpop.permute.xlu0 %1439
    %s1442 = sor.u32 256, 10
    %1443 = vbcast.lane.b32.xlu0 %v1044, %s1442
    %v1444 = vpop.permute.xlu0 %1443
    %s1446 = sor.u32 256, 2
    %1447 = vbcast.lane.b32.xlu0 %v1055, %s1446
    %v1448 = vpop.permute.xlu0 %1447
    %s1450 = sor.u32 256, 10
    %1451 = vbcast.lane.b32.xlu0 %v1055, %s1450
    %v1452 = vpop.permute.xlu0 %1451
    %s1454 = sor.u32 256, 2
    %1455 = vbcast.lane.b32.xlu0 %v1066, %s1454
    %v1456 = vpop.permute.xlu0 %1455
    %s1458 = sor.u32 256, 10
    %1459 = vbcast.lane.b32.xlu0 %v1066, %s1458
    %v1460 = vpop.permute.xlu0 %1459
    %s1462 = sor.u32 256, 2
    %1463 = vbcast.lane.b32.xlu0 %v1077, %s1462
    %v1464 = vpop.permute.xlu0 %1463
    %s1466 = sor.u32 256, 10
    %1467 = vbcast.lane.b32.xlu0 %v1077, %s1466
    %v1468 = vpop.permute.xlu0 %1467
    %v1469 = vlaneseq
    %v1470 = vshrl.u32 %v1469, 7
    %v1471 = vsub.s32 4, %v1470
    %v1472 = vrot.slane %v338, %v1471
    %1474 = vbcast.lane.b32.xlu0 %v1472, 256
    %v1475 = vpop.permute.xlu0 %1474
    %s1477 = sor.u32 256, 8
    %1478 = vbcast.lane.b32.xlu0 %v1472, %s1477
    %v1479 = vpop.permute.xlu0 %1478
    %v1480 = vlaneseq
    %v1481 = vshrl.u32 %v1480, 7
    %v1482 = vsub.s32 4, %v1481
    %v1483 = vrot.slane %v340, %v1482
    %1485 = vbcast.lane.b32.xlu0 %v1483, 256
    %v1486 = vpop.permute.xlu0 %1485
    %s1488 = sor.u32 256, 8
    %1489 = vbcast.lane.b32.xlu0 %v1483, %s1488
    %v1490 = vpop.permute.xlu0 %1489
    %s1492 = sor.u32 256, 1
    %1493 = vbcast.lane.b32.xlu0 %v1472, %s1492
    %v1494 = vpop.permute.xlu0 %1493
    %s1496 = sor.u32 256, 9
    %1497 = vbcast.lane.b32.xlu0 %v1472, %s1496
    %v1498 = vpop.permute.xlu0 %1497
    %s1500 = sor.u32 256, 1
    %1501 = vbcast.lane.b32.xlu0 %v1483, %s1500
    %v1502 = vpop.permute.xlu0 %1501
    %s1504 = sor.u32 256, 9
    %1505 = vbcast.lane.b32.xlu0 %v1483, %s1504
    %v1506 = vpop.permute.xlu0 %1505
    %s1508 = sor.u32 256, 2
    %1509 = vbcast.lane.b32.xlu0 %v1472, %s1508
    %v1510 = vpop.permute.xlu0 %1509
    %s1512 = sor.u32 256, 10
    %1513 = vbcast.lane.b32.xlu0 %v1472, %s1512
    %v1514 = vpop.permute.xlu0 %1513
    %s1516 = sor.u32 256, 2
    %1517 = vbcast.lane.b32.xlu0 %v1483, %s1516
    %v1518 = vpop.permute.xlu0 %1517
    %s1520 = sor.u32 256, 10
    %1521 = vbcast.lane.b32.xlu0 %v1483, %s1520
    %v1522 = vpop.permute.xlu0 %1521
    %v1523 = vlaneseq
    %v1524 = vshrl.u32 %v1523, 7
    %v1525 = vsub.s32 5, %v1524
    %v1526 = vrot.slane %v338, %v1525
    %1528 = vbcast.lane.b32.xlu0 %v1526, 256
    %v1529 = vpop.permute.xlu0 %1528
    %s1531 = sor.u32 256, 8
    %1532 = vbcast.lane.b32.xlu0 %v1526, %s1531
    %v1533 = vpop.permute.xlu0 %1532
    %v1534 = vlaneseq
    %v1535 = vshrl.u32 %v1534, 7
    %v1536 = vsub.s32 5, %v1535
    %v1537 = vrot.slane %v340, %v1536
    %1539 = vbcast.lane.b32.xlu0 %v1537, 256
    %v1540 = vpop.permute.xlu0 %1539
    %s1542 = sor.u32 256, 8
    %1543 = vbcast.lane.b32.xlu0 %v1537, %s1542
    %v1544 = vpop.permute.xlu0 %1543
    %s1546 = sor.u32 256, 1
    %1547 = vbcast.lane.b32.xlu0 %v1526, %s1546
    %v1548 = vpop.permute.xlu0 %1547
    %s1550 = sor.u32 256, 9
    %1551 = vbcast.lane.b32.xlu0 %v1526, %s1550
    %v1552 = vpop.permute.xlu0 %1551
    %s1554 = sor.u32 256, 1
    %1555 = vbcast.lane.b32.xlu0 %v1537, %s1554
    %v1556 = vpop.permute.xlu0 %1555
    %s1558 = sor.u32 256, 9
    %1559 = vbcast.lane.b32.xlu0 %v1537, %s1558
    %v1560 = vpop.permute.xlu0 %1559
    %s1562 = sor.u32 256, 2
    %1563 = vbcast.lane.b32.xlu0 %v1526, %s1562
    %v1564 = vpop.permute.xlu0 %1563
    %s1566 = sor.u32 256, 10
    %1567 = vbcast.lane.b32.xlu0 %v1526, %s1566
    %v1568 = vpop.permute.xlu0 %1567
    %s1570 = sor.u32 256, 2
    %1571 = vbcast.lane.b32.xlu0 %v1537, %s1570
    %v1572 = vpop.permute.xlu0 %1571
    %s1574 = sor.u32 256, 10
    %1575 = vbcast.lane.b32.xlu0 %v1537, %s1574
    %v1576 = vpop.permute.xlu0 %1575
    %v1577 = vlaneseq
    %v1578 = vshrl.u32 %v1577, 7
    %v1579 = vsub.s32 0, %v1578
    %v1580 = vrot.slane %v577, %v1579
    %1582 = vbcast.lane.b32.xlu0 %v1580, 256
    %v1583 = vpop.permute.xlu0 %1582
    %s1585 = sor.u32 256, 8
    %1586 = vbcast.lane.b32.xlu0 %v1580, %s1585
    %v1587 = vpop.permute.xlu0 %1586
    %v1588 = vlaneseq
    %v1589 = vshrl.u32 %v1588, 7
    %v1590 = vsub.s32 1, %v1589
    %v1591 = vrot.slane %v577, %v1590
    %1593 = vbcast.lane.b32.xlu0 %v1591, 256
    %v1594 = vpop.permute.xlu0 %1593
    %s1596 = sor.u32 256, 8
    %1597 = vbcast.lane.b32.xlu0 %v1591, %s1596
    %v1598 = vpop.permute.xlu0 %1597
    %v1599 = vlaneseq
    %v1600 = vshrl.u32 %v1599, 7
    %v1601 = vsub.s32 2, %v1600
    %v1602 = vrot.slane %v577, %v1601
    %1604 = vbcast.lane.b32.xlu0 %v1602, 256
    %v1605 = vpop.permute.xlu0 %1604
    %s1607 = sor.u32 256, 8
    %1608 = vbcast.lane.b32.xlu0 %v1602, %s1607
    %v1609 = vpop.permute.xlu0 %1608
    %v1610 = vlaneseq
    %v1611 = vshrl.u32 %v1610, 7
    %v1612 = vsub.s32 3, %v1611
    %v1613 = vrot.slane %v577, %v1612
    %1615 = vbcast.lane.b32.xlu0 %v1613, 256
    %v1616 = vpop.permute.xlu0 %1615
    %s1618 = sor.u32 256, 8
    %1619 = vbcast.lane.b32.xlu0 %v1613, %s1618
    %v1620 = vpop.permute.xlu0 %1619
    %v1621 = vlaneseq
    %v1622 = vshrl.u32 %v1621, 7
    %v1623 = vsub.s32 4, %v1622
    %v1624 = vrot.slane %v577, %v1623
    %1626 = vbcast.lane.b32.xlu0 %v1624, 256
    %v1627 = vpop.permute.xlu0 %1626
    %s1629 = sor.u32 256, 8
    %1630 = vbcast.lane.b32.xlu0 %v1624, %s1629
    %v1631 = vpop.permute.xlu0 %1630
    %v1632 = vlaneseq
    %v1633 = vshrl.u32 %v1632, 7
    %v1634 = vsub.s32 5, %v1633
    %v1635 = vrot.slane %v577, %v1634
    %1637 = vbcast.lane.b32.xlu0 %v1635, 256
    %v1638 = vpop.permute.xlu0 %1637
    %s1640 = sor.u32 256, 8
    %1641 = vbcast.lane.b32.xlu0 %v1635, %s1640
    %v1642 = vpop.permute.xlu0 %1641
    %v1643 = vlaneseq
    %v1644 = vshrl.u32 %v1643, 7
    %v1645 = vsub.s32 6, %v1644
    %v1646 = vrot.slane %v577, %v1645
    %1648 = vbcast.lane.b32.xlu0 %v1646, 256
    %v1649 = vpop.permute.xlu0 %1648
    %s1651 = sor.u32 256, 8
    %1652 = vbcast.lane.b32.xlu0 %v1646, %s1651
    %v1653 = vpop.permute.xlu0 %1652
    %v1654 = vlaneseq
    %v1655 = vshrl.u32 %v1654, 7
    %v1656 = vsub.s32 7, %v1655
    %v1657 = vrot.slane %v577, %v1656
    %1659 = vbcast.lane.b32.xlu0 %v1657, 256
    %v1660 = vpop.permute.xlu0 %1659
    %s1662 = sor.u32 256, 8
    %1663 = vbcast.lane.b32.xlu0 %v1657, %s1662
    %v1664 = vpop.permute.xlu0 %1663
    %v1665 = vlaneseq
    %v1666 = vshrl.u32 %v1665, 7
    %v1667 = vsub.s32 0, %v1666
    %v1668 = vrot.slane %v578, %v1667
    %1670 = vbcast.lane.b32.xlu0 %v1668, 256
    %v1671 = vpop.permute.xlu0 %1670
    %s1673 = sor.u32 256, 8
    %1674 = vbcast.lane.b32.xlu0 %v1668, %s1673
    %v1675 = vpop.permute.xlu0 %1674
    %v1676 = vlaneseq
    %v1677 = vshrl.u32 %v1676, 7
    %v1678 = vsub.s32 1, %v1677
    %v1679 = vrot.slane %v578, %v1678
    %1681 = vbcast.lane.b32.xlu0 %v1679, 256
    %v1682 = vpop.permute.xlu0 %1681
    %s1684 = sor.u32 256, 8
    %1685 = vbcast.lane.b32.xlu0 %v1679, %s1684
    %v1686 = vpop.permute.xlu0 %1685
    %v1687 = vlaneseq
    %v1688 = vshrl.u32 %v1687, 7
    %v1689 = vsub.s32 2, %v1688
    %v1690 = vrot.slane %v578, %v1689
    %1692 = vbcast.lane.b32.xlu0 %v1690, 256
    %v1693 = vpop.permute.xlu0 %1692
    %s1695 = sor.u32 256, 8
    %1696 = vbcast.lane.b32.xlu0 %v1690, %s1695
    %v1697 = vpop.permute.xlu0 %1696
    %v1698 = vlaneseq
    %v1699 = vshrl.u32 %v1698, 7
    %v1700 = vsub.s32 3, %v1699
    %v1701 = vrot.slane %v578, %v1700
    %1703 = vbcast.lane.b32.xlu0 %v1701, 256
    %v1704 = vpop.permute.xlu0 %1703
    %s1706 = sor.u32 256, 8
    %1707 = vbcast.lane.b32.xlu0 %v1701, %s1706
    %v1708 = vpop.permute.xlu0 %1707
    %v1709 = vlaneseq
    %v1710 = vshrl.u32 %v1709, 7
    %v1711 = vsub.s32 0, %v1710
    %v1712 = vrot.slane %v579, %v1711
    %1714 = vbcast.lane.b32.xlu0 %v1712, 256
    %v1715 = vpop.permute.xlu0 %1714
    %s1717 = sor.u32 256, 8
    %1718 = vbcast.lane.b32.xlu0 %v1712, %s1717
    %v1719 = vpop.permute.xlu0 %1718
    %v1720 = vlaneseq
    %v1721 = vshrl.u32 %v1720, 7
    %v1722 = vsub.s32 1, %v1721
    %v1723 = vrot.slane %v579, %v1722
    %1725 = vbcast.lane.b32.xlu0 %v1723, 256
    %v1726 = vpop.permute.xlu0 %1725
    %s1728 = sor.u32 256, 8
    %1729 = vbcast.lane.b32.xlu0 %v1723, %s1728
    %v1730 = vpop.permute.xlu0 %1729
    %v1731 = vlaneseq
    %v1732 = vshrl.u32 %v1731, 7
    %v1733 = vsub.s32 2, %v1732
    %v1734 = vrot.slane %v579, %v1733
    %1736 = vbcast.lane.b32.xlu0 %v1734, 256
    %v1737 = vpop.permute.xlu0 %1736
    %s1739 = sor.u32 256, 8
    %1740 = vbcast.lane.b32.xlu0 %v1734, %s1739
    %v1741 = vpop.permute.xlu0 %1740
    %v1742 = vlaneseq
    %v1743 = vshrl.u32 %v1742, 7
    %v1744 = vsub.s32 3, %v1743
    %v1745 = vrot.slane %v579, %v1744
    %1747 = vbcast.lane.b32.xlu0 %v1745, 256
    %v1748 = vpop.permute.xlu0 %1747
    %s1750 = sor.u32 256, 8
    %1751 = vbcast.lane.b32.xlu0 %v1745, %s1750
    %v1752 = vpop.permute.xlu0 %1751
    %v1753 = vlaneseq
    %v1754 = vshrl.u32 %v1753, 7
    %v1755 = vsub.s32 4, %v1754
    %v1756 = vrot.slane %v579, %v1755
    %1758 = vbcast.lane.b32.xlu0 %v1756, 256
    %v1759 = vpop.permute.xlu0 %1758
    %s1761 = sor.u32 256, 8
    %1762 = vbcast.lane.b32.xlu0 %v1756, %s1761
    %v1763 = vpop.permute.xlu0 %1762
    %v1764 = vlaneseq
    %v1765 = vshrl.u32 %v1764, 7
    %v1766 = vsub.s32 5, %v1765
    %v1767 = vrot.slane %v579, %v1766
    %1769 = vbcast.lane.b32.xlu0 %v1767, 256
    %v1770 = vpop.permute.xlu0 %1769
    %s1772 = sor.u32 256, 8
    %1773 = vbcast.lane.b32.xlu0 %v1767, %s1772
    %v1774 = vpop.permute.xlu0 %1773
    %v1775 = vlaneseq
    %v1776 = vshrl.u32 %v1775, 7
    %v1777 = vsub.s32 6, %v1776
    %v1778 = vrot.slane %v579, %v1777
    %1780 = vbcast.lane.b32.xlu0 %v1778, 256
    %v1781 = vpop.permute.xlu0 %1780
    %s1783 = sor.u32 256, 8
    %1784 = vbcast.lane.b32.xlu0 %v1778, %s1783
    %v1785 = vpop.permute.xlu0 %1784
    %v1786 = vlaneseq
    %v1787 = vshrl.u32 %v1786, 7
    %v1788 = vsub.s32 7, %v1787
    %v1789 = vrot.slane %v579, %v1788
    %1791 = vbcast.lane.b32.xlu0 %v1789, 256
    %v1792 = vpop.permute.xlu0 %1791
    %s1794 = sor.u32 256, 8
    %1795 = vbcast.lane.b32.xlu0 %v1789, %s1794
    %v1796 = vpop.permute.xlu0 %1795
    %v1797 = vlaneseq
    %v1798 = vshrl.u32 %v1797, 7
    %v1799 = vsub.s32 0, %v1798
    %v1800 = vrot.slane %v580, %v1799
    %1802 = vbcast.lane.b32.xlu0 %v1800, 256
    %v1803 = vpop.permute.xlu0 %1802
    %s1805 = sor.u32 256, 8
    %1806 = vbcast.lane.b32.xlu0 %v1800, %s1805
    %v1807 = vpop.permute.xlu0 %1806
    %v1808 = vlaneseq
    %v1809 = vshrl.u32 %v1808, 7
    %v1810 = vsub.s32 1, %v1809
    %v1811 = vrot.slane %v580, %v1810
    %1813 = vbcast.lane.b32.xlu0 %v1811, 256
    %v1814 = vpop.permute.xlu0 %1813
    %s1816 = sor.u32 256, 8
    %1817 = vbcast.lane.b32.xlu0 %v1811, %s1816
    %v1818 = vpop.permute.xlu0 %1817
    %v1819 = vlaneseq
    %v1820 = vshrl.u32 %v1819, 7
    %v1821 = vsub.s32 2, %v1820
    %v1822 = vrot.slane %v580, %v1821
    %1824 = vbcast.lane.b32.xlu0 %v1822, 256
    %v1825 = vpop.permute.xlu0 %1824
    %s1827 = sor.u32 256, 8
    %1828 = vbcast.lane.b32.xlu0 %v1822, %s1827
    %v1829 = vpop.permute.xlu0 %1828
    %v1830 = vlaneseq
    %v1831 = vshrl.u32 %v1830, 7
    %v1832 = vsub.s32 3, %v1831
    %v1833 = vrot.slane %v580, %v1832
    %1835 = vbcast.lane.b32.xlu0 %v1833, 256
    %v1836 = vpop.permute.xlu0 %1835
    %s1838 = sor.u32 256, 8
    %1839 = vbcast.lane.b32.xlu0 %v1833, %s1838
    %v1840 = vpop.permute.xlu0 %1839
    %s1842 = sor.u32 256, 1
    %1843 = vbcast.lane.b32.xlu0 %v1580, %s1842
    %v1844 = vpop.permute.xlu0 %1843
    %s1846 = sor.u32 256, 9
    %1847 = vbcast.lane.b32.xlu0 %v1580, %s1846
    %v1848 = vpop.permute.xlu0 %1847
    %s1850 = sor.u32 256, 1
    %1851 = vbcast.lane.b32.xlu0 %v1591, %s1850
    %v1852 = vpop.permute.xlu0 %1851
    %s1854 = sor.u32 256, 9
    %1855 = vbcast.lane.b32.xlu0 %v1591, %s1854
    %v1856 = vpop.permute.xlu0 %1855
    %s1858 = sor.u32 256, 1
    %1859 = vbcast.lane.b32.xlu0 %v1602, %s1858
    %v1860 = vpop.permute.xlu0 %1859
    %s1862 = sor.u32 256, 9
    %1863 = vbcast.lane.b32.xlu0 %v1602, %s1862
    %v1864 = vpop.permute.xlu0 %1863
    %s1866 = sor.u32 256, 1
    %1867 = vbcast.lane.b32.xlu0 %v1613, %s1866
    %v1868 = vpop.permute.xlu0 %1867
    %s1870 = sor.u32 256, 9
    %1871 = vbcast.lane.b32.xlu0 %v1613, %s1870
    %v1872 = vpop.permute.xlu0 %1871
    %s1874 = sor.u32 256, 1
    %1875 = vbcast.lane.b32.xlu0 %v1624, %s1874
    %v1876 = vpop.permute.xlu0 %1875
    %s1878 = sor.u32 256, 9
    %1879 = vbcast.lane.b32.xlu0 %v1624, %s1878
    %v1880 = vpop.permute.xlu0 %1879
    %s1882 = sor.u32 256, 1
    %1883 = vbcast.lane.b32.xlu0 %v1635, %s1882
    %v1884 = vpop.permute.xlu0 %1883
    %s1886 = sor.u32 256, 9
    %1887 = vbcast.lane.b32.xlu0 %v1635, %s1886
    %v1888 = vpop.permute.xlu0 %1887
    %s1890 = sor.u32 256, 1
    %1891 = vbcast.lane.b32.xlu0 %v1646, %s1890
    %v1892 = vpop.permute.xlu0 %1891
    %s1894 = sor.u32 256, 9
    %1895 = vbcast.lane.b32.xlu0 %v1646, %s1894
    %v1896 = vpop.permute.xlu0 %1895
    %s1898 = sor.u32 256, 1
    %1899 = vbcast.lane.b32.xlu0 %v1657, %s1898
    %v1900 = vpop.permute.xlu0 %1899
    %s1902 = sor.u32 256, 9
    %1903 = vbcast.lane.b32.xlu0 %v1657, %s1902
    %v1904 = vpop.permute.xlu0 %1903
    %s1906 = sor.u32 256, 1
    %1907 = vbcast.lane.b32.xlu0 %v1668, %s1906
    %v1908 = vpop.permute.xlu0 %1907
    %s1910 = sor.u32 256, 9
    %1911 = vbcast.lane.b32.xlu0 %v1668, %s1910
    %v1912 = vpop.permute.xlu0 %1911
    %s1914 = sor.u32 256, 1
    %1915 = vbcast.lane.b32.xlu0 %v1679, %s1914
    %v1916 = vpop.permute.xlu0 %1915
    %s1918 = sor.u32 256, 9
    %1919 = vbcast.lane.b32.xlu0 %v1679, %s1918
    %v1920 = vpop.permute.xlu0 %1919
    %s1922 = sor.u32 256, 1
    %1923 = vbcast.lane.b32.xlu0 %v1690, %s1922
    %v1924 = vpop.permute.xlu0 %1923
    %s1926 = sor.u32 256, 9
    %1927 = vbcast.lane.b32.xlu0 %v1690, %s1926
    %v1928 = vpop.permute.xlu0 %1927
    %s1930 = sor.u32 256, 1
    %1931 = vbcast.lane.b32.xlu0 %v1701, %s1930
    %v1932 = vpop.permute.xlu0 %1931
    %s1934 = sor.u32 256, 9
    %1935 = vbcast.lane.b32.xlu0 %v1701, %s1934
    %v1936 = vpop.permute.xlu0 %1935
    %s1938 = sor.u32 256, 1
    %1939 = vbcast.lane.b32.xlu0 %v1712, %s1938
    %v1940 = vpop.permute.xlu0 %1939
    %s1942 = sor.u32 256, 9
    %1943 = vbcast.lane.b32.xlu0 %v1712, %s1942
    %v1944 = vpop.permute.xlu0 %1943
    %s1946 = sor.u32 256, 1
    %1947 = vbcast.lane.b32.xlu0 %v1723, %s1946
    %v1948 = vpop.permute.xlu0 %1947
    %s1950 = sor.u32 256, 9
    %1951 = vbcast.lane.b32.xlu0 %v1723, %s1950
    %v1952 = vpop.permute.xlu0 %1951
    %s1954 = sor.u32 256, 1
    %1955 = vbcast.lane.b32.xlu0 %v1734, %s1954
    %v1956 = vpop.permute.xlu0 %1955
    %s1958 = sor.u32 256, 9
    %1959 = vbcast.lane.b32.xlu0 %v1734, %s1958
    %v1960 = vpop.permute.xlu0 %1959
    %s1962 = sor.u32 256, 1
    %1963 = vbcast.lane.b32.xlu0 %v1745, %s1962
    %v1964 = vpop.permute.xlu0 %1963
    %s1966 = sor.u32 256, 9
    %1967 = vbcast.lane.b32.xlu0 %v1745, %s1966
    %v1968 = vpop.permute.xlu0 %1967
    %s1970 = sor.u32 256, 1
    %1971 = vbcast.lane.b32.xlu0 %v1756, %s1970
    %v1972 = vpop.permute.xlu0 %1971
    %s1974 = sor.u32 256, 9
    %1975 = vbcast.lane.b32.xlu0 %v1756, %s1974
    %v1976 = vpop.permute.xlu0 %1975
    %s1978 = sor.u32 256, 1
    %1979 = vbcast.lane.b32.xlu0 %v1767, %s1978
    %v1980 = vpop.permute.xlu0 %1979
    %s1982 = sor.u32 256, 9
    %1983 = vbcast.lane.b32.xlu0 %v1767, %s1982
    %v1984 = vpop.permute.xlu0 %1983
    %s1986 = sor.u32 256, 1
    %1987 = vbcast.lane.b32.xlu0 %v1778, %s1986
    %v1988 = vpop.permute.xlu0 %1987
    %s1990 = sor.u32 256, 9
    %1991 = vbcast.lane.b32.xlu0 %v1778, %s1990
    %v1992 = vpop.permute.xlu0 %1991
    %s1994 = sor.u32 256, 1
    %1995 = vbcast.lane.b32.xlu0 %v1789, %s1994
    %v1996 = vpop.permute.xlu0 %1995
    %s1998 = sor.u32 256, 9
    %1999 = vbcast.lane.b32.xlu0 %v1789, %s1998
    %v2000 = vpop.permute.xlu0 %1999
    %s2002 = sor.u32 256, 1
    %2003 = vbcast.lane.b32.xlu0 %v1800, %s2002
    %v2004 = vpop.permute.xlu0 %2003
    %s2006 = sor.u32 256, 9
    %2007 = vbcast.lane.b32.xlu0 %v1800, %s2006
    %v2008 = vpop.permute.xlu0 %2007
    %s2010 = sor.u32 256, 1
    %2011 = vbcast.lane.b32.xlu0 %v1811, %s2010
    %v2012 = vpop.permute.xlu0 %2011
    %s2014 = sor.u32 256, 9
    %2015 = vbcast.lane.b32.xlu0 %v1811, %s2014
    %v2016 = vpop.permute.xlu0 %2015
    %s2018 = sor.u32 256, 1
    %2019 = vbcast.lane.b32.xlu0 %v1822, %s2018
    %v2020 = vpop.permute.xlu0 %2019
    %s2022 = sor.u32 256, 9
    %2023 = vbcast.lane.b32.xlu0 %v1822, %s2022
    %v2024 = vpop.permute.xlu0 %2023
    %s2026 = sor.u32 256, 1
    %2027 = vbcast.lane.b32.xlu0 %v1833, %s2026
    %v2028 = vpop.permute.xlu0 %2027
    %s2030 = sor.u32 256, 9
    %2031 = vbcast.lane.b32.xlu0 %v1833, %s2030
    %v2032 = vpop.permute.xlu0 %2031
    %s2034 = sor.u32 256, 2
    %2035 = vbcast.lane.b32.xlu0 %v1580, %s2034
    %v2036 = vpop.permute.xlu0 %2035
    %s2038 = sor.u32 256, 10
    %2039 = vbcast.lane.b32.xlu0 %v1580, %s2038
    %v2040 = vpop.permute.xlu0 %2039
    %s2042 = sor.u32 256, 2
    %2043 = vbcast.lane.b32.xlu0 %v1591, %s2042
    %v2044 = vpop.permute.xlu0 %2043
    %s2046 = sor.u32 256, 10
    %2047 = vbcast.lane.b32.xlu0 %v1591, %s2046
    %v2048 = vpop.permute.xlu0 %2047
    %s2050 = sor.u32 256, 2
    %2051 = vbcast.lane.b32.xlu0 %v1602, %s2050
    %v2052 = vpop.permute.xlu0 %2051
    %s2054 = sor.u32 256, 10
    %2055 = vbcast.lane.b32.xlu0 %v1602, %s2054
    %v2056 = vpop.permute.xlu0 %2055
    %s2058 = sor.u32 256, 2
    %2059 = vbcast.lane.b32.xlu0 %v1613, %s2058
    %v2060 = vpop.permute.xlu0 %2059
    %s2062 = sor.u32 256, 10
    %2063 = vbcast.lane.b32.xlu0 %v1613, %s2062
    %v2064 = vpop.permute.xlu0 %2063
    %s2066 = sor.u32 256, 2
    %2067 = vbcast.lane.b32.xlu0 %v1624, %s2066
    %v2068 = vpop.permute.xlu0 %2067
    %s2070 = sor.u32 256, 10
    %2071 = vbcast.lane.b32.xlu0 %v1624, %s2070
    %v2072 = vpop.permute.xlu0 %2071
    %s2074 = sor.u32 256, 2
    %2075 = vbcast.lane.b32.xlu0 %v1635, %s2074
    %v2076 = vpop.permute.xlu0 %2075
    %s2078 = sor.u32 256, 10
    %2079 = vbcast.lane.b32.xlu0 %v1635, %s2078
    %v2080 = vpop.permute.xlu0 %2079
    %s2082 = sor.u32 256, 2
    %2083 = vbcast.lane.b32.xlu0 %v1646, %s2082
    %v2084 = vpop.permute.xlu0 %2083
    %s2086 = sor.u32 256, 10
    %2087 = vbcast.lane.b32.xlu0 %v1646, %s2086
    %v2088 = vpop.permute.xlu0 %2087
    %s2090 = sor.u32 256, 2
    %2091 = vbcast.lane.b32.xlu0 %v1657, %s2090
    %v2092 = vpop.permute.xlu0 %2091
    %s2094 = sor.u32 256, 10
    %2095 = vbcast.lane.b32.xlu0 %v1657, %s2094
    %v2096 = vpop.permute.xlu0 %2095
    %s2098 = sor.u32 256, 2
    %2099 = vbcast.lane.b32.xlu0 %v1668, %s2098
    %v2100 = vpop.permute.xlu0 %2099
    %s2102 = sor.u32 256, 10
    %2103 = vbcast.lane.b32.xlu0 %v1668, %s2102
    %v2104 = vpop.permute.xlu0 %2103
    %s2106 = sor.u32 256, 2
    %2107 = vbcast.lane.b32.xlu0 %v1679, %s2106
    %v2108 = vpop.permute.xlu0 %2107
    %s2110 = sor.u32 256, 10
    %2111 = vbcast.lane.b32.xlu0 %v1679, %s2110
    %v2112 = vpop.permute.xlu0 %2111
    %s2114 = sor.u32 256, 2
    %2115 = vbcast.lane.b32.xlu0 %v1690, %s2114
    %v2116 = vpop.permute.xlu0 %2115
    %s2118 = sor.u32 256, 10
    %2119 = vbcast.lane.b32.xlu0 %v1690, %s2118
    %v2120 = vpop.permute.xlu0 %2119
    %s2122 = sor.u32 256, 2
    %2123 = vbcast.lane.b32.xlu0 %v1701, %s2122
    %v2124 = vpop.permute.xlu0 %2123
    %s2126 = sor.u32 256, 10
    %2127 = vbcast.lane.b32.xlu0 %v1701, %s2126
    %v2128 = vpop.permute.xlu0 %2127
    %s2130 = sor.u32 256, 2
    %2131 = vbcast.lane.b32.xlu0 %v1712, %s2130
    %v2132 = vpop.permute.xlu0 %2131
    %s2134 = sor.u32 256, 10
    %2135 = vbcast.lane.b32.xlu0 %v1712, %s2134
    %v2136 = vpop.permute.xlu0 %2135
    %s2138 = sor.u32 256, 2
    %2139 = vbcast.lane.b32.xlu0 %v1723, %s2138
    %v2140 = vpop.permute.xlu0 %2139
    %s2142 = sor.u32 256, 10
    %2143 = vbcast.lane.b32.xlu0 %v1723, %s2142
    %v2144 = vpop.permute.xlu0 %2143
    %s2146 = sor.u32 256, 2
    %2147 = vbcast.lane.b32.xlu0 %v1734, %s2146
    %v2148 = vpop.permute.xlu0 %2147
    %s2150 = sor.u32 256, 10
    %2151 = vbcast.lane.b32.xlu0 %v1734, %s2150
    %v2152 = vpop.permute.xlu0 %2151
    %s2154 = sor.u32 256, 2
    %2155 = vbcast.lane.b32.xlu0 %v1745, %s2154
    %v2156 = vpop.permute.xlu0 %2155
    %s2158 = sor.u32 256, 10
    %2159 = vbcast.lane.b32.xlu0 %v1745, %s2158
    %v2160 = vpop.permute.xlu0 %2159
    %s2162 = sor.u32 256, 2
    %2163 = vbcast.lane.b32.xlu0 %v1756, %s2162
    %v2164 = vpop.permute.xlu0 %2163
    %s2166 = sor.u32 256, 10
    %2167 = vbcast.lane.b32.xlu0 %v1756, %s2166
    %v2168 = vpop.permute.xlu0 %2167
    %s2170 = sor.u32 256, 2
    %2171 = vbcast.lane.b32.xlu0 %v1767, %s2170
    %v2172 = vpop.permute.xlu0 %2171
    %s2174 = sor.u32 256, 10
    %2175 = vbcast.lane.b32.xlu0 %v1767, %s2174
    %v2176 = vpop.permute.xlu0 %2175
    %s2178 = sor.u32 256, 2
    %2179 = vbcast.lane.b32.xlu0 %v1778, %s2178
    %v2180 = vpop.permute.xlu0 %2179
    %s2182 = sor.u32 256, 10
    %2183 = vbcast.lane.b32.xlu0 %v1778, %s2182
    %v2184 = vpop.permute.xlu0 %2183
    %s2186 = sor.u32 256, 2
    %2187 = vbcast.lane.b32.xlu0 %v1789, %s2186
    %v2188 = vpop.permute.xlu0 %2187
    %s2190 = sor.u32 256, 10
    %2191 = vbcast.lane.b32.xlu0 %v1789, %s2190
    %v2192 = vpop.permute.xlu0 %2191
    %s2194 = sor.u32 256, 2
    %2195 = vbcast.lane.b32.xlu0 %v1800, %s2194
    %v2196 = vpop.permute.xlu0 %2195
    %s2198 = sor.u32 256, 10
    %2199 = vbcast.lane.b32.xlu0 %v1800, %s2198
    %v2200 = vpop.permute.xlu0 %2199
    %s2202 = sor.u32 256, 2
    %2203 = vbcast.lane.b32.xlu0 %v1811, %s2202
    %v2204 = vpop.permute.xlu0 %2203
    %s2206 = sor.u32 256, 10
    %2207 = vbcast.lane.b32.xlu0 %v1811, %s2206
    %v2208 = vpop.permute.xlu0 %2207
    %s2210 = sor.u32 256, 2
    %2211 = vbcast.lane.b32.xlu0 %v1822, %s2210
    %v2212 = vpop.permute.xlu0 %2211
    %s2214 = sor.u32 256, 10
    %2215 = vbcast.lane.b32.xlu0 %v1822, %s2214
    %v2216 = vpop.permute.xlu0 %2215
    %s2218 = sor.u32 256, 2
    %2219 = vbcast.lane.b32.xlu0 %v1833, %s2218
    %v2220 = vpop.permute.xlu0 %2219
    %s2222 = sor.u32 256, 10
    %2223 = vbcast.lane.b32.xlu0 %v1833, %s2222
    %v2224 = vpop.permute.xlu0 %2223
    %v2225 = vlaneseq
    %v2226 = vshrl.u32 %v2225, 7
    %v2227 = vsub.s32 4, %v2226
    %v2228 = vrot.slane %v578, %v2227
    %2230 = vbcast.lane.b32.xlu0 %v2228, 256
    %v2231 = vpop.permute.xlu0 %2230
    %s2233 = sor.u32 256, 8
    %2234 = vbcast.lane.b32.xlu0 %v2228, %s2233
    %v2235 = vpop.permute.xlu0 %2234
    %v2236 = vlaneseq
    %v2237 = vshrl.u32 %v2236, 7
    %v2238 = vsub.s32 4, %v2237
    %v2239 = vrot.slane %v580, %v2238
    %2241 = vbcast.lane.b32.xlu0 %v2239, 256
    %v2242 = vpop.permute.xlu0 %2241
    %s2244 = sor.u32 256, 8
    %2245 = vbcast.lane.b32.xlu0 %v2239, %s2244
    %v2246 = vpop.permute.xlu0 %2245
    %s2248 = sor.u32 256, 1
    %2249 = vbcast.lane.b32.xlu0 %v2228, %s2248
    %v2250 = vpop.permute.xlu0 %2249
    %s2252 = sor.u32 256, 9
    %2253 = vbcast.lane.b32.xlu0 %v2228, %s2252
    %v2254 = vpop.permute.xlu0 %2253
    %s2256 = sor.u32 256, 1
    %2257 = vbcast.lane.b32.xlu0 %v2239, %s2256
    %v2258 = vpop.permute.xlu0 %2257
    %s2260 = sor.u32 256, 9
    %2261 = vbcast.lane.b32.xlu0 %v2239, %s2260
    %v2262 = vpop.permute.xlu0 %2261
    %s2264 = sor.u32 256, 2
    %2265 = vbcast.lane.b32.xlu0 %v2228, %s2264
    %v2266 = vpop.permute.xlu0 %2265
    %s2268 = sor.u32 256, 10
    %2269 = vbcast.lane.b32.xlu0 %v2228, %s2268
    %v2270 = vpop.permute.xlu0 %2269
    %s2272 = sor.u32 256, 2
    %2273 = vbcast.lane.b32.xlu0 %v2239, %s2272
    %v2274 = vpop.permute.xlu0 %2273
    %s2276 = sor.u32 256, 10
    %2277 = vbcast.lane.b32.xlu0 %v2239, %s2276
    %v2278 = vpop.permute.xlu0 %2277
    %v2279 = vlaneseq
    %v2280 = vshrl.u32 %v2279, 7
    %v2281 = vsub.s32 5, %v2280
    %v2282 = vrot.slane %v578, %v2281
    %2284 = vbcast.lane.b32.xlu0 %v2282, 256
    %v2285 = vpop.permute.xlu0 %2284
    %s2287 = sor.u32 256, 8
    %2288 = vbcast.lane.b32.xlu0 %v2282, %s2287
    %v2289 = vpop.permute.xlu0 %2288
    %v2290 = vlaneseq
    %v2291 = vshrl.u32 %v2290, 7
    %v2292 = vsub.s32 5, %v2291
    %v2293 = vrot.slane %v580, %v2292
    %2295 = vbcast.lane.b32.xlu0 %v2293, 256
    %v2296 = vpop.permute.xlu0 %2295
    %s2298 = sor.u32 256, 8
    %2299 = vbcast.lane.b32.xlu0 %v2293, %s2298
    %v2300 = vpop.permute.xlu0 %2299
    %s2302 = sor.u32 256, 1
    %2303 = vbcast.lane.b32.xlu0 %v2282, %s2302
    %v2304 = vpop.permute.xlu0 %2303
    %s2306 = sor.u32 256, 9
    %2307 = vbcast.lane.b32.xlu0 %v2282, %s2306
    %v2308 = vpop.permute.xlu0 %2307
    %s2310 = sor.u32 256, 1
    %2311 = vbcast.lane.b32.xlu0 %v2293, %s2310
    %v2312 = vpop.permute.xlu0 %2311
    %s2314 = sor.u32 256, 9
    %2315 = vbcast.lane.b32.xlu0 %v2293, %s2314
    %v2316 = vpop.permute.xlu0 %2315
    %s2318 = sor.u32 256, 2
    %2319 = vbcast.lane.b32.xlu0 %v2282, %s2318
    %v2320 = vpop.permute.xlu0 %2319
    %s2322 = sor.u32 256, 10
    %2323 = vbcast.lane.b32.xlu0 %v2282, %s2322
    %v2324 = vpop.permute.xlu0 %2323
    %s2326 = sor.u32 256, 2
    %2327 = vbcast.lane.b32.xlu0 %v2293, %s2326
    %v2328 = vpop.permute.xlu0 %2327
    %s2330 = sor.u32 256, 10
    %2331 = vbcast.lane.b32.xlu0 %v2293, %s2330
    %v2332 = vpop.permute.xlu0 %2331
    %v2333 = vlaneseq
    %v2334 = vshrl.u32 %v2333, 7
    %v2335 = vsub.s32 0, %v2334
    %v2336 = vrot.slane %v817, %v2335
    %2338 = vbcast.lane.b32.xlu0 %v2336, 256
    %v2339 = vpop.permute.xlu0 %2338
    %s2341 = sor.u32 256, 8
    %2342 = vbcast.lane.b32.xlu0 %v2336, %s2341
    %v2343 = vpop.permute.xlu0 %2342
    %v2344 = vlaneseq
    %v2345 = vshrl.u32 %v2344, 7
    %v2346 = vsub.s32 1, %v2345
    %v2347 = vrot.slane %v817, %v2346
    %2349 = vbcast.lane.b32.xlu0 %v2347, 256
    %v2350 = vpop.permute.xlu0 %2349
    %s2352 = sor.u32 256, 8
    %2353 = vbcast.lane.b32.xlu0 %v2347, %s2352
    %v2354 = vpop.permute.xlu0 %2353
    %v2355 = vlaneseq
    %v2356 = vshrl.u32 %v2355, 7
    %v2357 = vsub.s32 2, %v2356
    %v2358 = vrot.slane %v817, %v2357
    %2360 = vbcast.lane.b32.xlu0 %v2358, 256
    %v2361 = vpop.permute.xlu0 %2360
    %s2363 = sor.u32 256, 8
    %2364 = vbcast.lane.b32.xlu0 %v2358, %s2363
    %v2365 = vpop.permute.xlu0 %2364
    %v2366 = vlaneseq
    %v2367 = vshrl.u32 %v2366, 7
    %v2368 = vsub.s32 3, %v2367
    %v2369 = vrot.slane %v817, %v2368
    %2371 = vbcast.lane.b32.xlu0 %v2369, 256
    %v2372 = vpop.permute.xlu0 %2371
    %s2374 = sor.u32 256, 8
    %2375 = vbcast.lane.b32.xlu0 %v2369, %s2374
    %v2376 = vpop.permute.xlu0 %2375
    %v2377 = vlaneseq
    %v2378 = vshrl.u32 %v2377, 7
    %v2379 = vsub.s32 4, %v2378
    %v2380 = vrot.slane %v817, %v2379
    %2382 = vbcast.lane.b32.xlu0 %v2380, 256
    %v2383 = vpop.permute.xlu0 %2382
    %s2385 = sor.u32 256, 8
    %2386 = vbcast.lane.b32.xlu0 %v2380, %s2385
    %v2387 = vpop.permute.xlu0 %2386
    %v2388 = vlaneseq
    %v2389 = vshrl.u32 %v2388, 7
    %v2390 = vsub.s32 5, %v2389
    %v2391 = vrot.slane %v817, %v2390
    %2393 = vbcast.lane.b32.xlu0 %v2391, 256
    %v2394 = vpop.permute.xlu0 %2393
    %s2396 = sor.u32 256, 8
    %2397 = vbcast.lane.b32.xlu0 %v2391, %s2396
    %v2398 = vpop.permute.xlu0 %2397
    %v2399 = vlaneseq
    %v2400 = vshrl.u32 %v2399, 7
    %v2401 = vsub.s32 6, %v2400
    %v2402 = vrot.slane %v817, %v2401
    %2404 = vbcast.lane.b32.xlu0 %v2402, 256
    %v2405 = vpop.permute.xlu0 %2404
    %s2407 = sor.u32 256, 8
    %2408 = vbcast.lane.b32.xlu0 %v2402, %s2407
    %v2409 = vpop.permute.xlu0 %2408
    %v2410 = vlaneseq
    %v2411 = vshrl.u32 %v2410, 7
    %v2412 = vsub.s32 7, %v2411
    %v2413 = vrot.slane %v817, %v2412
    %2415 = vbcast.lane.b32.xlu0 %v2413, 256
    %v2416 = vpop.permute.xlu0 %2415
    %s2418 = sor.u32 256, 8
    %2419 = vbcast.lane.b32.xlu0 %v2413, %s2418
    %v2420 = vpop.permute.xlu0 %2419
    %v2421 = vlaneseq
    %v2422 = vshrl.u32 %v2421, 7
    %v2423 = vsub.s32 0, %v2422
    %v2424 = vrot.slane %v818, %v2423
    %2426 = vbcast.lane.b32.xlu0 %v2424, 256
    %v2427 = vpop.permute.xlu0 %2426
    %s2429 = sor.u32 256, 8
    %2430 = vbcast.lane.b32.xlu0 %v2424, %s2429
    %v2431 = vpop.permute.xlu0 %2430
    %v2432 = vlaneseq
    %v2433 = vshrl.u32 %v2432, 7
    %v2434 = vsub.s32 1, %v2433
    %v2435 = vrot.slane %v818, %v2434
    %2437 = vbcast.lane.b32.xlu0 %v2435, 256
    %v2438 = vpop.permute.xlu0 %2437
    %s2440 = sor.u32 256, 8
    %2441 = vbcast.lane.b32.xlu0 %v2435, %s2440
    %v2442 = vpop.permute.xlu0 %2441
    %v2443 = vlaneseq
    %v2444 = vshrl.u32 %v2443, 7
    %v2445 = vsub.s32 2, %v2444
    %v2446 = vrot.slane %v818, %v2445
    %2448 = vbcast.lane.b32.xlu0 %v2446, 256
    %v2449 = vpop.permute.xlu0 %2448
    %s2451 = sor.u32 256, 8
    %2452 = vbcast.lane.b32.xlu0 %v2446, %s2451
    %v2453 = vpop.permute.xlu0 %2452
    %v2454 = vlaneseq
    %v2455 = vshrl.u32 %v2454, 7
    %v2456 = vsub.s32 3, %v2455
    %v2457 = vrot.slane %v818, %v2456
    %2459 = vbcast.lane.b32.xlu0 %v2457, 256
    %v2460 = vpop.permute.xlu0 %2459
    %s2462 = sor.u32 256, 8
    %2463 = vbcast.lane.b32.xlu0 %v2457, %s2462
    %v2464 = vpop.permute.xlu0 %2463
    %v2465 = vlaneseq
    %v2466 = vshrl.u32 %v2465, 7
    %v2467 = vsub.s32 0, %v2466
    %v2468 = vrot.slane %v819, %v2467
    %2470 = vbcast.lane.b32.xlu0 %v2468, 256
    %v2471 = vpop.permute.xlu0 %2470
    %s2473 = sor.u32 256, 8
    %2474 = vbcast.lane.b32.xlu0 %v2468, %s2473
    %v2475 = vpop.permute.xlu0 %2474
    %v2476 = vlaneseq
    %v2477 = vshrl.u32 %v2476, 7
    %v2478 = vsub.s32 1, %v2477
    %v2479 = vrot.slane %v819, %v2478
    %2481 = vbcast.lane.b32.xlu0 %v2479, 256
    %v2482 = vpop.permute.xlu0 %2481
    %s2484 = sor.u32 256, 8
    %2485 = vbcast.lane.b32.xlu0 %v2479, %s2484
    %v2486 = vpop.permute.xlu0 %2485
    %v2487 = vlaneseq
    %v2488 = vshrl.u32 %v2487, 7
    %v2489 = vsub.s32 2, %v2488
    %v2490 = vrot.slane %v819, %v2489
    %2492 = vbcast.lane.b32.xlu0 %v2490, 256
    %v2493 = vpop.permute.xlu0 %2492
    %s2495 = sor.u32 256, 8
    %2496 = vbcast.lane.b32.xlu0 %v2490, %s2495
    %v2497 = vpop.permute.xlu0 %2496
    %v2498 = vlaneseq
    %v2499 = vshrl.u32 %v2498, 7
    %v2500 = vsub.s32 3, %v2499
    %v2501 = vrot.slane %v819, %v2500
    %2503 = vbcast.lane.b32.xlu0 %v2501, 256
    %v2504 = vpop.permute.xlu0 %2503
    %s2506 = sor.u32 256, 8
    %2507 = vbcast.lane.b32.xlu0 %v2501, %s2506
    %v2508 = vpop.permute.xlu0 %2507
    %v2509 = vlaneseq
    %v2510 = vshrl.u32 %v2509, 7
    %v2511 = vsub.s32 4, %v2510
    %v2512 = vrot.slane %v819, %v2511
    %2514 = vbcast.lane.b32.xlu0 %v2512, 256
    %v2515 = vpop.permute.xlu0 %2514
    %s2517 = sor.u32 256, 8
    %2518 = vbcast.lane.b32.xlu0 %v2512, %s2517
    %v2519 = vpop.permute.xlu0 %2518
    %v2520 = vlaneseq
    %v2521 = vshrl.u32 %v2520, 7
    %v2522 = vsub.s32 5, %v2521
    %v2523 = vrot.slane %v819, %v2522
    %2525 = vbcast.lane.b32.xlu0 %v2523, 256
    %v2526 = vpop.permute.xlu0 %2525
    %s2528 = sor.u32 256, 8
    %2529 = vbcast.lane.b32.xlu0 %v2523, %s2528
    %v2530 = vpop.permute.xlu0 %2529
    %v2531 = vlaneseq
    %v2532 = vshrl.u32 %v2531, 7
    %v2533 = vsub.s32 6, %v2532
    %v2534 = vrot.slane %v819, %v2533
    %2536 = vbcast.lane.b32.xlu0 %v2534, 256
    %v2537 = vpop.permute.xlu0 %2536
    %s2539 = sor.u32 256, 8
    %2540 = vbcast.lane.b32.xlu0 %v2534, %s2539
    %v2541 = vpop.permute.xlu0 %2540
    %v2542 = vlaneseq
    %v2543 = vshrl.u32 %v2542, 7
    %v2544 = vsub.s32 7, %v2543
    %v2545 = vrot.slane %v819, %v2544
    %2547 = vbcast.lane.b32.xlu0 %v2545, 256
    %v2548 = vpop.permute.xlu0 %2547
    %s2550 = sor.u32 256, 8
    %2551 = vbcast.lane.b32.xlu0 %v2545, %s2550
    %v2552 = vpop.permute.xlu0 %2551
    %v2553 = vlaneseq
    %v2554 = vshrl.u32 %v2553, 7
    %v2555 = vsub.s32 0, %v2554
    %v2556 = vrot.slane %v820, %v2555
    %2558 = vbcast.lane.b32.xlu0 %v2556, 256
    %v2559 = vpop.permute.xlu0 %2558
    %s2561 = sor.u32 256, 8
    %2562 = vbcast.lane.b32.xlu0 %v2556, %s2561
    %v2563 = vpop.permute.xlu0 %2562
    %v2564 = vlaneseq
    %v2565 = vshrl.u32 %v2564, 7
    %v2566 = vsub.s32 1, %v2565
    %v2567 = vrot.slane %v820, %v2566
    %2569 = vbcast.lane.b32.xlu0 %v2567, 256
    %v2570 = vpop.permute.xlu0 %2569
    %s2572 = sor.u32 256, 8
    %2573 = vbcast.lane.b32.xlu0 %v2567, %s2572
    %v2574 = vpop.permute.xlu0 %2573
    %v2575 = vlaneseq
    %v2576 = vshrl.u32 %v2575, 7
    %v2577 = vsub.s32 2, %v2576
    %v2578 = vrot.slane %v820, %v2577
    %2580 = vbcast.lane.b32.xlu0 %v2578, 256
    %v2581 = vpop.permute.xlu0 %2580
    %s2583 = sor.u32 256, 8
    %2584 = vbcast.lane.b32.xlu0 %v2578, %s2583
    %v2585 = vpop.permute.xlu0 %2584
    %v2586 = vlaneseq
    %v2587 = vshrl.u32 %v2586, 7
    %v2588 = vsub.s32 3, %v2587
    %v2589 = vrot.slane %v820, %v2588
    %2591 = vbcast.lane.b32.xlu0 %v2589, 256
    %v2592 = vpop.permute.xlu0 %2591
    %s2594 = sor.u32 256, 8
    %2595 = vbcast.lane.b32.xlu0 %v2589, %s2594
    %v2596 = vpop.permute.xlu0 %2595
    %s2598 = sor.u32 256, 1
    %2599 = vbcast.lane.b32.xlu0 %v2336, %s2598
    %v2600 = vpop.permute.xlu0 %2599
    %s2602 = sor.u32 256, 9
    %2603 = vbcast.lane.b32.xlu0 %v2336, %s2602
    %v2604 = vpop.permute.xlu0 %2603
    %s2606 = sor.u32 256, 1
    %2607 = vbcast.lane.b32.xlu0 %v2347, %s2606
    %v2608 = vpop.permute.xlu0 %2607
    %s2610 = sor.u32 256, 9
    %2611 = vbcast.lane.b32.xlu0 %v2347, %s2610
    %v2612 = vpop.permute.xlu0 %2611
    %s2614 = sor.u32 256, 1
    %2615 = vbcast.lane.b32.xlu0 %v2358, %s2614
    %v2616 = vpop.permute.xlu0 %2615
    %s2618 = sor.u32 256, 9
    %2619 = vbcast.lane.b32.xlu0 %v2358, %s2618
    %v2620 = vpop.permute.xlu0 %2619
    %s2622 = sor.u32 256, 1
    %2623 = vbcast.lane.b32.xlu0 %v2369, %s2622
    %v2624 = vpop.permute.xlu0 %2623
    %s2626 = sor.u32 256, 9
    %2627 = vbcast.lane.b32.xlu0 %v2369, %s2626
    %v2628 = vpop.permute.xlu0 %2627
    %s2630 = sor.u32 256, 1
    %2631 = vbcast.lane.b32.xlu0 %v2380, %s2630
    %v2632 = vpop.permute.xlu0 %2631
    %s2634 = sor.u32 256, 9
    %2635 = vbcast.lane.b32.xlu0 %v2380, %s2634
    %v2636 = vpop.permute.xlu0 %2635
    %s2638 = sor.u32 256, 1
    %2639 = vbcast.lane.b32.xlu0 %v2391, %s2638
    %v2640 = vpop.permute.xlu0 %2639
    %s2642 = sor.u32 256, 9
    %2643 = vbcast.lane.b32.xlu0 %v2391, %s2642
    %v2644 = vpop.permute.xlu0 %2643
    %s2646 = sor.u32 256, 1
    %2647 = vbcast.lane.b32.xlu0 %v2402, %s2646
    %v2648 = vpop.permute.xlu0 %2647
    %s2650 = sor.u32 256, 9
    %2651 = vbcast.lane.b32.xlu0 %v2402, %s2650
    %v2652 = vpop.permute.xlu0 %2651
    %s2654 = sor.u32 256, 1
    %2655 = vbcast.lane.b32.xlu0 %v2413, %s2654
    %v2656 = vpop.permute.xlu0 %2655
    %s2658 = sor.u32 256, 9
    %2659 = vbcast.lane.b32.xlu0 %v2413, %s2658
    %v2660 = vpop.permute.xlu0 %2659
    %s2662 = sor.u32 256, 1
    %2663 = vbcast.lane.b32.xlu0 %v2424, %s2662
    %v2664 = vpop.permute.xlu0 %2663
    %s2666 = sor.u32 256, 9
    %2667 = vbcast.lane.b32.xlu0 %v2424, %s2666
    %v2668 = vpop.permute.xlu0 %2667
    %s2670 = sor.u32 256, 1
    %2671 = vbcast.lane.b32.xlu0 %v2435, %s2670
    %v2672 = vpop.permute.xlu0 %2671
    %s2674 = sor.u32 256, 9
    %2675 = vbcast.lane.b32.xlu0 %v2435, %s2674
    %v2676 = vpop.permute.xlu0 %2675
    %s2678 = sor.u32 256, 1
    %2679 = vbcast.lane.b32.xlu0 %v2446, %s2678
    %v2680 = vpop.permute.xlu0 %2679
    %s2682 = sor.u32 256, 9
    %2683 = vbcast.lane.b32.xlu0 %v2446, %s2682
    %v2684 = vpop.permute.xlu0 %2683
    %s2686 = sor.u32 256, 1
    %2687 = vbcast.lane.b32.xlu0 %v2457, %s2686
    %v2688 = vpop.permute.xlu0 %2687
    %s2690 = sor.u32 256, 9
    %2691 = vbcast.lane.b32.xlu0 %v2457, %s2690
    %v2692 = vpop.permute.xlu0 %2691
    %s2694 = sor.u32 256, 1
    %2695 = vbcast.lane.b32.xlu0 %v2468, %s2694
    %v2696 = vpop.permute.xlu0 %2695
    %s2698 = sor.u32 256, 9
    %2699 = vbcast.lane.b32.xlu0 %v2468, %s2698
    %v2700 = vpop.permute.xlu0 %2699
    %s2702 = sor.u32 256, 1
    %2703 = vbcast.lane.b32.xlu0 %v2479, %s2702
    %v2704 = vpop.permute.xlu0 %2703
    %s2706 = sor.u32 256, 9
    %2707 = vbcast.lane.b32.xlu0 %v2479, %s2706
    %v2708 = vpop.permute.xlu0 %2707
    %s2710 = sor.u32 256, 1
    %2711 = vbcast.lane.b32.xlu0 %v2490, %s2710
    %v2712 = vpop.permute.xlu0 %2711
    %s2714 = sor.u32 256, 9
    %2715 = vbcast.lane.b32.xlu0 %v2490, %s2714
    %v2716 = vpop.permute.xlu0 %2715
    %s2718 = sor.u32 256, 1
    %2719 = vbcast.lane.b32.xlu0 %v2501, %s2718
    %v2720 = vpop.permute.xlu0 %2719
    %s2722 = sor.u32 256, 9
    %2723 = vbcast.lane.b32.xlu0 %v2501, %s2722
    %v2724 = vpop.permute.xlu0 %2723
    %s2726 = sor.u32 256, 1
    %2727 = vbcast.lane.b32.xlu0 %v2512, %s2726
    %v2728 = vpop.permute.xlu0 %2727
    %s2730 = sor.u32 256, 9
    %2731 = vbcast.lane.b32.xlu0 %v2512, %s2730
    %v2732 = vpop.permute.xlu0 %2731
    %s2734 = sor.u32 256, 1
    %2735 = vbcast.lane.b32.xlu0 %v2523, %s2734
    %v2736 = vpop.permute.xlu0 %2735
    %s2738 = sor.u32 256, 9
    %2739 = vbcast.lane.b32.xlu0 %v2523, %s2738
    %v2740 = vpop.permute.xlu0 %2739
    %s2742 = sor.u32 256, 1
    %2743 = vbcast.lane.b32.xlu0 %v2534, %s2742
    %v2744 = vpop.permute.xlu0 %2743
    %s2746 = sor.u32 256, 9
    %2747 = vbcast.lane.b32.xlu0 %v2534, %s2746
    %v2748 = vpop.permute.xlu0 %2747
    %s2750 = sor.u32 256, 1
    %2751 = vbcast.lane.b32.xlu0 %v2545, %s2750
    %v2752 = vpop.permute.xlu0 %2751
    %s2754 = sor.u32 256, 9
    %2755 = vbcast.lane.b32.xlu0 %v2545, %s2754
    %v2756 = vpop.permute.xlu0 %2755
    %s2758 = sor.u32 256, 1
    %2759 = vbcast.lane.b32.xlu0 %v2556, %s2758
    %v2760 = vpop.permute.xlu0 %2759
    %s2762 = sor.u32 256, 9
    %2763 = vbcast.lane.b32.xlu0 %v2556, %s2762
    %v2764 = vpop.permute.xlu0 %2763
    %s2766 = sor.u32 256, 1
    %2767 = vbcast.lane.b32.xlu0 %v2567, %s2766
    %v2768 = vpop.permute.xlu0 %2767
    %s2770 = sor.u32 256, 9
    %2771 = vbcast.lane.b32.xlu0 %v2567, %s2770
    %v2772 = vpop.permute.xlu0 %2771
    %s2774 = sor.u32 256, 1
    %2775 = vbcast.lane.b32.xlu0 %v2578, %s2774
    %v2776 = vpop.permute.xlu0 %2775
    %s2778 = sor.u32 256, 9
    %2779 = vbcast.lane.b32.xlu0 %v2578, %s2778
    %v2780 = vpop.permute.xlu0 %2779
    %s2782 = sor.u32 256, 1
    %2783 = vbcast.lane.b32.xlu0 %v2589, %s2782
    %v2784 = vpop.permute.xlu0 %2783
    %s2786 = sor.u32 256, 9
    %2787 = vbcast.lane.b32.xlu0 %v2589, %s2786
    %v2788 = vpop.permute.xlu0 %2787
    %s2790 = sor.u32 256, 2
    %2791 = vbcast.lane.b32.xlu0 %v2336, %s2790
    %v2792 = vpop.permute.xlu0 %2791
    %s2794 = sor.u32 256, 10
    %2795 = vbcast.lane.b32.xlu0 %v2336, %s2794
    %v2796 = vpop.permute.xlu0 %2795
    %s2798 = sor.u32 256, 2
    %2799 = vbcast.lane.b32.xlu0 %v2347, %s2798
    %v2800 = vpop.permute.xlu0 %2799
    %s2802 = sor.u32 256, 10
    %2803 = vbcast.lane.b32.xlu0 %v2347, %s2802
    %v2804 = vpop.permute.xlu0 %2803
    %s2806 = sor.u32 256, 2
    %2807 = vbcast.lane.b32.xlu0 %v2358, %s2806
    %v2808 = vpop.permute.xlu0 %2807
    %s2810 = sor.u32 256, 10
    %2811 = vbcast.lane.b32.xlu0 %v2358, %s2810
    %v2812 = vpop.permute.xlu0 %2811
    %s2814 = sor.u32 256, 2
    %2815 = vbcast.lane.b32.xlu0 %v2369, %s2814
    %v2816 = vpop.permute.xlu0 %2815
    %s2818 = sor.u32 256, 10
    %2819 = vbcast.lane.b32.xlu0 %v2369, %s2818
    %v2820 = vpop.permute.xlu0 %2819
    %s2822 = sor.u32 256, 2
    %2823 = vbcast.lane.b32.xlu0 %v2380, %s2822
    %v2824 = vpop.permute.xlu0 %2823
    %s2826 = sor.u32 256, 10
    %2827 = vbcast.lane.b32.xlu0 %v2380, %s2826
    %v2828 = vpop.permute.xlu0 %2827
    %s2830 = sor.u32 256, 2
    %2831 = vbcast.lane.b32.xlu0 %v2391, %s2830
    %v2832 = vpop.permute.xlu0 %2831
    %s2834 = sor.u32 256, 10
    %2835 = vbcast.lane.b32.xlu0 %v2391, %s2834
    %v2836 = vpop.permute.xlu0 %2835
    %s2838 = sor.u32 256, 2
    %2839 = vbcast.lane.b32.xlu0 %v2402, %s2838
    %v2840 = vpop.permute.xlu0 %2839
    %s2842 = sor.u32 256, 10
    %2843 = vbcast.lane.b32.xlu0 %v2402, %s2842
    %v2844 = vpop.permute.xlu0 %2843
    %s2846 = sor.u32 256, 2
    %2847 = vbcast.lane.b32.xlu0 %v2413, %s2846
    %v2848 = vpop.permute.xlu0 %2847
    %s2850 = sor.u32 256, 10
    %2851 = vbcast.lane.b32.xlu0 %v2413, %s2850
    %v2852 = vpop.permute.xlu0 %2851
    %s2854 = sor.u32 256, 2
    %2855 = vbcast.lane.b32.xlu0 %v2424, %s2854
    %v2856 = vpop.permute.xlu0 %2855
    %s2858 = sor.u32 256, 10
    %2859 = vbcast.lane.b32.xlu0 %v2424, %s2858
    %v2860 = vpop.permute.xlu0 %2859
    %s2862 = sor.u32 256, 2
    %2863 = vbcast.lane.b32.xlu0 %v2435, %s2862
    %v2864 = vpop.permute.xlu0 %2863
    %s2866 = sor.u32 256, 10
    %2867 = vbcast.lane.b32.xlu0 %v2435, %s2866
    %v2868 = vpop.permute.xlu0 %2867
    %s2870 = sor.u32 256, 2
    %2871 = vbcast.lane.b32.xlu0 %v2446, %s2870
    %v2872 = vpop.permute.xlu0 %2871
    %s2874 = sor.u32 256, 10
    %2875 = vbcast.lane.b32.xlu0 %v2446, %s2874
    %v2876 = vpop.permute.xlu0 %2875
    %s2878 = sor.u32 256, 2
    %2879 = vbcast.lane.b32.xlu0 %v2457, %s2878
    %v2880 = vpop.permute.xlu0 %2879
    %s2882 = sor.u32 256, 10
    %2883 = vbcast.lane.b32.xlu0 %v2457, %s2882
    %v2884 = vpop.permute.xlu0 %2883
    %s2886 = sor.u32 256, 2
    %2887 = vbcast.lane.b32.xlu0 %v2468, %s2886
    %v2888 = vpop.permute.xlu0 %2887
    %s2890 = sor.u32 256, 10
    %2891 = vbcast.lane.b32.xlu0 %v2468, %s2890
    %v2892 = vpop.permute.xlu0 %2891
    %s2894 = sor.u32 256, 2
    %2895 = vbcast.lane.b32.xlu0 %v2479, %s2894
    %v2896 = vpop.permute.xlu0 %2895
    %s2898 = sor.u32 256, 10
    %2899 = vbcast.lane.b32.xlu0 %v2479, %s2898
    %v2900 = vpop.permute.xlu0 %2899
    %s2902 = sor.u32 256, 2
    %2903 = vbcast.lane.b32.xlu0 %v2490, %s2902
    %v2904 = vpop.permute.xlu0 %2903
    %s2906 = sor.u32 256, 10
    %2907 = vbcast.lane.b32.xlu0 %v2490, %s2906
    %v2908 = vpop.permute.xlu0 %2907
    %s2910 = sor.u32 256, 2
    %2911 = vbcast.lane.b32.xlu0 %v2501, %s2910
    %v2912 = vpop.permute.xlu0 %2911
    %s2914 = sor.u32 256, 10
    %2915 = vbcast.lane.b32.xlu0 %v2501, %s2914
    %v2916 = vpop.permute.xlu0 %2915
    %s2918 = sor.u32 256, 2
    %2919 = vbcast.lane.b32.xlu0 %v2512, %s2918
    %v2920 = vpop.permute.xlu0 %2919
    %s2922 = sor.u32 256, 10
    %2923 = vbcast.lane.b32.xlu0 %v2512, %s2922
    %v2924 = vpop.permute.xlu0 %2923
    %s2926 = sor.u32 256, 2
    %2927 = vbcast.lane.b32.xlu0 %v2523, %s2926
    %v2928 = vpop.permute.xlu0 %2927
    %s2930 = sor.u32 256, 10
    %2931 = vbcast.lane.b32.xlu0 %v2523, %s2930
    %v2932 = vpop.permute.xlu0 %2931
    %s2934 = sor.u32 256, 2
    %2935 = vbcast.lane.b32.xlu0 %v2534, %s2934
    %v2936 = vpop.permute.xlu0 %2935
    %s2938 = sor.u32 256, 10
    %2939 = vbcast.lane.b32.xlu0 %v2534, %s2938
    %v2940 = vpop.permute.xlu0 %2939
    %s2942 = sor.u32 256, 2
    %2943 = vbcast.lane.b32.xlu0 %v2545, %s2942
    %v2944 = vpop.permute.xlu0 %2943
    %s2946 = sor.u32 256, 10
    %2947 = vbcast.lane.b32.xlu0 %v2545, %s2946
    %v2948 = vpop.permute.xlu0 %2947
    %s2950 = sor.u32 256, 2
    %2951 = vbcast.lane.b32.xlu0 %v2556, %s2950
    %v2952 = vpop.permute.xlu0 %2951
    %s2954 = sor.u32 256, 10
    %2955 = vbcast.lane.b32.xlu0 %v2556, %s2954
    %v2956 = vpop.permute.xlu0 %2955
    %s2958 = sor.u32 256, 2
    %2959 = vbcast.lane.b32.xlu0 %v2567, %s2958
    %v2960 = vpop.permute.xlu0 %2959
    %s2962 = sor.u32 256, 10
    %2963 = vbcast.lane.b32.xlu0 %v2567, %s2962
    %v2964 = vpop.permute.xlu0 %2963
    %s2966 = sor.u32 256, 2
    %2967 = vbcast.lane.b32.xlu0 %v2578, %s2966
    %v2968 = vpop.permute.xlu0 %2967
    %s2970 = sor.u32 256, 10
    %2971 = vbcast.lane.b32.xlu0 %v2578, %s2970
    %v2972 = vpop.permute.xlu0 %2971
    %s2974 = sor.u32 256, 2
    %2975 = vbcast.lane.b32.xlu0 %v2589, %s2974
    %v2976 = vpop.permute.xlu0 %2975
    %s2978 = sor.u32 256, 10
    %2979 = vbcast.lane.b32.xlu0 %v2589, %s2978
    %v2980 = vpop.permute.xlu0 %2979
    %v2981 = vlaneseq
    %v2982 = vshrl.u32 %v2981, 7
    %v2983 = vsub.s32 4, %v2982
    %v2984 = vrot.slane %v818, %v2983
    %2986 = vbcast.lane.b32.xlu0 %v2984, 256
    %v2987 = vpop.permute.xlu0 %2986
    %s2989 = sor.u32 256, 8
    %2990 = vbcast.lane.b32.xlu0 %v2984, %s2989
    %v2991 = vpop.permute.xlu0 %2990
    %v2992 = vlaneseq
    %v2993 = vshrl.u32 %v2992, 7
    %v2994 = vsub.s32 4, %v2993
    %v2995 = vrot.slane %v820, %v2994
    %2997 = vbcast.lane.b32.xlu0 %v2995, 256
    %v2998 = vpop.permute.xlu0 %2997
    %s3000 = sor.u32 256, 8
    %3001 = vbcast.lane.b32.xlu0 %v2995, %s3000
    %v3002 = vpop.permute.xlu0 %3001
    %s3004 = sor.u32 256, 1
    %3005 = vbcast.lane.b32.xlu0 %v2984, %s3004
    %v3006 = vpop.permute.xlu0 %3005
    %s3008 = sor.u32 256, 9
    %3009 = vbcast.lane.b32.xlu0 %v2984, %s3008
    %v3010 = vpop.permute.xlu0 %3009
    %s3012 = sor.u32 256, 1
    %3013 = vbcast.lane.b32.xlu0 %v2995, %s3012
    %v3014 = vpop.permute.xlu0 %3013
    %s3016 = sor.u32 256, 9
    %3017 = vbcast.lane.b32.xlu0 %v2995, %s3016
    %v3018 = vpop.permute.xlu0 %3017
    %s3020 = sor.u32 256, 2
    %3021 = vbcast.lane.b32.xlu0 %v2984, %s3020
    %v3022 = vpop.permute.xlu0 %3021
    %s3024 = sor.u32 256, 10
    %3025 = vbcast.lane.b32.xlu0 %v2984, %s3024
    %v3026 = vpop.permute.xlu0 %3025
    %s3028 = sor.u32 256, 2
    %3029 = vbcast.lane.b32.xlu0 %v2995, %s3028
    %v3030 = vpop.permute.xlu0 %3029
    %s3032 = sor.u32 256, 10
    %3033 = vbcast.lane.b32.xlu0 %v2995, %s3032
    %v3034 = vpop.permute.xlu0 %3033
    %v3035 = vlaneseq
    %v3036 = vshrl.u32 %v3035, 7
    %v3037 = vsub.s32 5, %v3036
    %v3038 = vrot.slane %v818, %v3037
    %3040 = vbcast.lane.b32.xlu0 %v3038, 256
    %v3041 = vpop.permute.xlu0 %3040
    %s3043 = sor.u32 256, 8
    %3044 = vbcast.lane.b32.xlu0 %v3038, %s3043
    %v3045 = vpop.permute.xlu0 %3044
    %v3046 = vlaneseq
    %v3047 = vshrl.u32 %v3046, 7
    %v3048 = vsub.s32 5, %v3047
    %v3049 = vrot.slane %v820, %v3048
    %3051 = vbcast.lane.b32.xlu0 %v3049, 256
    %v3052 = vpop.permute.xlu0 %3051
    %s3054 = sor.u32 256, 8
    %3055 = vbcast.lane.b32.xlu0 %v3049, %s3054
    %v3056 = vpop.permute.xlu0 %3055
    %s3058 = sor.u32 256, 1
    %3059 = vbcast.lane.b32.xlu0 %v3038, %s3058
    %v3060 = vpop.permute.xlu0 %3059
    %s3062 = sor.u32 256, 9
    %3063 = vbcast.lane.b32.xlu0 %v3038, %s3062
    %v3064 = vpop.permute.xlu0 %3063
    %s3066 = sor.u32 256, 1
    %3067 = vbcast.lane.b32.xlu0 %v3049, %s3066
    %v3068 = vpop.permute.xlu0 %3067
    %s3070 = sor.u32 256, 9
    %3071 = vbcast.lane.b32.xlu0 %v3049, %s3070
    %v3072 = vpop.permute.xlu0 %3071
    %s3074 = sor.u32 256, 2
    %3075 = vbcast.lane.b32.xlu0 %v3038, %s3074
    %v3076 = vpop.permute.xlu0 %3075
    %s3078 = sor.u32 256, 10
    %3079 = vbcast.lane.b32.xlu0 %v3038, %s3078
    %v3080 = vpop.permute.xlu0 %3079
    %s3082 = sor.u32 256, 2
    %3083 = vbcast.lane.b32.xlu0 %v3049, %s3082
    %v3084 = vpop.permute.xlu0 %3083
    %s3086 = sor.u32 256, 10
    %3087 = vbcast.lane.b32.xlu0 %v3049, %s3086
    %v3088 = vpop.permute.xlu0 %3087
    %vm3089 = vcmask 7168
    %v3090 = vsel %vm3089, %v827, %v1088
    %v3091 = vsel %vm3089, %v831, %v1092
    %v3092 = vsel %vm3089, %v838, %v1096
    %v3093 = vsel %vm3089, %v842, %v1100
    %v3094 = vsel %vm3089, %v849, %v1104
    %v3095 = vsel %vm3089, %v853, %v1108
    %v3096 = vsel %vm3089, %v860, %v1112
    %v3097 = vsel %vm3089, %v864, %v1116
    %v3098 = vsel %vm3089, %v871, %v1120
    %v3099 = vsel %vm3089, %v875, %v1124
    %v3100 = vsel %vm3089, %v882, %v1128
    %v3101 = vsel %vm3089, %v886, %v1132
    %v3102 = vsel %vm3089, %v893, %v1136
    %v3103 = vsel %vm3089, %v897, %v1140
    %v3104 = vsel %vm3089, %v904, %v1144
    %v3105 = vsel %vm3089, %v908, %v1148
    %v3106 = vsel %vm3089, %v915, %v1152
    %v3107 = vsel %vm3089, %v919, %v1156
    %v3108 = vsel %vm3089, %v926, %v1160
    %v3109 = vsel %vm3089, %v930, %v1164
    %v3110 = vsel %vm3089, %v937, %v1168
    %v3111 = vsel %vm3089, %v941, %v1172
    %v3112 = vsel %vm3089, %v948, %v1176
    %v3113 = vsel %vm3089, %v952, %v1180
    %v3114 = vsel %vm3089, %v959, %v1184
    %v3115 = vsel %vm3089, %v963, %v1188
    %v3116 = vsel %vm3089, %v970, %v1192
    %v3117 = vsel %vm3089, %v974, %v1196
    %v3118 = vsel %vm3089, %v981, %v1200
    %v3119 = vsel %vm3089, %v985, %v1204
    %v3120 = vsel %vm3089, %v992, %v1208
    %v3121 = vsel %vm3089, %v996, %v1212
    %v3122 = vsel %vm3089, %v1003, %v1216
    %v3123 = vsel %vm3089, %v1007, %v1220
    %v3124 = vsel %vm3089, %v1014, %v1224
    %v3125 = vsel %vm3089, %v1018, %v1228
    %v3126 = vsel %vm3089, %v1025, %v1232
    %v3127 = vsel %vm3089, %v1029, %v1236
    %v3128 = vsel %vm3089, %v1036, %v1240
    %v3129 = vsel %vm3089, %v1040, %v1244
    %v3130 = vsel %vm3089, %v1047, %v1248
    %v3131 = vsel %vm3089, %v1051, %v1252
    %v3132 = vsel %vm3089, %v1058, %v1256
    %v3133 = vsel %vm3089, %v1062, %v1260
    %v3134 = vsel %vm3089, %v1069, %v1264
    %v3135 = vsel %vm3089, %v1073, %v1268
    %v3136 = vsel %vm3089, %v1080, %v1272
    %v3137 = vsel %vm3089, %v1084, %v1276
    %vm3138 = vcmask 15360
    %v3139 = vsel %vm3138, %v3090, %v1280
    %v3140 = vsel %vm3138, %v3091, %v1284
    %v3141 = vsel %vm3138, %v3092, %v1288
    %v3142 = vsel %vm3138, %v3093, %v1292
    %v3143 = vsel %vm3138, %v3094, %v1296
    %v3144 = vsel %vm3138, %v3095, %v1300
    %v3145 = vsel %vm3138, %v3096, %v1304
    %v3146 = vsel %vm3138, %v3097, %v1308
    %v3147 = vsel %vm3138, %v3098, %v1312
    %v3148 = vsel %vm3138, %v3099, %v1316
    %v3149 = vsel %vm3138, %v3100, %v1320
    %v3150 = vsel %vm3138, %v3101, %v1324
    %v3151 = vsel %vm3138, %v3102, %v1328
    %v3152 = vsel %vm3138, %v3103, %v1332
    %v3153 = vsel %vm3138, %v3104, %v1336
    %v3154 = vsel %vm3138, %v3105, %v1340
    %v3155 = vsel %vm3138, %v3106, %v1344
    %v3156 = vsel %vm3138, %v3107, %v1348
    %v3157 = vsel %vm3138, %v3108, %v1352
    %v3158 = vsel %vm3138, %v3109, %v1356
    %v3159 = vsel %vm3138, %v3110, %v1360
    %v3160 = vsel %vm3138, %v3111, %v1364
    %v3161 = vsel %vm3138, %v3112, %v1368
    %v3162 = vsel %vm3138, %v3113, %v1372
    %v3163 = vsel %vm3138, %v3114, %v1376
    %v3164 = vsel %vm3138, %v3115, %v1380
    %v3165 = vsel %vm3138, %v3116, %v1384
    %v3166 = vsel %vm3138, %v3117, %v1388
    %v3167 = vsel %vm3138, %v3118, %v1392
    %v3168 = vsel %vm3138, %v3119, %v1396
    %v3169 = vsel %vm3138, %v3120, %v1400
    %v3170 = vsel %vm3138, %v3121, %v1404
    %v3171 = vsel %vm3138, %v3122, %v1408
    %v3172 = vsel %vm3138, %v3123, %v1412
    %v3173 = vsel %vm3138, %v3124, %v1416
    %v3174 = vsel %vm3138, %v3125, %v1420
    %v3175 = vsel %vm3138, %v3126, %v1424
    %v3176 = vsel %vm3138, %v3127, %v1428
    %v3177 = vsel %vm3138, %v3128, %v1432
    %v3178 = vsel %vm3138, %v3129, %v1436
    %v3179 = vsel %vm3138, %v3130, %v1440
    %v3180 = vsel %vm3138, %v3131, %v1444
    %v3181 = vsel %vm3138, %v3132, %v1448
    %v3182 = vsel %vm3138, %v3133, %v1452
    %v3183 = vsel %vm3138, %v3134, %v1456
    %v3184 = vsel %vm3138, %v3135, %v1460
    %v3185 = vsel %vm3138, %v3136, %v1464
    %v3186 = vsel %vm3138, %v3137, %v1468
    %vm3187 = vcmask 23552
    %v3188 = vsel %vm3187, %v3139, %v838
    %v3189 = vsel %vm3187, %v3140, %v842
    %v3190 = vsel %vm3187, %v3141, %v849
    %v3191 = vsel %vm3187, %v3142, %v853
    %v3192 = vsel %vm3187, %v3143, %v860
    %v3193 = vsel %vm3187, %v3144, %v864
    %v3194 = vsel %vm3187, %v3145, %v871
    %v3195 = vsel %vm3187, %v3146, %v875
    %v3196 = vsel %vm3187, %v3147, %v882
    %v3197 = vsel %vm3187, %v3148, %v886
    %v3198 = vsel %vm3187, %v3149, %v893
    %v3199 = vsel %vm3187, %v3150, %v897
    %v3200 = vsel %vm3187, %v3151, %v904
    %v3201 = vsel %vm3187, %v3152, %v908
    %v3202 = vsel %vm3187, %v3153, %v915
    %v3203 = vsel %vm3187, %v3154, %v919
    %v3204 = vsel %vm3187, %v3155, %v926
    %v3205 = vsel %vm3187, %v3156, %v930
    %v3206 = vsel %vm3187, %v3157, %v937
    %v3207 = vsel %vm3187, %v3158, %v941
    %v3208 = vsel %vm3187, %v3159, %v948
    %v3209 = vsel %vm3187, %v3160, %v952
    %v3210 = vsel %vm3187, %v3161, %v1475
    %v3211 = vsel %vm3187, %v3162, %v1479
    %v3212 = vsel %vm3187, %v3163, %v970
    %v3213 = vsel %vm3187, %v3164, %v974
    %v3214 = vsel %vm3187, %v3165, %v981
    %v3215 = vsel %vm3187, %v3166, %v985
    %v3216 = vsel %vm3187, %v3167, %v992
    %v3217 = vsel %vm3187, %v3168, %v996
    %v3218 = vsel %vm3187, %v3169, %v1003
    %v3219 = vsel %vm3187, %v3170, %v1007
    %v3220 = vsel %vm3187, %v3171, %v1014
    %v3221 = vsel %vm3187, %v3172, %v1018
    %v3222 = vsel %vm3187, %v3173, %v1025
    %v3223 = vsel %vm3187, %v3174, %v1029
    %v3224 = vsel %vm3187, %v3175, %v1036
    %v3225 = vsel %vm3187, %v3176, %v1040
    %v3226 = vsel %vm3187, %v3177, %v1047
    %v3227 = vsel %vm3187, %v3178, %v1051
    %v3228 = vsel %vm3187, %v3179, %v1058
    %v3229 = vsel %vm3187, %v3180, %v1062
    %v3230 = vsel %vm3187, %v3181, %v1069
    %v3231 = vsel %vm3187, %v3182, %v1073
    %v3232 = vsel %vm3187, %v3183, %v1080
    %v3233 = vsel %vm3187, %v3184, %v1084
    %v3234 = vsel %vm3187, %v3185, %v1486
    %v3235 = vsel %vm3187, %v3186, %v1490
    %vm3236 = vcmask 31744
    %v3237 = vsel %vm3236, %v3188, %v1096
    %v3238 = vsel %vm3236, %v3189, %v1100
    %v3239 = vsel %vm3236, %v3190, %v1104
    %v3240 = vsel %vm3236, %v3191, %v1108
    %v3241 = vsel %vm3236, %v3192, %v1112
    %v3242 = vsel %vm3236, %v3193, %v1116
    %v3243 = vsel %vm3236, %v3194, %v1120
    %v3244 = vsel %vm3236, %v3195, %v1124
    %v3245 = vsel %vm3236, %v3196, %v1128
    %v3246 = vsel %vm3236, %v3197, %v1132
    %v3247 = vsel %vm3236, %v3198, %v1136
    %v3248 = vsel %vm3236, %v3199, %v1140
    %v3249 = vsel %vm3236, %v3200, %v1144
    %v3250 = vsel %vm3236, %v3201, %v1148
    %v3251 = vsel %vm3236, %v3202, %v1152
    %v3252 = vsel %vm3236, %v3203, %v1156
    %v3253 = vsel %vm3236, %v3204, %v1160
    %v3254 = vsel %vm3236, %v3205, %v1164
    %v3255 = vsel %vm3236, %v3206, %v1168
    %v3256 = vsel %vm3236, %v3207, %v1172
    %v3257 = vsel %vm3236, %v3208, %v1176
    %v3258 = vsel %vm3236, %v3209, %v1180
    %v3259 = vsel %vm3236, %v3210, %v1494
    %v3260 = vsel %vm3236, %v3211, %v1498
    %v3261 = vsel %vm3236, %v3212, %v1192
    %v3262 = vsel %vm3236, %v3213, %v1196
    %v3263 = vsel %vm3236, %v3214, %v1200
    %v3264 = vsel %vm3236, %v3215, %v1204
    %v3265 = vsel %vm3236, %v3216, %v1208
    %v3266 = vsel %vm3236, %v3217, %v1212
    %v3267 = vsel %vm3236, %v3218, %v1216
    %v3268 = vsel %vm3236, %v3219, %v1220
    %v3269 = vsel %vm3236, %v3220, %v1224
    %v3270 = vsel %vm3236, %v3221, %v1228
    %v3271 = vsel %vm3236, %v3222, %v1232
    %v3272 = vsel %vm3236, %v3223, %v1236
    %v3273 = vsel %vm3236, %v3224, %v1240
    %v3274 = vsel %vm3236, %v3225, %v1244
    %v3275 = vsel %vm3236, %v3226, %v1248
    %v3276 = vsel %vm3236, %v3227, %v1252
    %v3277 = vsel %vm3236, %v3228, %v1256
    %v3278 = vsel %vm3236, %v3229, %v1260
    %v3279 = vsel %vm3236, %v3230, %v1264
    %v3280 = vsel %vm3236, %v3231, %v1268
    %v3281 = vsel %vm3236, %v3232, %v1272
    %v3282 = vsel %vm3236, %v3233, %v1276
    %v3283 = vsel %vm3236, %v3234, %v1502
    %v3284 = vsel %vm3236, %v3235, %v1506
    %vm3285 = vcmask 39936
    %v3286 = vsel %vm3285, %v3237, %v1288
    %v3287 = vsel %vm3285, %v3238, %v1292
    %v3288 = vsel %vm3285, %v3239, %v1296
    %v3289 = vsel %vm3285, %v3240, %v1300
    %v3290 = vsel %vm3285, %v3241, %v1304
    %v3291 = vsel %vm3285, %v3242, %v1308
    %v3292 = vsel %vm3285, %v3243, %v1312
    %v3293 = vsel %vm3285, %v3244, %v1316
    %v3294 = vsel %vm3285, %v3245, %v1320
    %v3295 = vsel %vm3285, %v3246, %v1324
    %v3296 = vsel %vm3285, %v3247, %v1328
    %v3297 = vsel %vm3285, %v3248, %v1332
    %v3298 = vsel %vm3285, %v3249, %v1336
    %v3299 = vsel %vm3285, %v3250, %v1340
    %v3300 = vsel %vm3285, %v3251, %v1344
    %v3301 = vsel %vm3285, %v3252, %v1348
    %v3302 = vsel %vm3285, %v3253, %v1352
    %v3303 = vsel %vm3285, %v3254, %v1356
    %v3304 = vsel %vm3285, %v3255, %v1360
    %v3305 = vsel %vm3285, %v3256, %v1364
    %v3306 = vsel %vm3285, %v3257, %v1368
    %v3307 = vsel %vm3285, %v3258, %v1372
    %v3308 = vsel %vm3285, %v3259, %v1510
    %v3309 = vsel %vm3285, %v3260, %v1514
    %v3310 = vsel %vm3285, %v3261, %v1384
    %v3311 = vsel %vm3285, %v3262, %v1388
    %v3312 = vsel %vm3285, %v3263, %v1392
    %v3313 = vsel %vm3285, %v3264, %v1396
    %v3314 = vsel %vm3285, %v3265, %v1400
    %v3315 = vsel %vm3285, %v3266, %v1404
    %v3316 = vsel %vm3285, %v3267, %v1408
    %v3317 = vsel %vm3285, %v3268, %v1412
    %v3318 = vsel %vm3285, %v3269, %v1416
    %v3319 = vsel %vm3285, %v3270, %v1420
    %v3320 = vsel %vm3285, %v3271, %v1424
    %v3321 = vsel %vm3285, %v3272, %v1428
    %v3322 = vsel %vm3285, %v3273, %v1432
    %v3323 = vsel %vm3285, %v3274, %v1436
    %v3324 = vsel %vm3285, %v3275, %v1440
    %v3325 = vsel %vm3285, %v3276, %v1444
    %v3326 = vsel %vm3285, %v3277, %v1448
    %v3327 = vsel %vm3285, %v3278, %v1452
    %v3328 = vsel %vm3285, %v3279, %v1456
    %v3329 = vsel %vm3285, %v3280, %v1460
    %v3330 = vsel %vm3285, %v3281, %v1464
    %v3331 = vsel %vm3285, %v3282, %v1468
    %v3332 = vsel %vm3285, %v3283, %v1518
    %v3333 = vsel %vm3285, %v3284, %v1522
    %vm3334 = vcmask 48128
    %v3335 = vsel %vm3334, %v3286, %v849
    %v3336 = vsel %vm3334, %v3287, %v853
    %v3337 = vsel %vm3334, %v3288, %v860
    %v3338 = vsel %vm3334, %v3289, %v864
    %v3339 = vsel %vm3334, %v3290, %v871
    %v3340 = vsel %vm3334, %v3291, %v875
    %v3341 = vsel %vm3334, %v3292, %v882
    %v3342 = vsel %vm3334, %v3293, %v886
    %v3343 = vsel %vm3334, %v3294, %v893
    %v3344 = vsel %vm3334, %v3295, %v897
    %v3345 = vsel %vm3334, %v3296, %v904
    %v3346 = vsel %vm3334, %v3297, %v908
    %v3347 = vsel %vm3334, %v3298, %v915
    %v3348 = vsel %vm3334, %v3299, %v919
    %v3349 = vsel %vm3334, %v3300, %v926
    %v3350 = vsel %vm3334, %v3301, %v930
    %v3351 = vsel %vm3334, %v3302, %v937
    %v3352 = vsel %vm3334, %v3303, %v941
    %v3353 = vsel %vm3334, %v3304, %v948
    %v3354 = vsel %vm3334, %v3305, %v952
    %v3355 = vsel %vm3334, %v3306, %v1475
    %v3356 = vsel %vm3334, %v3307, %v1479
    %v3357 = vsel %vm3334, %v3308, %v1529
    %v3358 = vsel %vm3334, %v3309, %v1533
    %v3359 = vsel %vm3334, %v3310, %v981
    %v3360 = vsel %vm3334, %v3311, %v985
    %v3361 = vsel %vm3334, %v3312, %v992
    %v3362 = vsel %vm3334, %v3313, %v996
    %v3363 = vsel %vm3334, %v3314, %v1003
    %v3364 = vsel %vm3334, %v3315, %v1007
    %v3365 = vsel %vm3334, %v3316, %v1014
    %v3366 = vsel %vm3334, %v3317, %v1018
    %v3367 = vsel %vm3334, %v3318, %v1025
    %v3368 = vsel %vm3334, %v3319, %v1029
    %v3369 = vsel %vm3334, %v3320, %v1036
    %v3370 = vsel %vm3334, %v3321, %v1040
    %v3371 = vsel %vm3334, %v3322, %v1047
    %v3372 = vsel %vm3334, %v3323, %v1051
    %v3373 = vsel %vm3334, %v3324, %v1058
    %v3374 = vsel %vm3334, %v3325, %v1062
    %v3375 = vsel %vm3334, %v3326, %v1069
    %v3376 = vsel %vm3334, %v3327, %v1073
    %v3377 = vsel %vm3334, %v3328, %v1080
    %v3378 = vsel %vm3334, %v3329, %v1084
    %v3379 = vsel %vm3334, %v3330, %v1486
    %v3380 = vsel %vm3334, %v3331, %v1490
    %v3381 = vsel %vm3334, %v3332, %v1540
    %v3382 = vsel %vm3334, %v3333, %v1544
    %vm3383 = vcmask 56320
    %v3384 = vsel %vm3383, %v3335, %v1104
    %v3385 = vsel %vm3383, %v3336, %v1108
    %v3386 = vsel %vm3383, %v3337, %v1112
    %v3387 = vsel %vm3383, %v3338, %v1116
    %v3388 = vsel %vm3383, %v3339, %v1120
    %v3389 = vsel %vm3383, %v3340, %v1124
    %v3390 = vsel %vm3383, %v3341, %v1128
    %v3391 = vsel %vm3383, %v3342, %v1132
    %v3392 = vsel %vm3383, %v3343, %v1136
    %v3393 = vsel %vm3383, %v3344, %v1140
    %v3394 = vsel %vm3383, %v3345, %v1144
    %v3395 = vsel %vm3383, %v3346, %v1148
    %v3396 = vsel %vm3383, %v3347, %v1152
    %v3397 = vsel %vm3383, %v3348, %v1156
    %v3398 = vsel %vm3383, %v3349, %v1160
    %v3399 = vsel %vm3383, %v3350, %v1164
    %v3400 = vsel %vm3383, %v3351, %v1168
    %v3401 = vsel %vm3383, %v3352, %v1172
    %v3402 = vsel %vm3383, %v3353, %v1176
    %v3403 = vsel %vm3383, %v3354, %v1180
    %v3404 = vsel %vm3383, %v3355, %v1494
    %v3405 = vsel %vm3383, %v3356, %v1498
    %v3406 = vsel %vm3383, %v3357, %v1548
    %v3407 = vsel %vm3383, %v3358, %v1552
    %v3408 = vsel %vm3383, %v3359, %v1200
    %v3409 = vsel %vm3383, %v3360, %v1204
    %v3410 = vsel %vm3383, %v3361, %v1208
    %v3411 = vsel %vm3383, %v3362, %v1212
    %v3412 = vsel %vm3383, %v3363, %v1216
    %v3413 = vsel %vm3383, %v3364, %v1220
    %v3414 = vsel %vm3383, %v3365, %v1224
    %v3415 = vsel %vm3383, %v3366, %v1228
    %v3416 = vsel %vm3383, %v3367, %v1232
    %v3417 = vsel %vm3383, %v3368, %v1236
    %v3418 = vsel %vm3383, %v3369, %v1240
    %v3419 = vsel %vm3383, %v3370, %v1244
    %v3420 = vsel %vm3383, %v3371, %v1248
    %v3421 = vsel %vm3383, %v3372, %v1252
    %v3422 = vsel %vm3383, %v3373, %v1256
    %v3423 = vsel %vm3383, %v3374, %v1260
    %v3424 = vsel %vm3383, %v3375, %v1264
    %v3425 = vsel %vm3383, %v3376, %v1268
    %v3426 = vsel %vm3383, %v3377, %v1272
    %v3427 = vsel %vm3383, %v3378, %v1276
    %v3428 = vsel %vm3383, %v3379, %v1502
    %v3429 = vsel %vm3383, %v3380, %v1506
    %v3430 = vsel %vm3383, %v3381, %v1556
    %v3431 = vsel %vm3383, %v3382, %v1560
    %vm3432 = vcmask 64512
    %v3433 = vsel %vm3432, %v3384, %v1296
    %v3434 = vsel %vm3432, %v3385, %v1300
    %v3435 = vsel %vm3432, %v3386, %v1304
    %v3436 = vsel %vm3432, %v3387, %v1308
    %v3437 = vsel %vm3432, %v3388, %v1312
    %v3438 = vsel %vm3432, %v3389, %v1316
    %v3439 = vsel %vm3432, %v3390, %v1320
    %v3440 = vsel %vm3432, %v3391, %v1324
    %v3441 = vsel %vm3432, %v3392, %v1328
    %v3442 = vsel %vm3432, %v3393, %v1332
    %v3443 = vsel %vm3432, %v3394, %v1336
    %v3444 = vsel %vm3432, %v3395, %v1340
    %v3445 = vsel %vm3432, %v3396, %v1344
    %v3446 = vsel %vm3432, %v3397, %v1348
    %v3447 = vsel %vm3432, %v3398, %v1352
    %v3448 = vsel %vm3432, %v3399, %v1356
    %v3449 = vsel %vm3432, %v3400, %v1360
    %v3450 = vsel %vm3432, %v3401, %v1364
    %v3451 = vsel %vm3432, %v3402, %v1368
    %v3452 = vsel %vm3432, %v3403, %v1372
    %v3453 = vsel %vm3432, %v3404, %v1510
    %v3454 = vsel %vm3432, %v3405, %v1514
    %v3455 = vsel %vm3432, %v3406, %v1564
    %v3456 = vsel %vm3432, %v3407, %v1568
    %v3457 = vsel %vm3432, %v3408, %v1392
    %v3458 = vsel %vm3432, %v3409, %v1396
    %v3459 = vsel %vm3432, %v3410, %v1400
    %v3460 = vsel %vm3432, %v3411, %v1404
    %v3461 = vsel %vm3432, %v3412, %v1408
    %v3462 = vsel %vm3432, %v3413, %v1412
    %v3463 = vsel %vm3432, %v3414, %v1416
    %v3464 = vsel %vm3432, %v3415, %v1420
    %v3465 = vsel %vm3432, %v3416, %v1424
    %v3466 = vsel %vm3432, %v3417, %v1428
    %v3467 = vsel %vm3432, %v3418, %v1432
    %v3468 = vsel %vm3432, %v3419, %v1436
    %v3469 = vsel %vm3432, %v3420, %v1440
    %v3470 = vsel %vm3432, %v3421, %v1444
    %v3471 = vsel %vm3432, %v3422, %v1448
    %v3472 = vsel %vm3432, %v3423, %v1452
    %v3473 = vsel %vm3432, %v3424, %v1456
    %v3474 = vsel %vm3432, %v3425, %v1460
    %v3475 = vsel %vm3432, %v3426, %v1464
    %v3476 = vsel %vm3432, %v3427, %v1468
    %v3477 = vsel %vm3432, %v3428, %v1518
    %v3478 = vsel %vm3432, %v3429, %v1522
    %v3479 = vsel %vm3432, %v3430, %v1572
    %v3480 = vsel %vm3432, %v3431, %v1576
    %vm3481 = vcmask 72704
    %v3482 = vsel %vm3481, %v3433, %v1583
    %v3483 = vsel %vm3481, %v3434, %v1587
    %v3484 = vsel %vm3481, %v3435, %v1594
    %v3485 = vsel %vm3481, %v3436, %v1598
    %v3486 = vsel %vm3481, %v3437, %v1605
    %v3487 = vsel %vm3481, %v3438, %v1609
    %v3488 = vsel %vm3481, %v3439, %v1616
    %v3489 = vsel %vm3481, %v3440, %v1620
    %v3490 = vsel %vm3481, %v3441, %v1627
    %v3491 = vsel %vm3481, %v3442, %v1631
    %v3492 = vsel %vm3481, %v3443, %v1638
    %v3493 = vsel %vm3481, %v3444, %v1642
    %v3494 = vsel %vm3481, %v3445, %v1649
    %v3495 = vsel %vm3481, %v3446, %v1653
    %v3496 = vsel %vm3481, %v3447, %v1660
    %v3497 = vsel %vm3481, %v3448, %v1664
    %v3498 = vsel %vm3481, %v3449, %v1671
    %v3499 = vsel %vm3481, %v3450, %v1675
    %v3500 = vsel %vm3481, %v3451, %v1682
    %v3501 = vsel %vm3481, %v3452, %v1686
    %v3502 = vsel %vm3481, %v3453, %v1693
    %v3503 = vsel %vm3481, %v3454, %v1697
    %v3504 = vsel %vm3481, %v3455, %v1704
    %v3505 = vsel %vm3481, %v3456, %v1708
    %v3506 = vsel %vm3481, %v3457, %v1715
    %v3507 = vsel %vm3481, %v3458, %v1719
    %v3508 = vsel %vm3481, %v3459, %v1726
    %v3509 = vsel %vm3481, %v3460, %v1730
    %v3510 = vsel %vm3481, %v3461, %v1737
    %v3511 = vsel %vm3481, %v3462, %v1741
    %v3512 = vsel %vm3481, %v3463, %v1748
    %v3513 = vsel %vm3481, %v3464, %v1752
    %v3514 = vsel %vm3481, %v3465, %v1759
    %v3515 = vsel %vm3481, %v3466, %v1763
    %v3516 = vsel %vm3481, %v3467, %v1770
    %v3517 = vsel %vm3481, %v3468, %v1774
    %v3518 = vsel %vm3481, %v3469, %v1781
    %v3519 = vsel %vm3481, %v3470, %v1785
    %v3520 = vsel %vm3481, %v3471, %v1792
    %v3521 = vsel %vm3481, %v3472, %v1796
    %v3522 = vsel %vm3481, %v3473, %v1803
    %v3523 = vsel %vm3481, %v3474, %v1807
    %v3524 = vsel %vm3481, %v3475, %v1814
    %v3525 = vsel %vm3481, %v3476, %v1818
    %v3526 = vsel %vm3481, %v3477, %v1825
    %v3527 = vsel %vm3481, %v3478, %v1829
    %v3528 = vsel %vm3481, %v3479, %v1836
    %v3529 = vsel %vm3481, %v3480, %v1840
    %vm3530 = vcmask 80896
    %v3531 = vsel %vm3530, %v3482, %v1844
    %v3532 = vsel %vm3530, %v3483, %v1848
    %v3533 = vsel %vm3530, %v3484, %v1852
    %v3534 = vsel %vm3530, %v3485, %v1856
    %v3535 = vsel %vm3530, %v3486, %v1860
    %v3536 = vsel %vm3530, %v3487, %v1864
    %v3537 = vsel %vm3530, %v3488, %v1868
    %v3538 = vsel %vm3530, %v3489, %v1872
    %v3539 = vsel %vm3530, %v3490, %v1876
    %v3540 = vsel %vm3530, %v3491, %v1880
    %v3541 = vsel %vm3530, %v3492, %v1884
    %v3542 = vsel %vm3530, %v3493, %v1888
    %v3543 = vsel %vm3530, %v3494, %v1892
    %v3544 = vsel %vm3530, %v3495, %v1896
    %v3545 = vsel %vm3530, %v3496, %v1900
    %v3546 = vsel %vm3530, %v3497, %v1904
    %v3547 = vsel %vm3530, %v3498, %v1908
    %v3548 = vsel %vm3530, %v3499, %v1912
    %v3549 = vsel %vm3530, %v3500, %v1916
    %v3550 = vsel %vm3530, %v3501, %v1920
    %v3551 = vsel %vm3530, %v3502, %v1924
    %v3552 = vsel %vm3530, %v3503, %v1928
    %v3553 = vsel %vm3530, %v3504, %v1932
    %v3554 = vsel %vm3530, %v3505, %v1936
    %v3555 = vsel %vm3530, %v3506, %v1940
    %v3556 = vsel %vm3530, %v3507, %v1944
    %v3557 = vsel %vm3530, %v3508, %v1948
    %v3558 = vsel %vm3530, %v3509, %v1952
    %v3559 = vsel %vm3530, %v3510, %v1956
    %v3560 = vsel %vm3530, %v3511, %v1960
    %v3561 = vsel %vm3530, %v3512, %v1964
    %v3562 = vsel %vm3530, %v3513, %v1968
    %v3563 = vsel %vm3530, %v3514, %v1972
    %v3564 = vsel %vm3530, %v3515, %v1976
    %v3565 = vsel %vm3530, %v3516, %v1980
    %v3566 = vsel %vm3530, %v3517, %v1984
    %v3567 = vsel %vm3530, %v3518, %v1988
    %v3568 = vsel %vm3530, %v3519, %v1992
    %v3569 = vsel %vm3530, %v3520, %v1996
    %v3570 = vsel %vm3530, %v3521, %v2000
    %v3571 = vsel %vm3530, %v3522, %v2004
    %v3572 = vsel %vm3530, %v3523, %v2008
    %v3573 = vsel %vm3530, %v3524, %v2012
    %v3574 = vsel %vm3530, %v3525, %v2016
    %v3575 = vsel %vm3530, %v3526, %v2020
    %v3576 = vsel %vm3530, %v3527, %v2024
    %v3577 = vsel %vm3530, %v3528, %v2028
    %v3578 = vsel %vm3530, %v3529, %v2032
    %vm3579 = vcmask 89088
    %v3580 = vsel %vm3579, %v3531, %v2036
    %v3581 = vsel %vm3579, %v3532, %v2040
    %v3582 = vsel %vm3579, %v3533, %v2044
    %v3583 = vsel %vm3579, %v3534, %v2048
    %v3584 = vsel %vm3579, %v3535, %v2052
    %v3585 = vsel %vm3579, %v3536, %v2056
    %v3586 = vsel %vm3579, %v3537, %v2060
    %v3587 = vsel %vm3579, %v3538, %v2064
    %v3588 = vsel %vm3579, %v3539, %v2068
    %v3589 = vsel %vm3579, %v3540, %v2072
    %v3590 = vsel %vm3579, %v3541, %v2076
    %v3591 = vsel %vm3579, %v3542, %v2080
    %v3592 = vsel %vm3579, %v3543, %v2084
    %v3593 = vsel %vm3579, %v3544, %v2088
    %v3594 = vsel %vm3579, %v3545, %v2092
    %v3595 = vsel %vm3579, %v3546, %v2096
    %v3596 = vsel %vm3579, %v3547, %v2100
    %v3597 = vsel %vm3579, %v3548, %v2104
    %v3598 = vsel %vm3579, %v3549, %v2108
    %v3599 = vsel %vm3579, %v3550, %v2112
    %v3600 = vsel %vm3579, %v3551, %v2116
    %v3601 = vsel %vm3579, %v3552, %v2120
    %v3602 = vsel %vm3579, %v3553, %v2124
    %v3603 = vsel %vm3579, %v3554, %v2128
    %v3604 = vsel %vm3579, %v3555, %v2132
    %v3605 = vsel %vm3579, %v3556, %v2136
    %v3606 = vsel %vm3579, %v3557, %v2140
    %v3607 = vsel %vm3579, %v3558, %v2144
    %v3608 = vsel %vm3579, %v3559, %v2148
    %v3609 = vsel %vm3579, %v3560, %v2152
    %v3610 = vsel %vm3579, %v3561, %v2156
    %v3611 = vsel %vm3579, %v3562, %v2160
    %v3612 = vsel %vm3579, %v3563, %v2164
    %v3613 = vsel %vm3579, %v3564, %v2168
    %v3614 = vsel %vm3579, %v3565, %v2172
    %v3615 = vsel %vm3579, %v3566, %v2176
    %v3616 = vsel %vm3579, %v3567, %v2180
    %v3617 = vsel %vm3579, %v3568, %v2184
    %v3618 = vsel %vm3579, %v3569, %v2188
    %v3619 = vsel %vm3579, %v3570, %v2192
    %v3620 = vsel %vm3579, %v3571, %v2196
    %v3621 = vsel %vm3579, %v3572, %v2200
    %v3622 = vsel %vm3579, %v3573, %v2204
    %v3623 = vsel %vm3579, %v3574, %v2208
    %v3624 = vsel %vm3579, %v3575, %v2212
    %v3625 = vsel %vm3579, %v3576, %v2216
    %v3626 = vsel %vm3579, %v3577, %v2220
    %v3627 = vsel %vm3579, %v3578, %v2224
    %vm3628 = vcmask 97280
    %v3629 = vsel %vm3628, %v3580, %v1594
    %v3630 = vsel %vm3628, %v3581, %v1598
    %v3631 = vsel %vm3628, %v3582, %v1605
    %v3632 = vsel %vm3628, %v3583, %v1609
    %v3633 = vsel %vm3628, %v3584, %v1616
    %v3634 = vsel %vm3628, %v3585, %v1620
    %v3635 = vsel %vm3628, %v3586, %v1627
    %v3636 = vsel %vm3628, %v3587, %v1631
    %v3637 = vsel %vm3628, %v3588, %v1638
    %v3638 = vsel %vm3628, %v3589, %v1642
    %v3639 = vsel %vm3628, %v3590, %v1649
    %v3640 = vsel %vm3628, %v3591, %v1653
    %v3641 = vsel %vm3628, %v3592, %v1660
    %v3642 = vsel %vm3628, %v3593, %v1664
    %v3643 = vsel %vm3628, %v3594, %v1671
    %v3644 = vsel %vm3628, %v3595, %v1675
    %v3645 = vsel %vm3628, %v3596, %v1682
    %v3646 = vsel %vm3628, %v3597, %v1686
    %v3647 = vsel %vm3628, %v3598, %v1693
    %v3648 = vsel %vm3628, %v3599, %v1697
    %v3649 = vsel %vm3628, %v3600, %v1704
    %v3650 = vsel %vm3628, %v3601, %v1708
    %v3651 = vsel %vm3628, %v3602, %v2231
    %v3652 = vsel %vm3628, %v3603, %v2235
    %v3653 = vsel %vm3628, %v3604, %v1726
    %v3654 = vsel %vm3628, %v3605, %v1730
    %v3655 = vsel %vm3628, %v3606, %v1737
    %v3656 = vsel %vm3628, %v3607, %v1741
    %v3657 = vsel %vm3628, %v3608, %v1748
    %v3658 = vsel %vm3628, %v3609, %v1752
    %v3659 = vsel %vm3628, %v3610, %v1759
    %v3660 = vsel %vm3628, %v3611, %v1763
    %v3661 = vsel %vm3628, %v3612, %v1770
    %v3662 = vsel %vm3628, %v3613, %v1774
    %v3663 = vsel %vm3628, %v3614, %v1781
    %v3664 = vsel %vm3628, %v3615, %v1785
    %v3665 = vsel %vm3628, %v3616, %v1792
    %v3666 = vsel %vm3628, %v3617, %v1796
    %v3667 = vsel %vm3628, %v3618, %v1803
    %v3668 = vsel %vm3628, %v3619, %v1807
    %v3669 = vsel %vm3628, %v3620, %v1814
    %v3670 = vsel %vm3628, %v3621, %v1818
    %v3671 = vsel %vm3628, %v3622, %v1825
    %v3672 = vsel %vm3628, %v3623, %v1829
    %v3673 = vsel %vm3628, %v3624, %v1836
    %v3674 = vsel %vm3628, %v3625, %v1840
    %v3675 = vsel %vm3628, %v3626, %v2242
    %v3676 = vsel %vm3628, %v3627, %v2246
    %vm3677 = vcmask 105472
    %v3678 = vsel %vm3677, %v3629, %v1852
    %v3679 = vsel %vm3677, %v3630, %v1856
    %v3680 = vsel %vm3677, %v3631, %v1860
    %v3681 = vsel %vm3677, %v3632, %v1864
    %v3682 = vsel %vm3677, %v3633, %v1868
    %v3683 = vsel %vm3677, %v3634, %v1872
    %v3684 = vsel %vm3677, %v3635, %v1876
    %v3685 = vsel %vm3677, %v3636, %v1880
    %v3686 = vsel %vm3677, %v3637, %v1884
    %v3687 = vsel %vm3677, %v3638, %v1888
    %v3688 = vsel %vm3677, %v3639, %v1892
    %v3689 = vsel %vm3677, %v3640, %v1896
    %v3690 = vsel %vm3677, %v3641, %v1900
    %v3691 = vsel %vm3677, %v3642, %v1904
    %v3692 = vsel %vm3677, %v3643, %v1908
    %v3693 = vsel %vm3677, %v3644, %v1912
    %v3694 = vsel %vm3677, %v3645, %v1916
    %v3695 = vsel %vm3677, %v3646, %v1920
    %v3696 = vsel %vm3677, %v3647, %v1924
    %v3697 = vsel %vm3677, %v3648, %v1928
    %v3698 = vsel %vm3677, %v3649, %v1932
    %v3699 = vsel %vm3677, %v3650, %v1936
    %v3700 = vsel %vm3677, %v3651, %v2250
    %v3701 = vsel %vm3677, %v3652, %v2254
    %v3702 = vsel %vm3677, %v3653, %v1948
    %v3703 = vsel %vm3677, %v3654, %v1952
    %v3704 = vsel %vm3677, %v3655, %v1956
    %v3705 = vsel %vm3677, %v3656, %v1960
    %v3706 = vsel %vm3677, %v3657, %v1964
    %v3707 = vsel %vm3677, %v3658, %v1968
    %v3708 = vsel %vm3677, %v3659, %v1972
    %v3709 = vsel %vm3677, %v3660, %v1976
    %v3710 = vsel %vm3677, %v3661, %v1980
    %v3711 = vsel %vm3677, %v3662, %v1984
    %v3712 = vsel %vm3677, %v3663, %v1988
    %v3713 = vsel %vm3677, %v3664, %v1992
    %v3714 = vsel %vm3677, %v3665, %v1996
    %v3715 = vsel %vm3677, %v3666, %v2000
    %v3716 = vsel %vm3677, %v3667, %v2004
    %v3717 = vsel %vm3677, %v3668, %v2008
    %v3718 = vsel %vm3677, %v3669, %v2012
    %v3719 = vsel %vm3677, %v3670, %v2016
    %v3720 = vsel %vm3677, %v3671, %v2020
    %v3721 = vsel %vm3677, %v3672, %v2024
    %v3722 = vsel %vm3677, %v3673, %v2028
    %v3723 = vsel %vm3677, %v3674, %v2032
    %v3724 = vsel %vm3677, %v3675, %v2258
    %v3725 = vsel %vm3677, %v3676, %v2262
    %vm3726 = vcmask 113664
    %v3727 = vsel %vm3726, %v3678, %v2044
    %v3728 = vsel %vm3726, %v3679, %v2048
    %v3729 = vsel %vm3726, %v3680, %v2052
    %v3730 = vsel %vm3726, %v3681, %v2056
    %v3731 = vsel %vm3726, %v3682, %v2060
    %v3732 = vsel %vm3726, %v3683, %v2064
    %v3733 = vsel %vm3726, %v3684, %v2068
    %v3734 = vsel %vm3726, %v3685, %v2072
    %v3735 = vsel %vm3726, %v3686, %v2076
    %v3736 = vsel %vm3726, %v3687, %v2080
    %v3737 = vsel %vm3726, %v3688, %v2084
    %v3738 = vsel %vm3726, %v3689, %v2088
    %v3739 = vsel %vm3726, %v3690, %v2092
    %v3740 = vsel %vm3726, %v3691, %v2096
    %v3741 = vsel %vm3726, %v3692, %v2100
    %v3742 = vsel %vm3726, %v3693, %v2104
    %v3743 = vsel %vm3726, %v3694, %v2108
    %v3744 = vsel %vm3726, %v3695, %v2112
    %v3745 = vsel %vm3726, %v3696, %v2116
    %v3746 = vsel %vm3726, %v3697, %v2120
    %v3747 = vsel %vm3726, %v3698, %v2124
    %v3748 = vsel %vm3726, %v3699, %v2128
    %v3749 = vsel %vm3726, %v3700, %v2266
    %v3750 = vsel %vm3726, %v3701, %v2270
    %v3751 = vsel %vm3726, %v3702, %v2140
    %v3752 = vsel %vm3726, %v3703, %v2144
    %v3753 = vsel %vm3726, %v3704, %v2148
    %v3754 = vsel %vm3726, %v3705, %v2152
    %v3755 = vsel %vm3726, %v3706, %v2156
    %v3756 = vsel %vm3726, %v3707, %v2160
    %v3757 = vsel %vm3726, %v3708, %v2164
    %v3758 = vsel %vm3726, %v3709, %v2168
    %v3759 = vsel %vm3726, %v3710, %v2172
    %v3760 = vsel %vm3726, %v3711, %v2176
    %v3761 = vsel %vm3726, %v3712, %v2180
    %v3762 = vsel %vm3726, %v3713, %v2184
    %v3763 = vsel %vm3726, %v3714, %v2188
    %v3764 = vsel %vm3726, %v3715, %v2192
    %v3765 = vsel %vm3726, %v3716, %v2196
    %v3766 = vsel %vm3726, %v3717, %v2200
    %v3767 = vsel %vm3726, %v3718, %v2204
    %v3768 = vsel %vm3726, %v3719, %v2208
    %v3769 = vsel %vm3726, %v3720, %v2212
    %v3770 = vsel %vm3726, %v3721, %v2216
    %v3771 = vsel %vm3726, %v3722, %v2220
    %v3772 = vsel %vm3726, %v3723, %v2224
    %v3773 = vsel %vm3726, %v3724, %v2274
    %v3774 = vsel %vm3726, %v3725, %v2278
    %vm3775 = vcmask 121856
    %v3776 = vsel %vm3775, %v3727, %v1605
    %v3777 = vsel %vm3775, %v3728, %v1609
    %v3778 = vsel %vm3775, %v3729, %v1616
    %v3779 = vsel %vm3775, %v3730, %v1620
    %v3780 = vsel %vm3775, %v3731, %v1627
    %v3781 = vsel %vm3775, %v3732, %v1631
    %v3782 = vsel %vm3775, %v3733, %v1638
    %v3783 = vsel %vm3775, %v3734, %v1642
    %v3784 = vsel %vm3775, %v3735, %v1649
    %v3785 = vsel %vm3775, %v3736, %v1653
    %v3786 = vsel %vm3775, %v3737, %v1660
    %v3787 = vsel %vm3775, %v3738, %v1664
    %v3788 = vsel %vm3775, %v3739, %v1671
    %v3789 = vsel %vm3775, %v3740, %v1675
    %v3790 = vsel %vm3775, %v3741, %v1682
    %v3791 = vsel %vm3775, %v3742, %v1686
    %v3792 = vsel %vm3775, %v3743, %v1693
    %v3793 = vsel %vm3775, %v3744, %v1697
    %v3794 = vsel %vm3775, %v3745, %v1704
    %v3795 = vsel %vm3775, %v3746, %v1708
    %v3796 = vsel %vm3775, %v3747, %v2231
    %v3797 = vsel %vm3775, %v3748, %v2235
    %v3798 = vsel %vm3775, %v3749, %v2285
    %v3799 = vsel %vm3775, %v3750, %v2289
    %v3800 = vsel %vm3775, %v3751, %v1737
    %v3801 = vsel %vm3775, %v3752, %v1741
    %v3802 = vsel %vm3775, %v3753, %v1748
    %v3803 = vsel %vm3775, %v3754, %v1752
    %v3804 = vsel %vm3775, %v3755, %v1759
    %v3805 = vsel %vm3775, %v3756, %v1763
    %v3806 = vsel %vm3775, %v3757, %v1770
    %v3807 = vsel %vm3775, %v3758, %v1774
    %v3808 = vsel %vm3775, %v3759, %v1781
    %v3809 = vsel %vm3775, %v3760, %v1785
    %v3810 = vsel %vm3775, %v3761, %v1792
    %v3811 = vsel %vm3775, %v3762, %v1796
    %v3812 = vsel %vm3775, %v3763, %v1803
    %v3813 = vsel %vm3775, %v3764, %v1807
    %v3814 = vsel %vm3775, %v3765, %v1814
    %v3815 = vsel %vm3775, %v3766, %v1818
    %v3816 = vsel %vm3775, %v3767, %v1825
    %v3817 = vsel %vm3775, %v3768, %v1829
    %v3818 = vsel %vm3775, %v3769, %v1836
    %v3819 = vsel %vm3775, %v3770, %v1840
    %v3820 = vsel %vm3775, %v3771, %v2242
    %v3821 = vsel %vm3775, %v3772, %v2246
    %v3822 = vsel %vm3775, %v3773, %v2296
    %v3823 = vsel %vm3775, %v3774, %v2300
    %v3824 = vsel %vm3089, %v1860, %v2052
    %v3825 = vsel %vm3089, %v1864, %v2056
    %v3826 = vsel %vm3089, %v1868, %v2060
    %v3827 = vsel %vm3089, %v1872, %v2064
    %v3828 = vsel %vm3089, %v1876, %v2068
    %v3829 = vsel %vm3089, %v1880, %v2072
    %v3830 = vsel %vm3089, %v1884, %v2076
    %v3831 = vsel %vm3089, %v1888, %v2080
    %v3832 = vsel %vm3089, %v1892, %v2084
    %v3833 = vsel %vm3089, %v1896, %v2088
    %v3834 = vsel %vm3089, %v1900, %v2092
    %v3835 = vsel %vm3089, %v1904, %v2096
    %v3836 = vsel %vm3089, %v1908, %v2100
    %v3837 = vsel %vm3089, %v1912, %v2104
    %v3838 = vsel %vm3089, %v1916, %v2108
    %v3839 = vsel %vm3089, %v1920, %v2112
    %v3840 = vsel %vm3089, %v1924, %v2116
    %v3841 = vsel %vm3089, %v1928, %v2120
    %v3842 = vsel %vm3089, %v1932, %v2124
    %v3843 = vsel %vm3089, %v1936, %v2128
    %v3844 = vsel %vm3089, %v2250, %v2266
    %v3845 = vsel %vm3089, %v2254, %v2270
    %v3846 = vsel %vm3089, %v2304, %v2320
    %v3847 = vsel %vm3089, %v2308, %v2324
    %v3848 = vsel %vm3089, %v1956, %v2148
    %v3849 = vsel %vm3089, %v1960, %v2152
    %v3850 = vsel %vm3089, %v1964, %v2156
    %v3851 = vsel %vm3089, %v1968, %v2160
    %v3852 = vsel %vm3089, %v1972, %v2164
    %v3853 = vsel %vm3089, %v1976, %v2168
    %v3854 = vsel %vm3089, %v1980, %v2172
    %v3855 = vsel %vm3089, %v1984, %v2176
    %v3856 = vsel %vm3089, %v1988, %v2180
    %v3857 = vsel %vm3089, %v1992, %v2184
    %v3858 = vsel %vm3089, %v1996, %v2188
    %v3859 = vsel %vm3089, %v2000, %v2192
    %v3860 = vsel %vm3089, %v2004, %v2196
    %v3861 = vsel %vm3089, %v2008, %v2200
    %v3862 = vsel %vm3089, %v2012, %v2204
    %v3863 = vsel %vm3089, %v2016, %v2208
    %v3864 = vsel %vm3089, %v2020, %v2212
    %v3865 = vsel %vm3089, %v2024, %v2216
    %v3866 = vsel %vm3089, %v2028, %v2220
    %v3867 = vsel %vm3089, %v2032, %v2224
    %v3868 = vsel %vm3089, %v2258, %v2274
    %v3869 = vsel %vm3089, %v2262, %v2278
    %v3870 = vsel %vm3089, %v2312, %v2328
    %v3871 = vsel %vm3089, %v2316, %v2332
    %v3872 = vsel %vm3138, %v3824, %v2339
    %v3873 = vsel %vm3138, %v3825, %v2343
    %v3874 = vsel %vm3138, %v3826, %v2350
    %v3875 = vsel %vm3138, %v3827, %v2354
    %v3876 = vsel %vm3138, %v3828, %v2361
    %v3877 = vsel %vm3138, %v3829, %v2365
    %v3878 = vsel %vm3138, %v3830, %v2372
    %v3879 = vsel %vm3138, %v3831, %v2376
    %v3880 = vsel %vm3138, %v3832, %v2383
    %v3881 = vsel %vm3138, %v3833, %v2387
    %v3882 = vsel %vm3138, %v3834, %v2394
    %v3883 = vsel %vm3138, %v3835, %v2398
    %v3884 = vsel %vm3138, %v3836, %v2405
    %v3885 = vsel %vm3138, %v3837, %v2409
    %v3886 = vsel %vm3138, %v3838, %v2416
    %v3887 = vsel %vm3138, %v3839, %v2420
    %v3888 = vsel %vm3138, %v3840, %v2427
    %v3889 = vsel %vm3138, %v3841, %v2431
    %v3890 = vsel %vm3138, %v3842, %v2438
    %v3891 = vsel %vm3138, %v3843, %v2442
    %v3892 = vsel %vm3138, %v3844, %v2449
    %v3893 = vsel %vm3138, %v3845, %v2453
    %v3894 = vsel %vm3138, %v3846, %v2460
    %v3895 = vsel %vm3138, %v3847, %v2464
    %v3896 = vsel %vm3138, %v3848, %v2471
    %v3897 = vsel %vm3138, %v3849, %v2475
    %v3898 = vsel %vm3138, %v3850, %v2482
    %v3899 = vsel %vm3138, %v3851, %v2486
    %v3900 = vsel %vm3138, %v3852, %v2493
    %v3901 = vsel %vm3138, %v3853, %v2497
    %v3902 = vsel %vm3138, %v3854, %v2504
    %v3903 = vsel %vm3138, %v3855, %v2508
    %v3904 = vsel %vm3138, %v3856, %v2515
    %v3905 = vsel %vm3138, %v3857, %v2519
    %v3906 = vsel %vm3138, %v3858, %v2526
    %v3907 = vsel %vm3138, %v3859, %v2530
    %v3908 = vsel %vm3138, %v3860, %v2537
    %v3909 = vsel %vm3138, %v3861, %v2541
    %v3910 = vsel %vm3138, %v3862, %v2548
    %v3911 = vsel %vm3138, %v3863, %v2552
    %v3912 = vsel %vm3138, %v3864, %v2559
    %v3913 = vsel %vm3138, %v3865, %v2563
    %v3914 = vsel %vm3138, %v3866, %v2570
    %v3915 = vsel %vm3138, %v3867, %v2574
    %v3916 = vsel %vm3138, %v3868, %v2581
    %v3917 = vsel %vm3138, %v3869, %v2585
    %v3918 = vsel %vm3138, %v3870, %v2592
    %v3919 = vsel %vm3138, %v3871, %v2596
    %v3920 = vsel %vm3187, %v3872, %v2600
    %v3921 = vsel %vm3187, %v3873, %v2604
    %v3922 = vsel %vm3187, %v3874, %v2608
    %v3923 = vsel %vm3187, %v3875, %v2612
    %v3924 = vsel %vm3187, %v3876, %v2616
    %v3925 = vsel %vm3187, %v3877, %v2620
    %v3926 = vsel %vm3187, %v3878, %v2624
    %v3927 = vsel %vm3187, %v3879, %v2628
    %v3928 = vsel %vm3187, %v3880, %v2632
    %v3929 = vsel %vm3187, %v3881, %v2636
    %v3930 = vsel %vm3187, %v3882, %v2640
    %v3931 = vsel %vm3187, %v3883, %v2644
    %v3932 = vsel %vm3187, %v3884, %v2648
    %v3933 = vsel %vm3187, %v3885, %v2652
    %v3934 = vsel %vm3187, %v3886, %v2656
    %v3935 = vsel %vm3187, %v3887, %v2660
    %v3936 = vsel %vm3187, %v3888, %v2664
    %v3937 = vsel %vm3187, %v3889, %v2668
    %v3938 = vsel %vm3187, %v3890, %v2672
    %v3939 = vsel %vm3187, %v3891, %v2676
    %v3940 = vsel %vm3187, %v3892, %v2680
    %v3941 = vsel %vm3187, %v3893, %v2684
    %v3942 = vsel %vm3187, %v3894, %v2688
    %v3943 = vsel %vm3187, %v3895, %v2692
    %v3944 = vsel %vm3187, %v3896, %v2696
    %v3945 = vsel %vm3187, %v3897, %v2700
    %v3946 = vsel %vm3187, %v3898, %v2704
    %v3947 = vsel %vm3187, %v3899, %v2708
    %v3948 = vsel %vm3187, %v3900, %v2712
    %v3949 = vsel %vm3187, %v3901, %v2716
    %v3950 = vsel %vm3187, %v3902, %v2720
    %v3951 = vsel %vm3187, %v3903, %v2724
    %v3952 = vsel %vm3187, %v3904, %v2728
    %v3953 = vsel %vm3187, %v3905, %v2732
    %v3954 = vsel %vm3187, %v3906, %v2736
    %v3955 = vsel %vm3187, %v3907, %v2740
    %v3956 = vsel %vm3187, %v3908, %v2744
    %v3957 = vsel %vm3187, %v3909, %v2748
    %v3958 = vsel %vm3187, %v3910, %v2752
    %v3959 = vsel %vm3187, %v3911, %v2756
    %v3960 = vsel %vm3187, %v3912, %v2760
    %v3961 = vsel %vm3187, %v3913, %v2764
    %v3962 = vsel %vm3187, %v3914, %v2768
    %v3963 = vsel %vm3187, %v3915, %v2772
    %v3964 = vsel %vm3187, %v3916, %v2776
    %v3965 = vsel %vm3187, %v3917, %v2780
    %v3966 = vsel %vm3187, %v3918, %v2784
    %v3967 = vsel %vm3187, %v3919, %v2788
    %v3968 = vsel %vm3236, %v3920, %v2792
    %v3969 = vsel %vm3236, %v3921, %v2796
    %v3970 = vsel %vm3236, %v3922, %v2800
    %v3971 = vsel %vm3236, %v3923, %v2804
    %v3972 = vsel %vm3236, %v3924, %v2808
    %v3973 = vsel %vm3236, %v3925, %v2812
    %v3974 = vsel %vm3236, %v3926, %v2816
    %v3975 = vsel %vm3236, %v3927, %v2820
    %v3976 = vsel %vm3236, %v3928, %v2824
    %v3977 = vsel %vm3236, %v3929, %v2828
    %v3978 = vsel %vm3236, %v3930, %v2832
    %v3979 = vsel %vm3236, %v3931, %v2836
    %v3980 = vsel %vm3236, %v3932, %v2840
    %v3981 = vsel %vm3236, %v3933, %v2844
    %v3982 = vsel %vm3236, %v3934, %v2848
    %v3983 = vsel %vm3236, %v3935, %v2852
    %v3984 = vsel %vm3236, %v3936, %v2856
    %v3985 = vsel %vm3236, %v3937, %v2860
    %v3986 = vsel %vm3236, %v3938, %v2864
    %v3987 = vsel %vm3236, %v3939, %v2868
    %v3988 = vsel %vm3236, %v3940, %v2872
    %v3989 = vsel %vm3236, %v3941, %v2876
    %v3990 = vsel %vm3236, %v3942, %v2880
    %v3991 = vsel %vm3236, %v3943, %v2884
    %v3992 = vsel %vm3236, %v3944, %v2888
    %v3993 = vsel %vm3236, %v3945, %v2892
    %v3994 = vsel %vm3236, %v3946, %v2896
    %v3995 = vsel %vm3236, %v3947, %v2900
    %v3996 = vsel %vm3236, %v3948, %v2904
    %v3997 = vsel %vm3236, %v3949, %v2908
    %v3998 = vsel %vm3236, %v3950, %v2912
    %v3999 = vsel %vm3236, %v3951, %v2916
    %v4000 = vsel %vm3236, %v3952, %v2920
    %v4001 = vsel %vm3236, %v3953, %v2924
    %v4002 = vsel %vm3236, %v3954, %v2928
    %v4003 = vsel %vm3236, %v3955, %v2932
    %v4004 = vsel %vm3236, %v3956, %v2936
    %v4005 = vsel %vm3236, %v3957, %v2940
    %v4006 = vsel %vm3236, %v3958, %v2944
    %v4007 = vsel %vm3236, %v3959, %v2948
    %v4008 = vsel %vm3236, %v3960, %v2952
    %v4009 = vsel %vm3236, %v3961, %v2956
    %v4010 = vsel %vm3236, %v3962, %v2960
    %v4011 = vsel %vm3236, %v3963, %v2964
    %v4012 = vsel %vm3236, %v3964, %v2968
    %v4013 = vsel %vm3236, %v3965, %v2972
    %v4014 = vsel %vm3236, %v3966, %v2976
    %v4015 = vsel %vm3236, %v3967, %v2980
    %v4016 = vsel %vm3285, %v3968, %v2350
    %v4017 = vsel %vm3285, %v3969, %v2354
    %v4018 = vsel %vm3285, %v3970, %v2361
    %v4019 = vsel %vm3285, %v3971, %v2365
    %v4020 = vsel %vm3285, %v3972, %v2372
    %v4021 = vsel %vm3285, %v3973, %v2376
    %v4022 = vsel %vm3285, %v3974, %v2383
    %v4023 = vsel %vm3285, %v3975, %v2387
    %v4024 = vsel %vm3285, %v3976, %v2394
    %v4025 = vsel %vm3285, %v3977, %v2398
    %v4026 = vsel %vm3285, %v3978, %v2405
    %v4027 = vsel %vm3285, %v3979, %v2409
    %v4028 = vsel %vm3285, %v3980, %v2416
    %v4029 = vsel %vm3285, %v3981, %v2420
    %v4030 = vsel %vm3285, %v3982, %v2427
    %v4031 = vsel %vm3285, %v3983, %v2431
    %v4032 = vsel %vm3285, %v3984, %v2438
    %v4033 = vsel %vm3285, %v3985, %v2442
    %v4034 = vsel %vm3285, %v3986, %v2449
    %v4035 = vsel %vm3285, %v3987, %v2453
    %v4036 = vsel %vm3285, %v3988, %v2460
    %v4037 = vsel %vm3285, %v3989, %v2464
    %v4038 = vsel %vm3285, %v3990, %v2987
    %v4039 = vsel %vm3285, %v3991, %v2991
    %v4040 = vsel %vm3285, %v3992, %v2482
    %v4041 = vsel %vm3285, %v3993, %v2486
    %v4042 = vsel %vm3285, %v3994, %v2493
    %v4043 = vsel %vm3285, %v3995, %v2497
    %v4044 = vsel %vm3285, %v3996, %v2504
    %v4045 = vsel %vm3285, %v3997, %v2508
    %v4046 = vsel %vm3285, %v3998, %v2515
    %v4047 = vsel %vm3285, %v3999, %v2519
    %v4048 = vsel %vm3285, %v4000, %v2526
    %v4049 = vsel %vm3285, %v4001, %v2530
    %v4050 = vsel %vm3285, %v4002, %v2537
    %v4051 = vsel %vm3285, %v4003, %v2541
    %v4052 = vsel %vm3285, %v4004, %v2548
    %v4053 = vsel %vm3285, %v4005, %v2552
    %v4054 = vsel %vm3285, %v4006, %v2559
    %v4055 = vsel %vm3285, %v4007, %v2563
    %v4056 = vsel %vm3285, %v4008, %v2570
    %v4057 = vsel %vm3285, %v4009, %v2574
    %v4058 = vsel %vm3285, %v4010, %v2581
    %v4059 = vsel %vm3285, %v4011, %v2585
    %v4060 = vsel %vm3285, %v4012, %v2592
    %v4061 = vsel %vm3285, %v4013, %v2596
    %v4062 = vsel %vm3285, %v4014, %v2998
    %v4063 = vsel %vm3285, %v4015, %v3002
    %v4064 = vsel %vm3334, %v4016, %v2608
    %v4065 = vsel %vm3334, %v4017, %v2612
    %v4066 = vsel %vm3334, %v4018, %v2616
    %v4067 = vsel %vm3334, %v4019, %v2620
    %v4068 = vsel %vm3334, %v4020, %v2624
    %v4069 = vsel %vm3334, %v4021, %v2628
    %v4070 = vsel %vm3334, %v4022, %v2632
    %v4071 = vsel %vm3334, %v4023, %v2636
    %v4072 = vsel %vm3334, %v4024, %v2640
    %v4073 = vsel %vm3334, %v4025, %v2644
    %v4074 = vsel %vm3334, %v4026, %v2648
    %v4075 = vsel %vm3334, %v4027, %v2652
    %v4076 = vsel %vm3334, %v4028, %v2656
    %v4077 = vsel %vm3334, %v4029, %v2660
    %v4078 = vsel %vm3334, %v4030, %v2664
    %v4079 = vsel %vm3334, %v4031, %v2668
    %v4080 = vsel %vm3334, %v4032, %v2672
    %v4081 = vsel %vm3334, %v4033, %v2676
    %v4082 = vsel %vm3334, %v4034, %v2680
    %v4083 = vsel %vm3334, %v4035, %v2684
    %v4084 = vsel %vm3334, %v4036, %v2688
    %v4085 = vsel %vm3334, %v4037, %v2692
    %v4086 = vsel %vm3334, %v4038, %v3006
    %v4087 = vsel %vm3334, %v4039, %v3010
    %v4088 = vsel %vm3334, %v4040, %v2704
    %v4089 = vsel %vm3334, %v4041, %v2708
    %v4090 = vsel %vm3334, %v4042, %v2712
    %v4091 = vsel %vm3334, %v4043, %v2716
    %v4092 = vsel %vm3334, %v4044, %v2720
    %v4093 = vsel %vm3334, %v4045, %v2724
    %v4094 = vsel %vm3334, %v4046, %v2728
    %v4095 = vsel %vm3334, %v4047, %v2732
    %v4096 = vsel %vm3334, %v4048, %v2736
    %v4097 = vsel %vm3334, %v4049, %v2740
    %v4098 = vsel %vm3334, %v4050, %v2744
    %v4099 = vsel %vm3334, %v4051, %v2748
    %v4100 = vsel %vm3334, %v4052, %v2752
    %v4101 = vsel %vm3334, %v4053, %v2756
    %v4102 = vsel %vm3334, %v4054, %v2760
    %v4103 = vsel %vm3334, %v4055, %v2764
    %v4104 = vsel %vm3334, %v4056, %v2768
    %v4105 = vsel %vm3334, %v4057, %v2772
    %v4106 = vsel %vm3334, %v4058, %v2776
    %v4107 = vsel %vm3334, %v4059, %v2780
    %v4108 = vsel %vm3334, %v4060, %v2784
    %v4109 = vsel %vm3334, %v4061, %v2788
    %v4110 = vsel %vm3334, %v4062, %v3014
    %v4111 = vsel %vm3334, %v4063, %v3018
    %v4112 = vsel %vm3383, %v4064, %v2800
    %v4113 = vsel %vm3383, %v4065, %v2804
    %v4114 = vsel %vm3383, %v4066, %v2808
    %v4115 = vsel %vm3383, %v4067, %v2812
    %v4116 = vsel %vm3383, %v4068, %v2816
    %v4117 = vsel %vm3383, %v4069, %v2820
    %v4118 = vsel %vm3383, %v4070, %v2824
    %v4119 = vsel %vm3383, %v4071, %v2828
    %v4120 = vsel %vm3383, %v4072, %v2832
    %v4121 = vsel %vm3383, %v4073, %v2836
    %v4122 = vsel %vm3383, %v4074, %v2840
    %v4123 = vsel %vm3383, %v4075, %v2844
    %v4124 = vsel %vm3383, %v4076, %v2848
    %v4125 = vsel %vm3383, %v4077, %v2852
    %v4126 = vsel %vm3383, %v4078, %v2856
    %v4127 = vsel %vm3383, %v4079, %v2860
    %v4128 = vsel %vm3383, %v4080, %v2864
    %v4129 = vsel %vm3383, %v4081, %v2868
    %v4130 = vsel %vm3383, %v4082, %v2872
    %v4131 = vsel %vm3383, %v4083, %v2876
    %v4132 = vsel %vm3383, %v4084, %v2880
    %v4133 = vsel %vm3383, %v4085, %v2884
    %v4134 = vsel %vm3383, %v4086, %v3022
    %v4135 = vsel %vm3383, %v4087, %v3026
    %v4136 = vsel %vm3383, %v4088, %v2896
    %v4137 = vsel %vm3383, %v4089, %v2900
    %v4138 = vsel %vm3383, %v4090, %v2904
    %v4139 = vsel %vm3383, %v4091, %v2908
    %v4140 = vsel %vm3383, %v4092, %v2912
    %v4141 = vsel %vm3383, %v4093, %v2916
    %v4142 = vsel %vm3383, %v4094, %v2920
    %v4143 = vsel %vm3383, %v4095, %v2924
    %v4144 = vsel %vm3383, %v4096, %v2928
    %v4145 = vsel %vm3383, %v4097, %v2932
    %v4146 = vsel %vm3383, %v4098, %v2936
    %v4147 = vsel %vm3383, %v4099, %v2940
    %v4148 = vsel %vm3383, %v4100, %v2944
    %v4149 = vsel %vm3383, %v4101, %v2948
    %v4150 = vsel %vm3383, %v4102, %v2952
    %v4151 = vsel %vm3383, %v4103, %v2956
    %v4152 = vsel %vm3383, %v4104, %v2960
    %v4153 = vsel %vm3383, %v4105, %v2964
    %v4154 = vsel %vm3383, %v4106, %v2968
    %v4155 = vsel %vm3383, %v4107, %v2972
    %v4156 = vsel %vm3383, %v4108, %v2976
    %v4157 = vsel %vm3383, %v4109, %v2980
    %v4158 = vsel %vm3383, %v4110, %v3030
    %v4159 = vsel %vm3383, %v4111, %v3034
    %v4160 = vsel %vm3432, %v4112, %v2361
    %v4161 = vsel %vm3432, %v4113, %v2365
    %v4162 = vsel %vm3432, %v4114, %v2372
    %v4163 = vsel %vm3432, %v4115, %v2376
    %v4164 = vsel %vm3432, %v4116, %v2383
    %v4165 = vsel %vm3432, %v4117, %v2387
    %v4166 = vsel %vm3432, %v4118, %v2394
    %v4167 = vsel %vm3432, %v4119, %v2398
    %v4168 = vsel %vm3432, %v4120, %v2405
    %v4169 = vsel %vm3432, %v4121, %v2409
    %v4170 = vsel %vm3432, %v4122, %v2416
    %v4171 = vsel %vm3432, %v4123, %v2420
    %v4172 = vsel %vm3432, %v4124, %v2427
    %v4173 = vsel %vm3432, %v4125, %v2431
    %v4174 = vsel %vm3432, %v4126, %v2438
    %v4175 = vsel %vm3432, %v4127, %v2442
    %v4176 = vsel %vm3432, %v4128, %v2449
    %v4177 = vsel %vm3432, %v4129, %v2453
    %v4178 = vsel %vm3432, %v4130, %v2460
    %v4179 = vsel %vm3432, %v4131, %v2464
    %v4180 = vsel %vm3432, %v4132, %v2987
    %v4181 = vsel %vm3432, %v4133, %v2991
    %v4182 = vsel %vm3432, %v4134, %v3041
    %v4183 = vsel %vm3432, %v4135, %v3045
    %v4184 = vsel %vm3432, %v4136, %v2493
    %v4185 = vsel %vm3432, %v4137, %v2497
    %v4186 = vsel %vm3432, %v4138, %v2504
    %v4187 = vsel %vm3432, %v4139, %v2508
    %v4188 = vsel %vm3432, %v4140, %v2515
    %v4189 = vsel %vm3432, %v4141, %v2519
    %v4190 = vsel %vm3432, %v4142, %v2526
    %v4191 = vsel %vm3432, %v4143, %v2530
    %v4192 = vsel %vm3432, %v4144, %v2537
    %v4193 = vsel %vm3432, %v4145, %v2541
    %v4194 = vsel %vm3432, %v4146, %v2548
    %v4195 = vsel %vm3432, %v4147, %v2552
    %v4196 = vsel %vm3432, %v4148, %v2559
    %v4197 = vsel %vm3432, %v4149, %v2563
    %v4198 = vsel %vm3432, %v4150, %v2570
    %v4199 = vsel %vm3432, %v4151, %v2574
    %v4200 = vsel %vm3432, %v4152, %v2581
    %v4201 = vsel %vm3432, %v4153, %v2585
    %v4202 = vsel %vm3432, %v4154, %v2592
    %v4203 = vsel %vm3432, %v4155, %v2596
    %v4204 = vsel %vm3432, %v4156, %v2998
    %v4205 = vsel %vm3432, %v4157, %v3002
    %v4206 = vsel %vm3432, %v4158, %v3052
    %v4207 = vsel %vm3432, %v4159, %v3056
    %v4208 = vsel %vm3481, %v4160, %v2616
    %v4209 = vsel %vm3481, %v4161, %v2620
    %v4210 = vsel %vm3481, %v4162, %v2624
    %v4211 = vsel %vm3481, %v4163, %v2628
    %v4212 = vsel %vm3481, %v4164, %v2632
    %v4213 = vsel %vm3481, %v4165, %v2636
    %v4214 = vsel %vm3481, %v4166, %v2640
    %v4215 = vsel %vm3481, %v4167, %v2644
    %v4216 = vsel %vm3481, %v4168, %v2648
    %v4217 = vsel %vm3481, %v4169, %v2652
    %v4218 = vsel %vm3481, %v4170, %v2656
    %v4219 = vsel %vm3481, %v4171, %v2660
    %v4220 = vsel %vm3481, %v4172, %v2664
    %v4221 = vsel %vm3481, %v4173, %v2668
    %v4222 = vsel %vm3481, %v4174, %v2672
    %v4223 = vsel %vm3481, %v4175, %v2676
    %v4224 = vsel %vm3481, %v4176, %v2680
    %v4225 = vsel %vm3481, %v4177, %v2684
    %v4226 = vsel %vm3481, %v4178, %v2688
    %v4227 = vsel %vm3481, %v4179, %v2692
    %v4228 = vsel %vm3481, %v4180, %v3006
    %v4229 = vsel %vm3481, %v4181, %v3010
    %v4230 = vsel %vm3481, %v4182, %v3060
    %v4231 = vsel %vm3481, %v4183, %v3064
    %v4232 = vsel %vm3481, %v4184, %v2712
    %v4233 = vsel %vm3481, %v4185, %v2716
    %v4234 = vsel %vm3481, %v4186, %v2720
    %v4235 = vsel %vm3481, %v4187, %v2724
    %v4236 = vsel %vm3481, %v4188, %v2728
    %v4237 = vsel %vm3481, %v4189, %v2732
    %v4238 = vsel %vm3481, %v4190, %v2736
    %v4239 = vsel %vm3481, %v4191, %v2740
    %v4240 = vsel %vm3481, %v4192, %v2744
    %v4241 = vsel %vm3481, %v4193, %v2748
    %v4242 = vsel %vm3481, %v4194, %v2752
    %v4243 = vsel %vm3481, %v4195, %v2756
    %v4244 = vsel %vm3481, %v4196, %v2760
    %v4245 = vsel %vm3481, %v4197, %v2764
    %v4246 = vsel %vm3481, %v4198, %v2768
    %v4247 = vsel %vm3481, %v4199, %v2772
    %v4248 = vsel %vm3481, %v4200, %v2776
    %v4249 = vsel %vm3481, %v4201, %v2780
    %v4250 = vsel %vm3481, %v4202, %v2784
    %v4251 = vsel %vm3481, %v4203, %v2788
    %v4252 = vsel %vm3481, %v4204, %v3014
    %v4253 = vsel %vm3481, %v4205, %v3018
    %v4254 = vsel %vm3481, %v4206, %v3068
    %v4255 = vsel %vm3481, %v4207, %v3072
    %v4256 = vsel %vm3530, %v4208, %v2808
    %v4257 = vsel %vm3530, %v4209, %v2812
    %v4258 = vsel %vm3530, %v4210, %v2816
    %v4259 = vsel %vm3530, %v4211, %v2820
    %v4260 = vsel %vm3530, %v4212, %v2824
    %v4261 = vsel %vm3530, %v4213, %v2828
    %v4262 = vsel %vm3530, %v4214, %v2832
    %v4263 = vsel %vm3530, %v4215, %v2836
    %v4264 = vsel %vm3530, %v4216, %v2840
    %v4265 = vsel %vm3530, %v4217, %v2844
    %v4266 = vsel %vm3530, %v4218, %v2848
    %v4267 = vsel %vm3530, %v4219, %v2852
    %v4268 = vsel %vm3530, %v4220, %v2856
    %v4269 = vsel %vm3530, %v4221, %v2860
    %v4270 = vsel %vm3530, %v4222, %v2864
    %v4271 = vsel %vm3530, %v4223, %v2868
    %v4272 = vsel %vm3530, %v4224, %v2872
    %v4273 = vsel %vm3530, %v4225, %v2876
    %v4274 = vsel %vm3530, %v4226, %v2880
    %v4275 = vsel %vm3530, %v4227, %v2884
    %v4276 = vsel %vm3530, %v4228, %v3022
    %v4277 = vsel %vm3530, %v4229, %v3026
    %v4278 = vsel %vm3530, %v4230, %v3076
    %v4279 = vsel %vm3530, %v4231, %v3080
    %v4280 = vsel %vm3530, %v4232, %v2904
    %v4281 = vsel %vm3530, %v4233, %v2908
    %v4282 = vsel %vm3530, %v4234, %v2912
    %v4283 = vsel %vm3530, %v4235, %v2916
    %v4284 = vsel %vm3530, %v4236, %v2920
    %v4285 = vsel %vm3530, %v4237, %v2924
    %v4286 = vsel %vm3530, %v4238, %v2928
    %v4287 = vsel %vm3530, %v4239, %v2932
    %v4288 = vsel %vm3530, %v4240, %v2936
    %v4289 = vsel %vm3530, %v4241, %v2940
    %v4290 = vsel %vm3530, %v4242, %v2944
    %v4291 = vsel %vm3530, %v4243, %v2948
    %v4292 = vsel %vm3530, %v4244, %v2952
    %v4293 = vsel %vm3530, %v4245, %v2956
    %v4294 = vsel %vm3530, %v4246, %v2960
    %v4295 = vsel %vm3530, %v4247, %v2964
    %v4296 = vsel %vm3530, %v4248, %v2968
    %v4297 = vsel %vm3530, %v4249, %v2972
    %v4298 = vsel %vm3530, %v4250, %v2976
    %v4299 = vsel %vm3530, %v4251, %v2980
    %v4300 = vsel %vm3530, %v4252, %v3030
    %v4301 = vsel %vm3530, %v4253, %v3034
    %v4302 = vsel %vm3530, %v4254, %v3084
    %v4303 = vsel %vm3530, %v4255, %v3088
    %4352 = vrot.lane.b32.xlu0 %v4256, 16
    %v4353 = vpop.permute.xlu0 %4352
    %4354 = vrot.lane.b32.xlu0 %v4257, 16
    %v4355 = vpop.permute.xlu0 %4354
    %4356 = vrot.lane.b32.xlu0 %v4258, 16
    %v4357 = vpop.permute.xlu0 %4356
    %4358 = vrot.lane.b32.xlu0 %v4259, 16
    %v4359 = vpop.permute.xlu0 %4358
    %4360 = vrot.lane.b32.xlu0 %v4260, 16
    %v4361 = vpop.permute.xlu0 %4360
    %4362 = vrot.lane.b32.xlu0 %v4261, 16
    %v4363 = vpop.permute.xlu0 %4362
    %4364 = vrot.lane.b32.xlu0 %v4262, 16
    %v4365 = vpop.permute.xlu0 %4364
    %4366 = vrot.lane.b32.xlu0 %v4263, 16
    %v4367 = vpop.permute.xlu0 %4366
    %4368 = vrot.lane.b32.xlu0 %v4264, 16
    %v4369 = vpop.permute.xlu0 %4368
    %4370 = vrot.lane.b32.xlu0 %v4265, 16
    %v4371 = vpop.permute.xlu0 %4370
    %4372 = vrot.lane.b32.xlu0 %v4266, 16
    %v4373 = vpop.permute.xlu0 %4372
    %4374 = vrot.lane.b32.xlu0 %v4267, 16
    %v4375 = vpop.permute.xlu0 %4374
    %4376 = vrot.lane.b32.xlu0 %v4268, 16
    %v4377 = vpop.permute.xlu0 %4376
    %4378 = vrot.lane.b32.xlu0 %v4269, 16
    %v4379 = vpop.permute.xlu0 %4378
    %4380 = vrot.lane.b32.xlu0 %v4270, 16
    %v4381 = vpop.permute.xlu0 %4380
    %4382 = vrot.lane.b32.xlu0 %v4271, 16
    %v4383 = vpop.permute.xlu0 %4382
    %4384 = vrot.lane.b32.xlu0 %v4272, 16
    %v4385 = vpop.permute.xlu0 %4384
    %4386 = vrot.lane.b32.xlu0 %v4273, 16
    %v4387 = vpop.permute.xlu0 %4386
    %4388 = vrot.lane.b32.xlu0 %v4274, 16
    %v4389 = vpop.permute.xlu0 %4388
    %4390 = vrot.lane.b32.xlu0 %v4275, 16
    %v4391 = vpop.permute.xlu0 %4390
    %4392 = vrot.lane.b32.xlu0 %v4276, 16
    %v4393 = vpop.permute.xlu0 %4392
    %4394 = vrot.lane.b32.xlu0 %v4277, 16
    %v4395 = vpop.permute.xlu0 %4394
    %4396 = vrot.lane.b32.xlu0 %v4278, 16
    %v4397 = vpop.permute.xlu0 %4396
    %4398 = vrot.lane.b32.xlu0 %v4279, 16
    %v4399 = vpop.permute.xlu0 %4398
    %4400 = vrot.lane.b32.xlu0 %v4280, 16
    %v4401 = vpop.permute.xlu0 %4400
    %4402 = vrot.lane.b32.xlu0 %v4281, 16
    %v4403 = vpop.permute.xlu0 %4402
    %4404 = vrot.lane.b32.xlu0 %v4282, 16
    %v4405 = vpop.permute.xlu0 %4404
    %4406 = vrot.lane.b32.xlu0 %v4283, 16
    %v4407 = vpop.permute.xlu0 %4406
    %4408 = vrot.lane.b32.xlu0 %v4284, 16
    %v4409 = vpop.permute.xlu0 %4408
    %4410 = vrot.lane.b32.xlu0 %v4285, 16
    %v4411 = vpop.permute.xlu0 %4410
    %4412 = vrot.lane.b32.xlu0 %v4286, 16
    %v4413 = vpop.permute.xlu0 %4412
    %4414 = vrot.lane.b32.xlu0 %v4287, 16
    %v4415 = vpop.permute.xlu0 %4414
    %4416 = vrot.lane.b32.xlu0 %v4288, 16
    %v4417 = vpop.permute.xlu0 %4416
    %4418 = vrot.lane.b32.xlu0 %v4289, 16
    %v4419 = vpop.permute.xlu0 %4418
    %4420 = vrot.lane.b32.xlu0 %v4290, 16
    %v4421 = vpop.permute.xlu0 %4420
    %4422 = vrot.lane.b32.xlu0 %v4291, 16
    %v4423 = vpop.permute.xlu0 %4422
    %4424 = vrot.lane.b32.xlu0 %v4292, 16
    %v4425 = vpop.permute.xlu0 %4424
    %4426 = vrot.lane.b32.xlu0 %v4293, 16
    %v4427 = vpop.permute.xlu0 %4426
    %4428 = vrot.lane.b32.xlu0 %v4294, 16
    %v4429 = vpop.permute.xlu0 %4428
    %4430 = vrot.lane.b32.xlu0 %v4295, 16
    %v4431 = vpop.permute.xlu0 %4430
    %4432 = vrot.lane.b32.xlu0 %v4296, 16
    %v4433 = vpop.permute.xlu0 %4432
    %4434 = vrot.lane.b32.xlu0 %v4297, 16
    %v4435 = vpop.permute.xlu0 %4434
    %4436 = vrot.lane.b32.xlu0 %v4298, 16
    %v4437 = vpop.permute.xlu0 %4436
    %4438 = vrot.lane.b32.xlu0 %v4299, 16
    %v4439 = vpop.permute.xlu0 %4438
    %4440 = vrot.lane.b32.xlu0 %v4300, 16
    %v4441 = vpop.permute.xlu0 %4440
    %4442 = vrot.lane.b32.xlu0 %v4301, 16
    %v4443 = vpop.permute.xlu0 %4442
    %4444 = vrot.lane.b32.xlu0 %v4302, 16
    %v4445 = vpop.permute.xlu0 %4444
    %4446 = vrot.lane.b32.xlu0 %v4303, 16
    %v4447 = vpop.permute.xlu0 %4446
    %vm4496 = vcmask 130048
    %v4497 = vsel %vm4496, %v3776, %v4353
    %v4498 = vsel %vm4496, %v3777, %v4355
    %v4499 = vsel %vm4496, %v3778, %v4357
    %v4500 = vsel %vm4496, %v3779, %v4359
    %v4501 = vsel %vm4496, %v3780, %v4361
    %v4502 = vsel %vm4496, %v3781, %v4363
    %v4503 = vsel %vm4496, %v3782, %v4365
    %v4504 = vsel %vm4496, %v3783, %v4367
    %v4505 = vsel %vm4496, %v3784, %v4369
    %v4506 = vsel %vm4496, %v3785, %v4371
    %v4507 = vsel %vm4496, %v3786, %v4373
    %v4508 = vsel %vm4496, %v3787, %v4375
    %v4509 = vsel %vm4496, %v3788, %v4377
    %v4510 = vsel %vm4496, %v3789, %v4379
    %v4511 = vsel %vm4496, %v3790, %v4381
    %v4512 = vsel %vm4496, %v3791, %v4383
    %v4513 = vsel %vm4496, %v3792, %v4385
    %v4514 = vsel %vm4496, %v3793, %v4387
    %v4515 = vsel %vm4496, %v3794, %v4389
    %v4516 = vsel %vm4496, %v3795, %v4391
    %v4517 = vsel %vm4496, %v3796, %v4393
    %v4518 = vsel %vm4496, %v3797, %v4395
    %v4519 = vsel %vm4496, %v3798, %v4397
    %v4520 = vsel %vm4496, %v3799, %v4399
    %v4521 = vsel %vm4496, %v3800, %v4401
    %v4522 = vsel %vm4496, %v3801, %v4403
    %v4523 = vsel %vm4496, %v3802, %v4405
    %v4524 = vsel %vm4496, %v3803, %v4407
    %v4525 = vsel %vm4496, %v3804, %v4409
    %v4526 = vsel %vm4496, %v3805, %v4411
    %v4527 = vsel %vm4496, %v3806, %v4413
    %v4528 = vsel %vm4496, %v3807, %v4415
    %v4529 = vsel %vm4496, %v3808, %v4417
    %v4530 = vsel %vm4496, %v3809, %v4419
    %v4531 = vsel %vm4496, %v3810, %v4421
    %v4532 = vsel %vm4496, %v3811, %v4423
    %v4533 = vsel %vm4496, %v3812, %v4425
    %v4534 = vsel %vm4496, %v3813, %v4427
    %v4535 = vsel %vm4496, %v3814, %v4429
    %v4536 = vsel %vm4496, %v3815, %v4431
    %v4537 = vsel %vm4496, %v3816, %v4433
    %v4538 = vsel %vm4496, %v3817, %v4435
    %v4539 = vsel %vm4496, %v3818, %v4437
    %v4540 = vsel %vm4496, %v3819, %v4439
    %v4541 = vsel %vm4496, %v3820, %v4441
    %v4542 = vsel %vm4496, %v3821, %v4443
    %v4543 = vsel %vm4496, %v3822, %v4445
    %v4544 = vsel %vm4496, %v3823, %v4447
    %v4593 = vcombine.high %v4497, %v4497
    %v4594 = vcombine.high %v4499, %v4499
    %v4595 = vcombine.high %v4501, %v4501
    %v4596 = vcombine.high %v4503, %v4503
    %v4597 = vcombine.high %v4505, %v4505
    %v4598 = vcombine.high %v4507, %v4507
    %v4599 = vcombine.high %v4509, %v4509
    %v4600 = vcombine.high %v4511, %v4511
    %v4601 = vcombine.high %v4513, %v4513
    %v4602 = vcombine.high %v4515, %v4515
    %v4603 = vcombine.high %v4517, %v4517
    %v4604 = vcombine.high %v4519, %v4519
    %v4605 = vcombine.high %v4521, %v4521
    %v4606 = vcombine.high %v4523, %v4523
    %v4607 = vcombine.high %v4525, %v4525
    %v4608 = vcombine.high %v4527, %v4527
    %v4609 = vcombine.high %v4529, %v4529
    %v4610 = vcombine.high %v4531, %v4531
    %v4611 = vcombine.high %v4533, %v4533
    %v4612 = vcombine.high %v4535, %v4535
    %v4613 = vcombine.high %v4537, %v4537
    %v4614 = vcombine.high %v4539, %v4539
    %v4615 = vcombine.high %v4541, %v4541
    %v4616 = vcombine.high %v4543, %v4543
    %v4617 = vld [vmem:[#allocation9] sm:$0xff]
    %v4618 = vld [vmem:[#allocation9 + $0x8] sm:$0xff]
    %v4619 = vld [vmem:[#allocation9 + $0x10] sm:$0xff]
    %v4620 = vld [vmem:[#allocation9 + $0x18] sm:$0x7]
    %v4621 = vld [vmem:[%s4] sm:$0x1]
    %v4623 = vlaneseq
    %v4624 = vshrl.u32 %v4623, 7
    %v4625 = vsub.s32 0, %v4624
    %v4626 = vrot.slane %v4621, %v4625
    %v4628 = vcombine.low %v4497, %v4593
    %v4629 = vcombine.low %v4498, %v4499
    %v4630 = vcombine.low %v4594, %v4500
    %v4631 = vcombine.low %v4501, %v4595
    %v4632 = vcombine.low %v4502, %v4503
    %v4633 = vcombine.low %v4596, %v4504
    %v4634 = vcombine.low %v4505, %v4597
    %v4635 = vcombine.low %v4506, %v4507
    %v4636 = vcombine.low %v4598, %v4508
    %v4637 = vcombine.low %v4509, %v4599
    %v4638 = vcombine.low %v4510, %v4511
    %v4639 = vcombine.low %v4600, %v4512
    %v4640 = vcombine.low %v4513, %v4601
    %v4641 = vcombine.low %v4514, %v4515
    %v4642 = vcombine.low %v4602, %v4516
    %v4643 = vcombine.low %v4517, %v4603
    %v4644 = vcombine.low %v4518, %v4519
    %v4645 = vcombine.low %v4604, %v4520
    %v4646 = vcombine.low %v4521, %v4605
    %v4647 = vcombine.low %v4522, %v4523
    %v4648 = vcombine.low %v4606, %v4524
    %v4649 = vcombine.low %v4525, %v4607
    %v4650 = vcombine.low %v4526, %v4527
    %v4651 = vcombine.low %v4608, %v4528
    %v4652 = vcombine.low %v4529, %v4609
    %v4653 = vcombine.low %v4530, %v4531
    %v4654 = vcombine.low %v4610, %v4532
    %v4655 = vcombine.low %v4533, %v4611
    %v4656 = vcombine.low %v4534, %v4535
    %v4657 = vcombine.low %v4612, %v4536
    %v4658 = vcombine.low %v4537, %v4613
    %v4659 = vcombine.low %v4538, %v4539
    %v4660 = vcombine.low %v4614, %v4540
    %v4661 = vcombine.low %v4541, %v4615
    %v4662 = vcombine.low %v4542, %v4543
    %v4663 = vcombine.low %v4616, %v4544
    %vm4664 = vcmask 220160
    %v4665 = vsel %vm4664, %v4628, 0
    %v4667 = vsel %vm4664, %v4629, 0
    %v4669 = vsel %vm4664, %v4630, 0
    %v4671 = vsel %vm4664, %v4631, 0
    %v4673 = vsel %vm4664, %v4632, 0
    %v4675 = vsel %vm4664, %v4633, 0
    %v4677 = vsel %vm4664, %v4634, 0
    %v4679 = vsel %vm4664, %v4635, 0
    %v4681 = vsel %vm4664, %v4636, 0
    %v4683 = vsel %vm4664, %v4637, 0
    %v4685 = vsel %vm4664, %v4638, 0
    %v4687 = vsel %vm4664, %v4639, 0
    %v4689 = vsel %vm4664, %v4640, 0
    %v4691 = vsel %vm4664, %v4641, 0
    %v4693 = vsel %vm4664, %v4642, 0
    %v4695 = vsel %vm4664, %v4643, 0
    %v4697 = vsel %vm4664, %v4644, 0
    %v4699 = vsel %vm4664, %v4645, 0
    %v4701 = vsel %vm4664, %v4646, 0
    %v4703 = vsel %vm4664, %v4647, 0
    %v4705 = vsel %vm4664, %v4648, 0
    %v4707 = vsel %vm4664, %v4649, 0
    %v4709 = vsel %vm4664, %v4650, 0
    %v4711 = vsel %vm4664, %v4651, 0
    %v4713 = vsel %vm4664, %v4652, 0
    %v4715 = vsel %vm4664, %v4653, 0
    %v4717 = vsel %vm4664, %v4654, 0
    %v4719 = vsel %vm4664, %v4655, 0
    %v4721 = vsel %vm4664, %v4656, 0
    %v4723 = vsel %vm4664, %v4657, 0
    %v4725 = vsel %vm4664, %v4658, 0
    %v4727 = vsel %vm4664, %v4659, 0
    %v4729 = vsel %vm4664, %v4660, 0
    %v4731 = vsel %vm4664, %v4661, 0
    %v4733 = vsel %vm4664, %v4662, 0
    %v4735 = vsel %vm4664, %v4663, 0
    %vm4737 = vcmask 1042432
    %v4739 = vsel %vm4737, %v4620, 0
    %4741 = vmatprep.subr.mxu0 0.0
    %4742 = vmatpush1.msra.mxu0 0.0
    %4743 = vmatprep.subr.mxu0 0.0
    %4744 = vmatpush1.msra.mxu0 0.0
    %4745 = vmatprep.subr.mxu0 0.0
    %4746 = vmatpush1.msra.mxu0 0.0
    %4747 = vmatprep.subr.mxu0 0.0
    %4748 = vmatpush1.msra.mxu0 0.0
    %4749 = vmatprep.subr.mxu0 0.0
    %4750 = vmatpush1.msra.mxu0 0.0
    %4751 = vmatprep.subr.mxu0 0.0
    %4752 = vmatpush1.msra.mxu0 0.0
    %4753 = vmatprep.subr.mxu0 0.0
    %4754 = vmatpush1.msra.mxu0 0.0
    %4755 = vmatprep.subr.mxu0 0.0
    %4756 = vmatpush1.msra.mxu0 0.0
    %4757 = vmatprep.subr.mxu0 0.0
    %4758 = vmatpush1.msra.mxu0 0.0
    %4759 = vmatprep.subr.mxu0 0.0
    %4760 = vmatpush1.msra.mxu0 0.0
    %4761 = vmatprep.subr.mxu0 0.0
    %4762 = vmatpush1.msra.mxu0 0.0
    %4763 = vmatprep.subr.mxu0 0.0
    %4764 = vmatpush1.msra.mxu0 0.0
    %4765 = vmatprep.subr.mxu0 0.0
    %4766 = vmatpush1.msra.mxu0 %v4739
    %4767 = vmatprep.subr.mxu0 0.0
    %4768 = vmatpush1.msra.mxu0 %v4619
    %4769 = vmatprep.subr.mxu0 0.0
    %4770 = vmatpush1.msra.mxu0 %v4618
    %4771 = vmatprep.subr.mxu0 0.0
    %4772 = vmatpush1.msra.mxu0 %v4617
    %4773 = vmatprep.subr.mxu0 0.0
    %4774 = vmatpush2.msra.mxu0 0.0
    %4775 = vmatprep.subr.mxu0 0.0
    %4776 = vmatpush2.msra.mxu0 0.0
    %4777 = vmatprep.subr.mxu0 0.0
    %4778 = vmatpush2.msra.mxu0 0.0
    %4779 = vmatprep.subr.mxu0 0.0
    %4780 = vmatpush2.msra.mxu0 0.0
    %4781 = vmatprep.subr.mxu0 0.0
    %4782 = vmatpush2.msra.mxu0 0.0
    %4783 = vmatprep.subr.mxu0 0.0
    %4784 = vmatpush2.msra.mxu0 0.0
    %4785 = vmatprep.subr.mxu0 0.0
    %4786 = vmatpush2.msra.mxu0 0.0
    %4787 = vmatprep.subr.mxu0 0.0
    %4788 = vmatpush2.msra.mxu0 0.0
    %4789 = vmatprep.subr.mxu0 0.0
    %4790 = vmatpush2.msra.mxu0 0.0
    %4791 = vmatprep.subr.mxu0 0.0
    %4792 = vmatpush2.msra.mxu0 0.0
    %4793 = vmatprep.subr.mxu0 0.0
    %4794 = vmatpush2.msra.mxu0 0.0
    %4795 = vmatprep.subr.mxu0 0.0
    %4796 = vmatpush2.msra.mxu0 0.0
    %4797 = vmatprep.subr.mxu0 0.0
    %4798 = vmatpush2.msra.mxu0 0.0
    %4799 = vmatprep.subr.mxu0 0.0
    %4800 = vmatpush2.msra.mxu0 0.0
    %4801 = vmatprep.subr.mxu0 0.0
    %4802 = vmatpush2.msra.mxu0 0.0
    %4803 = vmatprep.subr.mxu0 0.0
    %4804 = vmatpush2.msra.mxu0 0.0
    %4805 = vmatprep.mubr.f32.mxu0 0.0
    %4806 = vmatmul.mubr.f32.gmra.mxu0 %v4665
    %v4807 = vpop.f32.mrf.mxu0
    %v4808 = vadd.f32 %v4626, %v4807
    %v4809 = vpop.f32.mrf.mxu0
    %4810 = vmatprep.mubr.f32.mxu0 0.0
    %4811 = vmatmul.mubr.f32.gmra.mxu0 %v4667
    %v4812 = vpop.f32.mrf.mxu0
    %v4813 = vadd.f32 %v4626, %v4812
    %v4814 = vpop.f32.mrf.mxu0
    %4815 = vmatprep.mubr.f32.mxu0 0.0
    %4816 = vmatmul.mubr.f32.gmra.mxu0 %v4669
    %v4817 = vpop.f32.mrf.mxu0
    %v4818 = vadd.f32 %v4626, %v4817
    %v4819 = vpop.f32.mrf.mxu0
    %4820 = vmatprep.mubr.f32.mxu0 0.0
    %4821 = vmatmul.mubr.f32.gmra.mxu0 %v4671
    %v4822 = vpop.f32.mrf.mxu0
    %v4823 = vadd.f32 %v4626, %v4822
    %v4824 = vpop.f32.mrf.mxu0
    %4825 = vmatprep.mubr.f32.mxu0 0.0
    %4826 = vmatmul.mubr.f32.gmra.mxu0 %v4673
    %v4827 = vpop.f32.mrf.mxu0
    %v4828 = vadd.f32 %v4626, %v4827
    %v4829 = vpop.f32.mrf.mxu0
    %4830 = vmatprep.mubr.f32.mxu0 0.0
    %4831 = vmatmul.mubr.f32.gmra.mxu0 %v4675
    %v4832 = vpop.f32.mrf.mxu0
    %v4833 = vadd.f32 %v4626, %v4832
    %v4834 = vpop.f32.mrf.mxu0
    %4835 = vmatprep.mubr.f32.mxu0 0.0
    %4836 = vmatmul.mubr.f32.gmra.mxu0 %v4677
    %v4837 = vpop.f32.mrf.mxu0
    %v4838 = vadd.f32 %v4626, %v4837
    %v4839 = vpop.f32.mrf.mxu0
    %4840 = vmatprep.mubr.f32.mxu0 0.0
    %4841 = vmatmul.mubr.f32.gmra.mxu0 %v4679
    %v4842 = vpop.f32.mrf.mxu0
    %v4843 = vadd.f32 %v4626, %v4842
    %v4844 = vpop.f32.mrf.mxu0
    %4845 = vmatprep.mubr.f32.mxu0 0.0
    %4846 = vmatmul.mubr.f32.gmra.mxu0 %v4681
    %v4847 = vpop.f32.mrf.mxu0
    %v4848 = vadd.f32 %v4626, %v4847
    %v4849 = vpop.f32.mrf.mxu0
    %4850 = vmatprep.mubr.f32.mxu0 0.0
    %4851 = vmatmul.mubr.f32.gmra.mxu0 %v4683
    %v4852 = vpop.f32.mrf.mxu0
    %v4853 = vadd.f32 %v4626, %v4852
    %v4854 = vpop.f32.mrf.mxu0
    %4855 = vmatprep.mubr.f32.mxu0 0.0
    %4856 = vmatmul.mubr.f32.gmra.mxu0 %v4685
    %v4857 = vpop.f32.mrf.mxu0
    %v4858 = vadd.f32 %v4626, %v4857
    %v4859 = vpop.f32.mrf.mxu0
    %4860 = vmatprep.mubr.f32.mxu0 0.0
    %4861 = vmatmul.mubr.f32.gmra.mxu0 %v4687
    %v4862 = vpop.f32.mrf.mxu0
    %v4863 = vadd.f32 %v4626, %v4862
    %v4864 = vpop.f32.mrf.mxu0
    %4865 = vmatprep.mubr.f32.mxu0 0.0
    %4866 = vmatmul.mubr.f32.gmra.mxu0 %v4689
    %v4867 = vpop.f32.mrf.mxu0
    %v4868 = vadd.f32 %v4626, %v4867
    %v4869 = vpop.f32.mrf.mxu0
    %4870 = vmatprep.mubr.f32.mxu0 0.0
    %4871 = vmatmul.mubr.f32.gmra.mxu0 %v4691
    %v4872 = vpop.f32.mrf.mxu0
    %v4873 = vadd.f32 %v4626, %v4872
    %v4874 = vpop.f32.mrf.mxu0
    %4875 = vmatprep.mubr.f32.mxu0 0.0
    %4876 = vmatmul.mubr.f32.gmra.mxu0 %v4693
    %v4877 = vpop.f32.mrf.mxu0
    %v4878 = vadd.f32 %v4626, %v4877
    %v4879 = vpop.f32.mrf.mxu0
    %4880 = vmatprep.mubr.f32.mxu0 0.0
    %4881 = vmatmul.mubr.f32.gmra.mxu0 %v4695
    %v4882 = vpop.f32.mrf.mxu0
    %v4883 = vadd.f32 %v4626, %v4882
    %v4884 = vpop.f32.mrf.mxu0
    %4885 = vmatprep.mubr.f32.mxu0 0.0
    %4886 = vmatmul.mubr.f32.gmra.mxu0 %v4697
    %v4887 = vpop.f32.mrf.mxu0
    %v4888 = vadd.f32 %v4626, %v4887
    %v4889 = vpop.f32.mrf.mxu0
    %4890 = vmatprep.mubr.f32.mxu0 0.0
    %4891 = vmatmul.mubr.f32.gmra.mxu0 %v4699
    %v4892 = vpop.f32.mrf.mxu0
    %v4893 = vadd.f32 %v4626, %v4892
    %v4894 = vpop.f32.mrf.mxu0
    %4895 = vmatprep.mubr.f32.mxu0 0.0
    %4896 = vmatmul.mubr.f32.gmra.mxu0 %v4701
    %v4897 = vpop.f32.mrf.mxu0
    %v4898 = vadd.f32 %v4626, %v4897
    %v4899 = vpop.f32.mrf.mxu0
    %4900 = vmatprep.mubr.f32.mxu0 0.0
    %4901 = vmatmul.mubr.f32.gmra.mxu0 %v4703
    %v4902 = vpop.f32.mrf.mxu0
    %v4903 = vadd.f32 %v4626, %v4902
    %v4904 = vpop.f32.mrf.mxu0
    %4905 = vmatprep.mubr.f32.mxu0 0.0
    %4906 = vmatmul.mubr.f32.gmra.mxu0 %v4705
    %v4907 = vpop.f32.mrf.mxu0
    %v4908 = vadd.f32 %v4626, %v4907
    %v4909 = vpop.f32.mrf.mxu0
    %4910 = vmatprep.mubr.f32.mxu0 0.0
    %4911 = vmatmul.mubr.f32.gmra.mxu0 %v4707
    %v4912 = vpop.f32.mrf.mxu0
    %v4913 = vadd.f32 %v4626, %v4912
    %v4914 = vpop.f32.mrf.mxu0
    %4915 = vmatprep.mubr.f32.mxu0 0.0
    %4916 = vmatmul.mubr.f32.gmra.mxu0 %v4709
    %v4917 = vpop.f32.mrf.mxu0
    %v4918 = vadd.f32 %v4626, %v4917
    %v4919 = vpop.f32.mrf.mxu0
    %4920 = vmatprep.mubr.f32.mxu0 0.0
    %4921 = vmatmul.mubr.f32.gmra.mxu0 %v4711
    %v4922 = vpop.f32.mrf.mxu0
    %v4923 = vadd.f32 %v4626, %v4922
    %v4924 = vpop.f32.mrf.mxu0
    %4925 = vmatprep.mubr.f32.mxu0 0.0
    %4926 = vmatmul.mubr.f32.gmra.mxu0 %v4713
    %v4927 = vpop.f32.mrf.mxu0
    %v4928 = vadd.f32 %v4626, %v4927
    %v4929 = vpop.f32.mrf.mxu0
    %4930 = vmatprep.mubr.f32.mxu0 0.0
    %4931 = vmatmul.mubr.f32.gmra.mxu0 %v4715
    %v4932 = vpop.f32.mrf.mxu0
    %v4933 = vadd.f32 %v4626, %v4932
    %v4934 = vpop.f32.mrf.mxu0
    %4935 = vmatprep.mubr.f32.mxu0 0.0
    %4936 = vmatmul.mubr.f32.gmra.mxu0 %v4717
    %v4937 = vpop.f32.mrf.mxu0
    %v4938 = vadd.f32 %v4626, %v4937
    %v4939 = vpop.f32.mrf.mxu0
    %4940 = vmatprep.mubr.f32.mxu0 0.0
    %4941 = vmatmul.mubr.f32.gmra.mxu0 %v4719
    %v4942 = vpop.f32.mrf.mxu0
    %v4943 = vadd.f32 %v4626, %v4942
    %v4944 = vpop.f32.mrf.mxu0
    %4945 = vmatprep.mubr.f32.mxu0 0.0
    %4946 = vmatmul.mubr.f32.gmra.mxu0 %v4721
    %v4947 = vpop.f32.mrf.mxu0
    %v4948 = vadd.f32 %v4626, %v4947
    %v4949 = vpop.f32.mrf.mxu0
    %4950 = vmatprep.mubr.f32.mxu0 0.0
    %4951 = vmatmul.mubr.f32.gmra.mxu0 %v4723
    %v4952 = vpop.f32.mrf.mxu0
    %v4953 = vadd.f32 %v4626, %v4952
    %v4954 = vpop.f32.mrf.mxu0
    %4955 = vmatprep.mubr.f32.mxu0 0.0
    %4956 = vmatmul.mubr.f32.gmra.mxu0 %v4725
    %v4957 = vpop.f32.mrf.mxu0
    %v4958 = vadd.f32 %v4626, %v4957
    %v4959 = vpop.f32.mrf.mxu0
    %4960 = vmatprep.mubr.f32.mxu0 0.0
    %4961 = vmatmul.mubr.f32.gmra.mxu0 %v4727
    %v4962 = vpop.f32.mrf.mxu0
    %v4963 = vadd.f32 %v4626, %v4962
    %v4964 = vpop.f32.mrf.mxu0
    %4965 = vmatprep.mubr.f32.mxu0 0.0
    %4966 = vmatmul.mubr.f32.gmra.mxu0 %v4729
    %v4967 = vpop.f32.mrf.mxu0
    %v4968 = vadd.f32 %v4626, %v4967
    %v4969 = vpop.f32.mrf.mxu0
    %4970 = vmatprep.mubr.f32.mxu0 0.0
    %4971 = vmatmul.mubr.f32.gmra.mxu0 %v4731
    %v4972 = vpop.f32.mrf.mxu0
    %v4973 = vadd.f32 %v4626, %v4972
    %v4974 = vpop.f32.mrf.mxu0
    %4975 = vmatprep.mubr.f32.mxu0 0.0
    %4976 = vmatmul.mubr.f32.gmra.mxu0 %v4733
    %v4977 = vpop.f32.mrf.mxu0
    %v4978 = vadd.f32 %v4626, %v4977
    %v4979 = vpop.f32.mrf.mxu0
    %4980 = vmatprep.mubr.f32.mxu0 0.0
    %4981 = vmatmul.mubr.f32.gmra.mxu0 %v4735
    %v4982 = vpop.f32.mrf.mxu0
    %v4983 = vadd.f32 %v4626, %v4982
    %v4984 = vpop.f32.mrf.mxu0
    %4985 = vdwg.mxu0
    %v4986 = vmax.f32 %v4808, 0.0
    %v4987 = vmax.f32 %v4813, 0.0
    %v4988 = vmax.f32 %v4818, 0.0
    %v4989 = vmax.f32 %v4823, 0.0
    %v4990 = vmax.f32 %v4828, 0.0
    %v4991 = vmax.f32 %v4833, 0.0
    %v4992 = vmax.f32 %v4838, 0.0
    %v4993 = vmax.f32 %v4843, 0.0
    %v4994 = vmax.f32 %v4848, 0.0
    %v4995 = vmax.f32 %v4853, 0.0
    %v4996 = vmax.f32 %v4858, 0.0
    %v4997 = vmax.f32 %v4863, 0.0
    %v4998 = vmax.f32 %v4868, 0.0
    %v4999 = vmax.f32 %v4873, 0.0
    %v5000 = vmax.f32 %v4878, 0.0
    %v5001 = vmax.f32 %v4883, 0.0
    %v5002 = vmax.f32 %v4888, 0.0
    %v5003 = vmax.f32 %v4893, 0.0
    %v5004 = vmax.f32 %v4898, 0.0
    %v5005 = vmax.f32 %v4903, 0.0
    %v5006 = vmax.f32 %v4908, 0.0
    %v5007 = vmax.f32 %v4913, 0.0
    %v5008 = vmax.f32 %v4918, 0.0
    %v5009 = vmax.f32 %v4923, 0.0
    %v5010 = vmax.f32 %v4928, 0.0
    %v5011 = vmax.f32 %v4933, 0.0
    %v5012 = vmax.f32 %v4938, 0.0
    %v5013 = vmax.f32 %v4943, 0.0
    %v5014 = vmax.f32 %v4948, 0.0
    %v5015 = vmax.f32 %v4953, 0.0
    %v5016 = vmax.f32 %v4958, 0.0
    %v5017 = vmax.f32 %v4963, 0.0
    %v5018 = vmax.f32 %v4968, 0.0
    %v5019 = vmax.f32 %v4973, 0.0
    %v5020 = vmax.f32 %v4978, 0.0
    %v5021 = vmax.f32 %v4983, 0.0
    %v5022 = vadd.f32 %v4986, %v4987
    %v5023 = vadd.f32 %v5022, %v4988
    %v5024 = vadd.f32 %v5023, %v4989
    %v5025 = vadd.f32 %v5024, %v4990
    %v5026 = vadd.f32 %v5025, %v4991
    %v5027 = vadd.f32 %v5026, %v4992
    %v5028 = vadd.f32 %v5027, %v4993
    %v5029 = vadd.f32 %v5028, %v4994
    %v5030 = vadd.f32 %v5029, %v4995
    %v5031 = vadd.f32 %v5030, %v4996
    %v5032 = vadd.f32 %v5031, %v4997
    %v5033 = vadd.f32 %v5032, %v4998
    %v5034 = vadd.f32 %v5033, %v4999
    %v5035 = vadd.f32 %v5034, %v5000
    %v5036 = vadd.f32 %v5035, %v5001
    %v5037 = vadd.f32 %v5036, %v5002
    %v5038 = vadd.f32 %v5037, %v5003
    %v5039 = vrot.slane %v5038, 4
    %v5040 = vadd.f32 %v5038, %v5039
    %v5041 = vrot.slane %v5040, 2
    %v5042 = vadd.f32 %v5040, %v5041
    %v5043 = vrot.slane %v5042, 1
    %v5044 = vadd.f32 %v5042, %v5043
    %v5045 = vadd.f32 %v5004, %v5005
    %v5046 = vadd.f32 %v5045, %v5006
    %v5047 = vadd.f32 %v5046, %v5007
    %v5048 = vadd.f32 %v5047, %v5008
    %v5049 = vadd.f32 %v5048, %v5009
    %v5050 = vadd.f32 %v5049, %v5010
    %v5051 = vadd.f32 %v5050, %v5011
    %v5052 = vadd.f32 %v5051, %v5012
    %v5053 = vadd.f32 %v5052, %v5013
    %v5054 = vadd.f32 %v5053, %v5014
    %v5055 = vadd.f32 %v5054, %v5015
    %v5056 = vadd.f32 %v5055, %v5016
    %v5057 = vadd.f32 %v5056, %v5017
    %v5058 = vadd.f32 %v5057, %v5018
    %v5059 = vadd.f32 %v5058, %v5019
    %v5060 = vadd.f32 %v5059, %v5020
    %v5061 = vadd.f32 %v5060, %v5021
    %v5062 = vrot.slane %v5061, 4
    %v5063 = vadd.f32 %v5061, %v5062
    %v5064 = vrot.slane %v5063, 2
    %v5065 = vadd.f32 %v5063, %v5064
    %v5066 = vrot.slane %v5065, 1
    %v5067 = vadd.f32 %v5065, %v5066
    %v5068 = vld [vmem:[#allocation11] sm:$0xff]
    %v5069 = vld [vmem:[#allocation11 + $0x8] sm:$0xff]
    %v5070 = vld [vmem:[#allocation11 + $0x10] sm:$0xff]
    %v5071 = vld [vmem:[#allocation11 + $0x18] sm:$0xff]
    %v5072 = vld [vmem:[#allocation11 + $0x20] sm:$0xff]
    %v5073 = vld [vmem:[#allocation11 + $0x28] sm:$0xff]
    %v5074 = vld [vmem:[#allocation11 + $0x30] sm:$0xff]
    %v5075 = vld [vmem:[#allocation11 + $0x38] sm:$0xff]
    %v5076 = vld [vmem:[#allocation11 + $0x40] sm:$0xff]
    %v5077 = vld [vmem:[#allocation11 + $0x48] sm:$0xff]
    %v5078 = vld [vmem:[#allocation11 + $0x50] sm:$0xff]
    %v5079 = vld [vmem:[#allocation11 + $0x58] sm:$0xff]
    %v5080 = vld [vmem:[#allocation11 + $0x60] sm:$0xff]
    %v5081 = vld [vmem:[#allocation11 + $0x68] sm:$0xff]
    %v5082 = vld [vmem:[#allocation11 + $0x70] sm:$0xff]
    %v5083 = vld [vmem:[#allocation11 + $0x78] sm:$0xff]
    %v5084 = vld [vmem:[%s6] sm:$0x1]
    %v5086 = vlaneseq
    %v5087 = vshrl.u32 %v5086, 7
    %v5088 = vsub.s32 0, %v5087
    %v5089 = vrot.slane %v5084, %v5088
    %vm5093 = vcmask 1041409
    %v5094 = vsel %vm5093, %v5067, %v5044
    %5096 = vmatprep.subr.mxu0 0.0
    %5097 = vmatpush1.msra.mxu0 %v5083
    %5098 = vmatprep.subr.mxu0 0.0
    %5099 = vmatpush1.msra.mxu0 %v5082
    %5100 = vmatprep.subr.mxu0 0.0
    %5101 = vmatpush1.msra.mxu0 %v5081
    %5102 = vmatprep.subr.mxu0 0.0
    %5103 = vmatpush1.msra.mxu0 %v5080
    %5104 = vmatprep.subr.mxu0 0.0
    %5105 = vmatpush1.msra.mxu0 %v5079
    %5106 = vmatprep.subr.mxu0 0.0
    %5107 = vmatpush1.msra.mxu0 %v5078
    %5108 = vmatprep.subr.mxu0 0.0
    %5109 = vmatpush1.msra.mxu0 %v5077
    %5110 = vmatprep.subr.mxu0 0.0
    %5111 = vmatpush1.msra.mxu0 %v5076
    %5112 = vmatprep.subr.mxu0 0.0
    %5113 = vmatpush1.msra.mxu0 %v5075
    %5114 = vmatprep.subr.mxu0 0.0
    %5115 = vmatpush1.msra.mxu0 %v5074
    %5116 = vmatprep.subr.mxu0 0.0
    %5117 = vmatpush1.msra.mxu0 %v5073
    %5118 = vmatprep.subr.mxu0 0.0
    %5119 = vmatpush1.msra.mxu0 %v5072
    %5120 = vmatprep.subr.mxu0 0.0
    %5121 = vmatpush1.msra.mxu0 %v5071
    %5122 = vmatprep.subr.mxu0 0.0
    %5123 = vmatpush1.msra.mxu0 %v5070
    %5124 = vmatprep.subr.mxu0 0.0
    %5125 = vmatpush1.msra.mxu0 %v5069
    %5126 = vmatprep.subr.mxu0 0.0
    %5127 = vmatpush1.msra.mxu0 %v5068
    %5128 = vmatprep.subr.mxu0 0.0
    %5129 = vmatpush2.msra.mxu0 0.0
    %5130 = vmatprep.subr.mxu0 0.0
    %5131 = vmatpush2.msra.mxu0 0.0
    %5132 = vmatprep.subr.mxu0 0.0
    %5133 = vmatpush2.msra.mxu0 0.0
    %5134 = vmatprep.subr.mxu0 0.0
    %5135 = vmatpush2.msra.mxu0 0.0
    %5136 = vmatprep.subr.mxu0 0.0
    %5137 = vmatpush2.msra.mxu0 0.0
    %5138 = vmatprep.subr.mxu0 0.0
    %5139 = vmatpush2.msra.mxu0 0.0
    %5140 = vmatprep.subr.mxu0 0.0
    %5141 = vmatpush2.msra.mxu0 0.0
    %5142 = vmatprep.subr.mxu0 0.0
    %5143 = vmatpush2.msra.mxu0 0.0
    %5144 = vmatprep.subr.mxu0 0.0
    %5145 = vmatpush2.msra.mxu0 0.0
    %5146 = vmatprep.subr.mxu0 0.0
    %5147 = vmatpush2.msra.mxu0 0.0
    %5148 = vmatprep.subr.mxu0 0.0
    %5149 = vmatpush2.msra.mxu0 0.0
    %5150 = vmatprep.subr.mxu0 0.0
    %5151 = vmatpush2.msra.mxu0 0.0
    %5152 = vmatprep.subr.mxu0 0.0
    %5153 = vmatpush2.msra.mxu0 0.0
    %5154 = vmatprep.subr.mxu0 0.0
    %5155 = vmatpush2.msra.mxu0 0.0
    %5156 = vmatprep.subr.mxu0 0.0
    %5157 = vmatpush2.msra.mxu0 0.0
    %5158 = vmatprep.subr.mxu0 0.0
    %5159 = vmatpush2.msra.mxu0 0.0
    %5160 = vmatprep.mubr.f32.mxu0 0.0
    %5161 = vmatmul.mubr.f32.gmra.mxu0 %v5094
    %v5162 = vpop.f32.mrf.mxu0
    %v5163 = vadd.f32 %v5089, %v5162
    %v5164 = vpop.f32.mrf.mxu0
    %5165 = vdwg.mxu0
    %5166 = vst [vmem:[#allocation12] sm:$0x3] %v5163
    // Predicated region
    $region50: #{tpu_custom_call.1} parent=1 // pred_check
      _
    $region51: #{tpu_custom_call.1} parent=1 // pred_check_branch
      %5168 = sbr.rel (0) target = $region53
    $region52: #{tpu_custom_call.1} parent=1 // pred_region
      %s5170 = ssub.s32 32, 32
      %5171 = vsyncadd [#allocation4], %s5170
      %s5173 = sshll.u32 [#allocation12], 4
      %s5174 = int_to_ptr.vmem [resolvable:$true] %s5173
      %5176 = dma.vmem_to_hbm [thread:$0]  %s5174, 32, %s7, [#allocation4]
    $region53: #{tpu_custom_call.1} parent=1 // pred_fallthru
      _
    // Predicated region
    $region54: #{tpu_custom_call.1} parent=1 // pred_check
      _
    $region55: #{tpu_custom_call.1} parent=1 // pred_check_branch
      %5178 = sbr.rel (0) target = $region57
    $region56: #{tpu_custom_call.1} parent=1 // pred_region
      %5179 = dma.done [#allocation4], 32
    $region57: #{tpu_custom_call.1} parent=1 // pred_fallthru
      _
    %5180 = vsyncpa [#allocation3], 1
    %5181 = vsyncpa [#allocation10], 1
    %5182 = vsyncpa [#allocation4], 1
    %5183 = vsyncpa [#allocation5], 1
    %5184 = vsyncpa [#allocation8], 1

</llo_original>
